<compile_context>
chip_gen: v7x
topology: tpu7x:2x2x1
jax: 0.10.0
libtpu: 0.0.40
codegen_flags: <defaults>
</compile_context>

<pallas_src>
import functools

import jax
import jax.numpy as jnp
from jax import lax
from jax.experimental import pallas as pl
from jax.experimental.pallas import tpu as pltpu


LEAKY_SLOPE = 0.1


def _fold_bn(w, scale, bias):
    """Fold BN scale into conv weights.  Returns ((K*K*Cin, Cout) w, (1, Cout) b)."""
    k = w.shape[0]
    cin = w.shape[2]
    cout = w.shape[3]
    wf = (w * scale).reshape(k * k * cin, cout).astype(jnp.float32)
    bf = bias.reshape(1, cout).astype(jnp.float32)
    return wf, bf


# ------------------------- Stem: 3x3 conv, stride s ------------------------- #

def _stem_kernel(x_ref, w_ref, b_ref, o_ref, patch_ref, *, K, stride, Ho, Wo, slope):
    # x_ref:     (1, Hp*stride, Wcp, Cin)  column-phase-split, zero-padded input
    # w_ref:     (K*K*Cin, Cout)           BN-folded weights
    # b_ref:     (1, Cout)                 BN-folded bias
    # o_ref:     (1, Ho*Wo, Cout)          flat-spatial output
    # patch_ref: VMEM scratch (Ho*Wo, K*K*Cin), the im2col patch matrix
    #
    # Small unrolled loop over output rows builds the whole patch matrix with
    # unit-stride reads; the conv itself is a single MXU matmul.
    for i in range(Ho):
        taps = []
        for ky in range(K):
            for kx in range(K):
                row = (stride * i + ky) * stride + (kx % stride)
                col0 = kx // stride
                taps.append(x_ref[0, row, pl.ds(col0, Wo), :])       # (Wo, Cin)
        patch_ref[pl.ds(i * Wo, Wo), :] = jnp.concatenate(taps, axis=-1)

    y = jnp.dot(patch_ref[...], w_ref[...], preferred_element_type=jnp.float32)
    y = y + b_ref[...]
    y = jnp.maximum(y, slope * y)            # LeakyReLU (slope < 1)
    o_ref[0] = y.astype(o_ref.dtype)


def stem_conv_pallas(x, w, scale, bias, *, stride, slope=LEAKY_SLOPE):
    """3x3 conv (pad=K//2, stride) + folded BN + LeakyReLU.

    x: (N, H, W, Cin) f32 NHWC.  Returns (y_flat (N, Ho*Wo, Cout) f32, Ho, Wo).
    """
    N, H, W, Cin = x.shape
    K = w.shape[0]
    Cout = w.shape[-1]
    pad = K // 2
    Ho = (H + 2 * pad - K) // stride + 1
    Wo = (W + 2 * pad - K) // stride + 1
    Hp = H + 2 * pad
    Wp_raw = W + 2 * pad
    Wcp = -(-Wp_raw // stride)               # ceil(Wp / stride)
    Wp = Wcp * stride

    # Zero-pad the halo and split W into `stride` column phases (space-to-depth)
    # so the kernel never needs a strided sublane read.
    xp = jnp.pad(x, ((0, 0), (pad, pad), (pad, Wp - W - pad), (0, 0)))
    xcp = xp.reshape(N, Hp, Wcp, stride, Cin)
    xcp = jnp.transpose(xcp, (0, 1, 3, 2, 4)).reshape(N, Hp * stride, Wcp, Cin)

    wf, bf = _fold_bn(w, scale, bias)

    kernel = functools.partial(_stem_kernel, K=K, stride=stride, Ho=Ho, Wo=Wo,
                               slope=slope)
    flops = 2 * N * Ho * Wo * K * K * Cin * Cout
    bytes_accessed = 4 * (xcp.size + wf.size + bf.size + N * Ho * Wo * Cout)

    y = pl.pallas_call(
        kernel,
        out_shape=jax.ShapeDtypeStruct((N, Ho * Wo, Cout), jnp.float32),
        grid=(N,),
        in_specs=[
            pl.BlockSpec((1, Hp * stride, Wcp, Cin), lambda n: (n, 0, 0, 0)),
            pl.BlockSpec((K * K * Cin, Cout), lambda n: (0, 0)),
            pl.BlockSpec((1, Cout), lambda n: (0, 0)),
        ],
        out_specs=pl.BlockSpec((1, Ho * Wo, Cout), lambda n: (n, 0, 0)),
        scratch_shapes=[pltpu.VMEM((Ho * Wo, K * K * Cin), jnp.float32)],
        compiler_params=pltpu.CompilerParams(
            dimension_semantics=("parallel",)),
        cost_estimate=pl.CostEstimate(flops=flops, transcendentals=0,
                                      bytes_accessed=bytes_accessed),
    )(xcp, wf, bf)
    return y, Ho, Wo


# ----------------------- Fused StageBlock (one kernel) ---------------------- #

def _stage_block_kernel(x_ref, w1_ref, b1_ref, w3_ref, b3_ref, o_ref, hpad_ref,
                        *, W, K, slope):
    # x_ref:    (1, P, C2)    flat activations, P = H*W
    # w1_ref:   (C2, C1)      1x1 conv weights (BN folded)
    # w3_ref:   (K*K*C1, C2)  3x3 conv weights (BN folded)
    # hpad_ref: VMEM scratch (P + 2*(W+1), C1): zero-bordered flat intermediate
    P = x_ref.shape[1]
    C1 = w1_ref.shape[-1]
    padr = W + 1                            # covers every shift |dy*W + dx| <= W+1

    xv = x_ref[0]                                                  # (P, C2)

    # 1x1 conv + folded BN + leaky -- intermediate stays in VMEM.
    h = jnp.dot(xv, w1_ref[...], preferred_element_type=jnp.float32)
    h = h + b1_ref[...]
    h = jnp.maximum(h, slope * h)

    # Zero-bordered flat copy of h: tap (dy, dx) of the 3x3 conv becomes a plain
    # contiguous row-shifted read starting at padr + dy*W + dx.
    hpad_ref[pl.ds(0, padr), :] = jnp.zeros((padr, C1), jnp.float32)
    hpad_ref[pl.ds(padr + P, padr), :] = jnp.zeros((padr, C1), jnp.float32)
    hpad_ref[pl.ds(padr, P), :] = h

    col = lax.broadcasted_iota(jnp.int32, (P, 1), 0) % W           # pixel column j
    taps = []
    for ky in range(K):
        dy = ky - K // 2
        for kx in range(K):
            dx = kx - K // 2
            t = hpad_ref[pl.ds(padr + dy * W + dx, P), :]          # (P, C1)
            if dx < 0:      # left taps invalid for columns 0 .. -dx-1
                t = jnp.where(col >= -dx, t, 0.0)
            elif dx > 0:    # right taps invalid for the last dx columns
                t = jnp.where(col < W - dx, t, 0.0)
            taps.append(t)
    patch = jnp.concatenate(taps, axis=-1)                         # (P, K*K*C1)

    # 3x3 conv + folded BN + leaky + residual add (residual after activation,
    # matching StageBlock semantics).
    y = jnp.dot(patch, w3_ref[...], preferred_element_type=jnp.float32)
    y = y + b3_ref[...]
    y = jnp.maximum(y, slope * y)
    o_ref[0] = (xv + y).astype(o_ref.dtype)


def stage_block_pallas(x_flat, H, W, block_params, slope=LEAKY_SLOPE):
    """Fused StageBlock: y = x + leaky(bn(conv3x3(leaky(bn(conv1x1(x))))))."""
    N, P, C2 = x_flat.shape
    assert P == H * W
    w1, s1, b1 = block_params["conv1x1"]
    w3, s3, b3 = block_params["conv3x3"]
    C1 = w1.shape[-1]
    K = w3.shape[0]

    w1f, b1f = _fold_bn(w1, s1, b1)          # (C2, C1), (1, C1)
    w3f, b3f = _fold_bn(w3, s3, b3)          # (K*K*C1, C2), (1, C2)

    kernel = functools.partial(_stage_block_kernel, W=W, K=K, slope=slope)
    flops = 2 * N * P * C2 * C1 + 2 * N * P * (K * K * C1) * C2
    bytes_accessed = 4 * (2 * x_flat.size + w1f.size + w3f.size
                          + b1f.size + b3f.size)

    return pl.pallas_call(
        kernel,
        out_shape=jax.ShapeDtypeStruct((N, P, C2), jnp.float32),
        grid=(N,),
        in_specs=[
            pl.BlockSpec((1, P, C2), lambda n: (n, 0, 0)),
            pl.BlockSpec((C2, C1), lambda n: (0, 0)),
            pl.BlockSpec((1, C1), lambda n: (0, 0)),
            pl.BlockSpec((K * K * C1, C2), lambda n: (0, 0)),
            pl.BlockSpec((1, C2), lambda n: (0, 0)),
        ],
        out_specs=pl.BlockSpec((1, P, C2), lambda n: (n, 0, 0)),
        scratch_shapes=[pltpu.VMEM((P + 2 * (W + 1), C1), jnp.float32)],
        compiler_params=pltpu.CompilerParams(
            dimension_semantics=("parallel",)),
        cost_estimate=pl.CostEstimate(flops=flops, transcendentals=0,
                                      bytes_accessed=bytes_accessed),
    )(x_flat, w1f, b1f, w3f, b3f)


# ----------------------------- Stage (Pallas path) --------------------------- #

def stage_forward_pallas(x, params, stride):
    """x: (N, H, W, C) NHWC f32 -> (N, Ho, Wo, 2C) NHWC f32."""
    N = x.shape[0]
    y, Ho, Wo = stem_conv_pallas(x, *params["stem"], stride=stride)
    for blk in params["blocks"]:
        y = stage_block_pallas(y, Ho, Wo, blk)
    return y.reshape(N, Ho, Wo, y.shape[-1])


# ------------------------ Pure-JAX reference (check) ------------------------ #

def _ref_conv_bn_leaky(x, w, scale, bias, stride, slope=LEAKY_SLOPE):
    pad = w.shape[0] // 2
    y = lax.conv_general_dilated(
        x, w, window_strides=(stride, stride),
        padding=((pad, pad), (pad, pad)),
        dimension_numbers=("NHWC", "HWIO", "NHWC"))
    y = y * scale + bias
    return jnp.where(y >= 0, y, slope * y)


def stage_forward_ref(x, params, stride):
    y = _ref_conv_bn_leaky(x, *params["stem"], stride)
    for blk in params["blocks"]:
        h = _ref_conv_bn_leaky(y, *blk["conv1x1"], 1)
        y = y + _ref_conv_bn_leaky(h, *blk["conv3x3"], 1)
    return y


# ------------------------------ Parameter init ------------------------------ #

def make_conv_bn_params(key, cin, cout, k):
    k1, k2, k3, k4, k5 = jax.random.split(key, 5)
    w = jax.random.normal(k1, (k, k, cin, cout), jnp.float32) / jnp.sqrt(k * k * cin)
    gamma = jax.random.uniform(k2, (cout,), jnp.float32, 0.5, 1.5)
    beta = jax.random.normal(k3, (cout,), jnp.float32) * 0.1
    mean = jax.random.normal(k4, (cout,), jnp.float32) * 0.1
    var = jax.random.uniform(k5, (cout,), jnp.float32, 0.5, 1.5)
    eps = 1e-5
    scale = gamma / jnp.sqrt(var + eps)       # fold BN (inference semantics)
    bias = beta - mean * scale
    return (w, scale, bias)


def make_stage_params(key, nchannels, nblocks):
    c2 = 2 * nchannels
    keys = jax.random.split(key, 1 + 2 * nblocks)
    params = {"stem": make_conv_bn_params(keys[0], nchannels, c2, 3), "blocks": []}
    for i in range(nblocks):
        params["blocks"].append({
            "conv1x1": make_conv_bn_params(keys[1 + 2 * i], c2, c2 // 2, 1),
            "conv3x3": make_conv_bn_params(keys[2 + 2 * i], c2 // 2, c2, 3),
        })
    return params


# ----------------------------------- Main ----------------------------------- #

if __name__ == "__main__":
    nchannels, nblocks, stride = 4, 2, 2
    N, H, W = 2, 16, 16

    root = jax.random.PRNGKey(0)
    k_x, k_p = jax.random.split(root)

    # PyTorch input would be NCHW (2, 4, 16, 16); transposed to NHWC internally.
    x_nchw = jax.random.normal(k_x, (N, nchannels, H, W), jnp.float32)
    x = jnp.transpose(x_nchw, (0, 2, 3, 1))          # -> NHWC

    params = make_stage_params(k_p, nchannels, nblocks)

    fwd = jax.jit(functools.partial(stage_forward_pallas, stride=stride))
    out = jax.block_until_ready(fwd(x, params))

    ref = jax.block_until_ready(stage_forward_ref(x, params, stride))

    assert out.shape == (N, H // stride, W // stride, 2 * nchannels), out.shape
    max_err = float(jnp.max(jnp.abs(out - ref)))
    assert jnp.allclose(out, ref, rtol=1e-3, atol=1e-3), max_err
    print("KERNEL_OK")
</pallas_src>

<mosaic_0001>
module attributes {stable_mosaic.version = 11 : i64} {
  func.func @_stem_kernel(%arg0: i32, %arg1: memref<1x36x9x4xf32, #tpu.memory_space<vmem>>, %arg2: memref<36x8xf32, #tpu.memory_space<vmem>>, %arg3: memref<1x8xf32, #tpu.memory_space<vmem>>, %arg4: memref<1x64x8xf32, #tpu.memory_space<vmem>>, %arg5: memref<64x36xf32, #tpu.memory_space<vmem>>) attributes {dimension_semantics = [#tpu.dimension_semantics<parallel>], iteration_bounds = array<i64: 2>, scalar_prefetch = 0 : i64, scratch_operands = 1 : i64, tpu.core_type = #tpu.core_type<tc>, window_params = [{transform_indices = @transform_0, window_bounds = array<i64: 1, 36, 9, 4>}, {pipeline_mode = #tpu.pipeline_mode<synchronous>, transform_indices = @transform_1, window_bounds = array<i64: 36, 8>}, {pipeline_mode = #tpu.pipeline_mode<synchronous>, transform_indices = @transform_2, window_bounds = array<i64: 1, 8>}, {transform_indices = @transform_3, window_bounds = array<i64: 1, 64, 8>}]} {
    %c0 = arith.constant 0 : index
    %c0_0 = arith.constant 0 : index
    %c0_1 = arith.constant 0 : index
    %c0_2 = arith.constant 0 : index
    %0 = vector.load %arg1[%c0, %c0_0, %c0_1, %c0_2] : memref<1x36x9x4xf32, #tpu.memory_space<vmem>>, vector<1x1x8x4xf32>
    %1 = vector.shape_cast %0 : vector<1x1x8x4xf32> to vector<8x4xf32>
    %c0_3 = arith.constant 0 : index
    %c1 = arith.constant 1 : index
    %c0_4 = arith.constant 0 : index
    %c0_5 = arith.constant 0 : index
    %2 = vector.load %arg1[%c0_3, %c1, %c0_4, %c0_5] : memref<1x36x9x4xf32, #tpu.memory_space<vmem>>, vector<1x1x8x4xf32>
    %3 = vector.shape_cast %2 : vector<1x1x8x4xf32> to vector<8x4xf32>
    %c0_6 = arith.constant 0 : index
    %c0_7 = arith.constant 0 : index
    %c1_8 = arith.constant 1 : index
    %c0_9 = arith.constant 0 : index
    %4 = vector.load %arg1[%c0_6, %c0_7, %c1_8, %c0_9] : memref<1x36x9x4xf32, #tpu.memory_space<vmem>>, vector<1x1x8x4xf32>
    %5 = vector.shape_cast %4 : vector<1x1x8x4xf32> to vector<8x4xf32>
    %c0_10 = arith.constant 0 : index
    %c2 = arith.constant 2 : index
    %c0_11 = arith.constant 0 : index
    %c0_12 = arith.constant 0 : index
    %6 = vector.load %arg1[%c0_10, %c2, %c0_11, %c0_12] : memref<1x36x9x4xf32, #tpu.memory_space<vmem>>, vector<1x1x8x4xf32>
    %7 = vector.shape_cast %6 : vector<1x1x8x4xf32> to vector<8x4xf32>
    %c0_13 = arith.constant 0 : index
    %c3 = arith.constant 3 : index
    %c0_14 = arith.constant 0 : index
    %c0_15 = arith.constant 0 : index
    %8 = vector.load %arg1[%c0_13, %c3, %c0_14, %c0_15] : memref<1x36x9x4xf32, #tpu.memory_space<vmem>>, vector<1x1x8x4xf32>
    %9 = vector.shape_cast %8 : vector<1x1x8x4xf32> to vector<8x4xf32>
    %c0_16 = arith.constant 0 : index
    %c2_17 = arith.constant 2 : index
    %c1_18 = arith.constant 1 : index
    %c0_19 = arith.constant 0 : index
    %10 = vector.load %arg1[%c0_16, %c2_17, %c1_18, %c0_19] : memref<1x36x9x4xf32, #tpu.memory_space<vmem>>, vector<1x1x8x4xf32>
    %11 = vector.shape_cast %10 : vector<1x1x8x4xf32> to vector<8x4xf32>
    %c0_20 = arith.constant 0 : index
    %c4 = arith.constant 4 : index
    %c0_21 = arith.constant 0 : index
    %c0_22 = arith.constant 0 : index
    %12 = vector.load %arg1[%c0_20, %c4, %c0_21, %c0_22] : memref<1x36x9x4xf32, #tpu.memory_space<vmem>>, vector<1x1x8x4xf32>
    %13 = vector.shape_cast %12 : vector<1x1x8x4xf32> to vector<8x4xf32>
    %c0_23 = arith.constant 0 : index
    %c5 = arith.constant 5 : index
    %c0_24 = arith.constant 0 : index
    %c0_25 = arith.constant 0 : index
    %14 = vector.load %arg1[%c0_23, %c5, %c0_24, %c0_25] : memref<1x36x9x4xf32, #tpu.memory_space<vmem>>, vector<1x1x8x4xf32>
    %15 = vector.shape_cast %14 : vector<1x1x8x4xf32> to vector<8x4xf32>
    %c0_26 = arith.constant 0 : index
    %c4_27 = arith.constant 4 : index
    %c1_28 = arith.constant 1 : index
    %c0_29 = arith.constant 0 : index
    %16 = vector.load %arg1[%c0_26, %c4_27, %c1_28, %c0_29] : memref<1x36x9x4xf32, #tpu.memory_space<vmem>>, vector<1x1x8x4xf32>
    %17 = vector.shape_cast %16 : vector<1x1x8x4xf32> to vector<8x4xf32>
    %18 = tpu.concatenate %1, %3, %5, %7, %9, %11, %13, %15, %17 in 1 : vector<8x4xf32>, vector<8x4xf32>, vector<8x4xf32>, vector<8x4xf32>, vector<8x4xf32>, vector<8x4xf32>, vector<8x4xf32>, vector<8x4xf32>, vector<8x4xf32> -> vector<8x36xf32>
    %c0_30 = arith.constant 0 : index
    %c0_31 = arith.constant 0 : index
    %19 = vector.load %arg5[%c0_30, %c0_31] : memref<64x36xf32, #tpu.memory_space<vmem>>, vector<8x36xf32>
    tpu.vector_store %arg5[%c0_30, %c0_31], %18 {strides = array<i32>} : memref<64x36xf32, #tpu.memory_space<vmem>>, vector<8x36xf32>,
    %c0_32 = arith.constant 0 : index
    %c4_33 = arith.constant 4 : index
    %c0_34 = arith.constant 0 : index
    %c0_35 = arith.constant 0 : index
    %20 = vector.load %arg1[%c0_32, %c4_33, %c0_34, %c0_35] : memref<1x36x9x4xf32, #tpu.memory_space<vmem>>, vector<1x1x8x4xf32>
    %21 = vector.shape_cast %20 : vector<1x1x8x4xf32> to vector<8x4xf32>
    %c0_36 = arith.constant 0 : index
    %c5_37 = arith.constant 5 : index
    %c0_38 = arith.constant 0 : index
    %c0_39 = arith.constant 0 : index
    %22 = vector.load %arg1[%c0_36, %c5_37, %c0_38, %c0_39] : memref<1x36x9x4xf32, #tpu.memory_space<vmem>>, vector<1x1x8x4xf32>
    %23 = vector.shape_cast %22 : vector<1x1x8x4xf32> to vector<8x4xf32>
    %c0_40 = arith.constant 0 : index
    %c4_41 = arith.constant 4 : index
    %c1_42 = arith.constant 1 : index
    %c0_43 = arith.constant 0 : index
    %24 = vector.load %arg1[%c0_40, %c4_41, %c1_42, %c0_43] : memref<1x36x9x4xf32, #tpu.memory_space<vmem>>, vector<1x1x8x4xf32>
    %25 = vector.shape_cast %24 : vector<1x1x8x4xf32> to vector<8x4xf32>
    %c0_44 = arith.constant 0 : index
    %c6 = arith.constant 6 : index
    %c0_45 = arith.constant 0 : index
    %c0_46 = arith.constant 0 : index
    %26 = vector.load %arg1[%c0_44, %c6, %c0_45, %c0_46] : memref<1x36x9x4xf32, #tpu.memory_space<vmem>>, vector<1x1x8x4xf32>
    %27 = vector.shape_cast %26 : vector<1x1x8x4xf32> to vector<8x4xf32>
    %c0_47 = arith.constant 0 : index
    %c7 = arith.constant 7 : index
    %c0_48 = arith.constant 0 : index
    %c0_49 = arith.constant 0 : index
    %28 = vector.load %arg1[%c0_47, %c7, %c0_48, %c0_49] : memref<1x36x9x4xf32, #tpu.memory_space<vmem>>, vector<1x1x8x4xf32>
    %29 = vector.shape_cast %28 : vector<1x1x8x4xf32> to vector<8x4xf32>
    %c0_50 = arith.constant 0 : index
    %c6_51 = arith.constant 6 : index
    %c1_52 = arith.constant 1 : index
    %c0_53 = arith.constant 0 : index
    %30 = vector.load %arg1[%c0_50, %c6_51, %c1_52, %c0_53] : memref<1x36x9x4xf32, #tpu.memory_space<vmem>>, vector<1x1x8x4xf32>
    %31 = vector.shape_cast %30 : vector<1x1x8x4xf32> to vector<8x4xf32>
    %c0_54 = arith.constant 0 : index
    %c8 = arith.constant 8 : index
    %c0_55 = arith.constant 0 : index
    %c0_56 = arith.constant 0 : index
    %32 = vector.load %arg1[%c0_54, %c8, %c0_55, %c0_56] : memref<1x36x9x4xf32, #tpu.memory_space<vmem>>, vector<1x1x8x4xf32>
    %33 = vector.shape_cast %32 : vector<1x1x8x4xf32> to vector<8x4xf32>
    %c0_57 = arith.constant 0 : index
    %c9 = arith.constant 9 : index
    %c0_58 = arith.constant 0 : index
    %c0_59 = arith.constant 0 : index
    %34 = vector.load %arg1[%c0_57, %c9, %c0_58, %c0_59] : memref<1x36x9x4xf32, #tpu.memory_space<vmem>>, vector<1x1x8x4xf32>
    %35 = vector.shape_cast %34 : vector<1x1x8x4xf32> to vector<8x4xf32>
    %c0_60 = arith.constant 0 : index
    %c8_61 = arith.constant 8 : index
    %c1_62 = arith.constant 1 : index
    %c0_63 = arith.constant 0 : index
    %36 = vector.load %arg1[%c0_60, %c8_61, %c1_62, %c0_63] : memref<1x36x9x4xf32, #tpu.memory_space<vmem>>, vector<1x1x8x4xf32>
    %37 = vector.shape_cast %36 : vector<1x1x8x4xf32> to vector<8x4xf32>
    %38 = tpu.concatenate %21, %23, %25, %27, %29, %31, %33, %35, %37 in 1 : vector<8x4xf32>, vector<8x4xf32>, vector<8x4xf32>, vector<8x4xf32>, vector<8x4xf32>, vector<8x4xf32>, vector<8x4xf32>, vector<8x4xf32>, vector<8x4xf32> -> vector<8x36xf32>
    %c8_64 = arith.constant 8 : index
    %c0_65 = arith.constant 0 : index
    %39 = vector.load %arg5[%c8_64, %c0_65] : memref<64x36xf32, #tpu.memory_space<vmem>>, vector<8x36xf32>
    tpu.vector_store %arg5[%c8_64, %c0_65], %38 {strides = array<i32>} : memref<64x36xf32, #tpu.memory_space<vmem>>, vector<8x36xf32>,
    %c0_66 = arith.constant 0 : index
    %c8_67 = arith.constant 8 : index
    %c0_68 = arith.constant 0 : index
    %c0_69 = arith.constant 0 : index
    %40 = vector.load %arg1[%c0_66, %c8_67, %c0_68, %c0_69] : memref<1x36x9x4xf32, #tpu.memory_space<vmem>>, vector<1x1x8x4xf32>
    %41 = vector.shape_cast %40 : vector<1x1x8x4xf32> to vector<8x4xf32>
    %c0_70 = arith.constant 0 : index
    %c9_71 = arith.constant 9 : index
    %c0_72 = arith.constant 0 : index
    %c0_73 = arith.constant 0 : index
    %42 = vector.load %arg1[%c0_70, %c9_71, %c0_72, %c0_73] : memref<1x36x9x4xf32, #tpu.memory_space<vmem>>, vector<1x1x8x4xf32>
    %43 = vector.shape_cast %42 : vector<1x1x8x4xf32> to vector<8x4xf32>
    %c0_74 = arith.constant 0 : index
    %c8_75 = arith.constant 8 : index
    %c1_76 = arith.constant 1 : index
    %c0_77 = arith.constant 0 : index
    %44 = vector.load %arg1[%c0_74, %c8_75, %c1_76, %c0_77] : memref<1x36x9x4xf32, #tpu.memory_space<vmem>>, vector<1x1x8x4xf32>
    %45 = vector.shape_cast %44 : vector<1x1x8x4xf32> to vector<8x4xf32>
    %c0_78 = arith.constant 0 : index
    %c10 = arith.constant 10 : index
    %c0_79 = arith.constant 0 : index
    %c0_80 = arith.constant 0 : index
    %46 = vector.load %arg1[%c0_78, %c10, %c0_79, %c0_80] : memref<1x36x9x4xf32, #tpu.memory_space<vmem>>, vector<1x1x8x4xf32>
    %47 = vector.shape_cast %46 : vector<1x1x8x4xf32> to vector<8x4xf32>
    %c0_81 = arith.constant 0 : index
    %c11 = arith.constant 11 : index
    %c0_82 = arith.constant 0 : index
    %c0_83 = arith.constant 0 : index
    %48 = vector.load %arg1[%c0_81, %c11, %c0_82, %c0_83] : memref<1x36x9x4xf32, #tpu.memory_space<vmem>>, vector<1x1x8x4xf32>
    %49 = vector.shape_cast %48 : vector<1x1x8x4xf32> to vector<8x4xf32>
    %c0_84 = arith.constant 0 : index
    %c10_85 = arith.constant 10 : index
    %c1_86 = arith.constant 1 : index
    %c0_87 = arith.constant 0 : index
    %50 = vector.load %arg1[%c0_84, %c10_85, %c1_86, %c0_87] : memref<1x36x9x4xf32, #tpu.memory_space<vmem>>, vector<1x1x8x4xf32>
    %51 = vector.shape_cast %50 : vector<1x1x8x4xf32> to vector<8x4xf32>
    %c0_88 = arith.constant 0 : index
    %c12 = arith.constant 12 : index
    %c0_89 = arith.constant 0 : index
    %c0_90 = arith.constant 0 : index
    %52 = vector.load %arg1[%c0_88, %c12, %c0_89, %c0_90] : memref<1x36x9x4xf32, #tpu.memory_space<vmem>>, vector<1x1x8x4xf32>
    %53 = vector.shape_cast %52 : vector<1x1x8x4xf32> to vector<8x4xf32>
    %c0_91 = arith.constant 0 : index
    %c13 = arith.constant 13 : index
    %c0_92 = arith.constant 0 : index
    %c0_93 = arith.constant 0 : index
    %54 = vector.load %arg1[%c0_91, %c13, %c0_92, %c0_93] : memref<1x36x9x4xf32, #tpu.memory_space<vmem>>, vector<1x1x8x4xf32>
    %55 = vector.shape_cast %54 : vector<1x1x8x4xf32> to vector<8x4xf32>
    %c0_94 = arith.constant 0 : index
    %c12_95 = arith.constant 12 : index
    %c1_96 = arith.constant 1 : index
    %c0_97 = arith.constant 0 : index
    %56 = vector.load %arg1[%c0_94, %c12_95, %c1_96, %c0_97] : memref<1x36x9x4xf32, #tpu.memory_space<vmem>>, vector<1x1x8x4xf32>
    %57 = vector.shape_cast %56 : vector<1x1x8x4xf32> to vector<8x4xf32>
    %58 = tpu.concatenate %41, %43, %45, %47, %49, %51, %53, %55, %57 in 1 : vector<8x4xf32>, vector<8x4xf32>, vector<8x4xf32>, vector<8x4xf32>, vector<8x4xf32>, vector<8x4xf32>, vector<8x4xf32>, vector<8x4xf32>, vector<8x4xf32> -> vector<8x36xf32>
    %c16 = arith.constant 16 : index
    %c0_98 = arith.constant 0 : index
    %59 = vector.load %arg5[%c16, %c0_98] : memref<64x36xf32, #tpu.memory_space<vmem>>, vector<8x36xf32>
    tpu.vector_store %arg5[%c16, %c0_98], %58 {strides = array<i32>} : memref<64x36xf32, #tpu.memory_space<vmem>>, vector<8x36xf32>,
    %c0_99 = arith.constant 0 : index
    %c12_100 = arith.constant 12 : index
    %c0_101 = arith.constant 0 : index
    %c0_102 = arith.constant 0 : index
    %60 = vector.load %arg1[%c0_99, %c12_100, %c0_101, %c0_102] : memref<1x36x9x4xf32, #tpu.memory_space<vmem>>, vector<1x1x8x4xf32>
    %61 = vector.shape_cast %60 : vector<1x1x8x4xf32> to vector<8x4xf32>
    %c0_103 = arith.constant 0 : index
    %c13_104 = arith.constant 13 : index
    %c0_105 = arith.constant 0 : index
    %c0_106 = arith.constant 0 : index
    %62 = vector.load %arg1[%c0_103, %c13_104, %c0_105, %c0_106] : memref<1x36x9x4xf32, #tpu.memory_space<vmem>>, vector<1x1x8x4xf32>
    %63 = vector.shape_cast %62 : vector<1x1x8x4xf32> to vector<8x4xf32>
    %c0_107 = arith.constant 0 : index
    %c12_108 = arith.constant 12 : index
    %c1_109 = arith.constant 1 : index
    %c0_110 = arith.constant 0 : index
    %64 = vector.load %arg1[%c0_107, %c12_108, %c1_109, %c0_110] : memref<1x36x9x4xf32, #tpu.memory_space<vmem>>, vector<1x1x8x4xf32>
    %65 = vector.shape_cast %64 : vector<1x1x8x4xf32> to vector<8x4xf32>
    %c0_111 = arith.constant 0 : index
    %c14 = arith.constant 14 : index
    %c0_112 = arith.constant 0 : index
    %c0_113 = arith.constant 0 : index
    %66 = vector.load %arg1[%c0_111, %c14, %c0_112, %c0_113] : memref<1x36x9x4xf32, #tpu.memory_space<vmem>>, vector<1x1x8x4xf32>
    %67 = vector.shape_cast %66 : vector<1x1x8x4xf32> to vector<8x4xf32>
    %c0_114 = arith.constant 0 : index
    %c15 = arith.constant 15 : index
    %c0_115 = arith.constant 0 : index
    %c0_116 = arith.constant 0 : index
    %68 = vector.load %arg1[%c0_114, %c15, %c0_115, %c0_116] : memref<1x36x9x4xf32, #tpu.memory_space<vmem>>, vector<1x1x8x4xf32>
    %69 = vector.shape_cast %68 : vector<1x1x8x4xf32> to vector<8x4xf32>
    %c0_117 = arith.constant 0 : index
    %c14_118 = arith.constant 14 : index
    %c1_119 = arith.constant 1 : index
    %c0_120 = arith.constant 0 : index
    %70 = vector.load %arg1[%c0_117, %c14_118, %c1_119, %c0_120] : memref<1x36x9x4xf32, #tpu.memory_space<vmem>>, vector<1x1x8x4xf32>
    %71 = vector.shape_cast %70 : vector<1x1x8x4xf32> to vector<8x4xf32>
    %c0_121 = arith.constant 0 : index
    %c16_122 = arith.constant 16 : index
    %c0_123 = arith.constant 0 : index
    %c0_124 = arith.constant 0 : index
    %72 = vector.load %arg1[%c0_121, %c16_122, %c0_123, %c0_124] : memref<1x36x9x4xf32, #tpu.memory_space<vmem>>, vector<1x1x8x4xf32>
    %73 = vector.shape_cast %72 : vector<1x1x8x4xf32> to vector<8x4xf32>
    %c0_125 = arith.constant 0 : index
    %c17 = arith.constant 17 : index
    %c0_126 = arith.constant 0 : index
    %c0_127 = arith.constant 0 : index
    %74 = vector.load %arg1[%c0_125, %c17, %c0_126, %c0_127] : memref<1x36x9x4xf32, #tpu.memory_space<vmem>>, vector<1x1x8x4xf32>
    %75 = vector.shape_cast %74 : vector<1x1x8x4xf32> to vector<8x4xf32>
    %c0_128 = arith.constant 0 : index
    %c16_129 = arith.constant 16 : index
    %c1_130 = arith.constant 1 : index
    %c0_131 = arith.constant 0 : index
    %76 = vector.load %arg1[%c0_128, %c16_129, %c1_130, %c0_131] : memref<1x36x9x4xf32, #tpu.memory_space<vmem>>, vector<1x1x8x4xf32>
    %77 = vector.shape_cast %76 : vector<1x1x8x4xf32> to vector<8x4xf32>
    %78 = tpu.concatenate %61, %63, %65, %67, %69, %71, %73, %75, %77 in 1 : vector<8x4xf32>, vector<8x4xf32>, vector<8x4xf32>, vector<8x4xf32>, vector<8x4xf32>, vector<8x4xf32>, vector<8x4xf32>, vector<8x4xf32>, vector<8x4xf32> -> vector<8x36xf32>
    %c24 = arith.constant 24 : index
    %c0_132 = arith.constant 0 : index
    %79 = vector.load %arg5[%c24, %c0_132] : memref<64x36xf32, #tpu.memory_space<vmem>>, vector<8x36xf32>
    tpu.vector_store %arg5[%c24, %c0_132], %78 {strides = array<i32>} : memref<64x36xf32, #tpu.memory_space<vmem>>, vector<8x36xf32>,
    %c0_133 = arith.constant 0 : index
    %c16_134 = arith.constant 16 : index
    %c0_135 = arith.constant 0 : index
    %c0_136 = arith.constant 0 : index
    %80 = vector.load %arg1[%c0_133, %c16_134, %c0_135, %c0_136] : memref<1x36x9x4xf32, #tpu.memory_space<vmem>>, vector<1x1x8x4xf32>
    %81 = vector.shape_cast %80 : vector<1x1x8x4xf32> to vector<8x4xf32>
    %c0_137 = arith.constant 0 : index
    %c17_138 = arith.constant 17 : index
    %c0_139 = arith.constant 0 : index
    %c0_140 = arith.constant 0 : index
    %82 = vector.load %arg1[%c0_137, %c17_138, %c0_139, %c0_140] : memref<1x36x9x4xf32, #tpu.memory_space<vmem>>, vector<1x1x8x4xf32>
    %83 = vector.shape_cast %82 : vector<1x1x8x4xf32> to vector<8x4xf32>
    %c0_141 = arith.constant 0 : index
    %c16_142 = arith.constant 16 : index
    %c1_143 = arith.constant 1 : index
    %c0_144 = arith.constant 0 : index
    %84 = vector.load %arg1[%c0_141, %c16_142, %c1_143, %c0_144] : memref<1x36x9x4xf32, #tpu.memory_space<vmem>>, vector<1x1x8x4xf32>
    %85 = vector.shape_cast %84 : vector<1x1x8x4xf32> to vector<8x4xf32>
    %c0_145 = arith.constant 0 : index
    %c18 = arith.constant 18 : index
    %c0_146 = arith.constant 0 : index
    %c0_147 = arith.constant 0 : index
    %86 = vector.load %arg1[%c0_145, %c18, %c0_146, %c0_147] : memref<1x36x9x4xf32, #tpu.memory_space<vmem>>, vector<1x1x8x4xf32>
    %87 = vector.shape_cast %86 : vector<1x1x8x4xf32> to vector<8x4xf32>
    %c0_148 = arith.constant 0 : index
    %c19 = arith.constant 19 : index
    %c0_149 = arith.constant 0 : index
    %c0_150 = arith.constant 0 : index
    %88 = vector.load %arg1[%c0_148, %c19, %c0_149, %c0_150] : memref<1x36x9x4xf32, #tpu.memory_space<vmem>>, vector<1x1x8x4xf32>
    %89 = vector.shape_cast %88 : vector<1x1x8x4xf32> to vector<8x4xf32>
    %c0_151 = arith.constant 0 : index
    %c18_152 = arith.constant 18 : index
    %c1_153 = arith.constant 1 : index
    %c0_154 = arith.constant 0 : index
    %90 = vector.load %arg1[%c0_151, %c18_152, %c1_153, %c0_154] : memref<1x36x9x4xf32, #tpu.memory_space<vmem>>, vector<1x1x8x4xf32>
    %91 = vector.shape_cast %90 : vector<1x1x8x4xf32> to vector<8x4xf32>
    %c0_155 = arith.constant 0 : index
    %c20 = arith.constant 20 : index
    %c0_156 = arith.constant 0 : index
    %c0_157 = arith.constant 0 : index
    %92 = vector.load %arg1[%c0_155, %c20, %c0_156, %c0_157] : memref<1x36x9x4xf32, #tpu.memory_space<vmem>>, vector<1x1x8x4xf32>
    %93 = vector.shape_cast %92 : vector<1x1x8x4xf32> to vector<8x4xf32>
    %c0_158 = arith.constant 0 : index
    %c21 = arith.constant 21 : index
    %c0_159 = arith.constant 0 : index
    %c0_160 = arith.constant 0 : index
    %94 = vector.load %arg1[%c0_158, %c21, %c0_159, %c0_160] : memref<1x36x9x4xf32, #tpu.memory_space<vmem>>, vector<1x1x8x4xf32>
    %95 = vector.shape_cast %94 : vector<1x1x8x4xf32> to vector<8x4xf32>
    %c0_161 = arith.constant 0 : index
    %c20_162 = arith.constant 20 : index
    %c1_163 = arith.constant 1 : index
    %c0_164 = arith.constant 0 : index
    %96 = vector.load %arg1[%c0_161, %c20_162, %c1_163, %c0_164] : memref<1x36x9x4xf32, #tpu.memory_space<vmem>>, vector<1x1x8x4xf32>
    %97 = vector.shape_cast %96 : vector<1x1x8x4xf32> to vector<8x4xf32>
    %98 = tpu.concatenate %81, %83, %85, %87, %89, %91, %93, %95, %97 in 1 : vector<8x4xf32>, vector<8x4xf32>, vector<8x4xf32>, vector<8x4xf32>, vector<8x4xf32>, vector<8x4xf32>, vector<8x4xf32>, vector<8x4xf32>, vector<8x4xf32> -> vector<8x36xf32>
    %c32 = arith.constant 32 : index
    %c0_165 = arith.constant 0 : index
    %99 = vector.load %arg5[%c32, %c0_165] : memref<64x36xf32, #tpu.memory_space<vmem>>, vector<8x36xf32>
    tpu.vector_store %arg5[%c32, %c0_165], %98 {strides = array<i32>} : memref<64x36xf32, #tpu.memory_space<vmem>>, vector<8x36xf32>,
    %c0_166 = arith.constant 0 : index
    %c20_167 = arith.constant 20 : index
    %c0_168 = arith.constant 0 : index
    %c0_169 = arith.constant 0 : index
    %100 = vector.load %arg1[%c0_166, %c20_167, %c0_168, %c0_169] : memref<1x36x9x4xf32, #tpu.memory_space<vmem>>, vector<1x1x8x4xf32>
    %101 = vector.shape_cast %100 : vector<1x1x8x4xf32> to vector<8x4xf32>
    %c0_170 = arith.constant 0 : index
    %c21_171 = arith.constant 21 : index
    %c0_172 = arith.constant 0 : index
    %c0_173 = arith.constant 0 : index
    %102 = vector.load %arg1[%c0_170, %c21_171, %c0_172, %c0_173] : memref<1x36x9x4xf32, #tpu.memory_space<vmem>>, vector<1x1x8x4xf32>
    %103 = vector.shape_cast %102 : vector<1x1x8x4xf32> to vector<8x4xf32>
    %c0_174 = arith.constant 0 : index
    %c20_175 = arith.constant 20 : index
    %c1_176 = arith.constant 1 : index
    %c0_177 = arith.constant 0 : index
    %104 = vector.load %arg1[%c0_174, %c20_175, %c1_176, %c0_177] : memref<1x36x9x4xf32, #tpu.memory_space<vmem>>, vector<1x1x8x4xf32>
    %105 = vector.shape_cast %104 : vector<1x1x8x4xf32> to vector<8x4xf32>
    %c0_178 = arith.constant 0 : index
    %c22 = arith.constant 22 : index
    %c0_179 = arith.constant 0 : index
    %c0_180 = arith.constant 0 : index
    %106 = vector.load %arg1[%c0_178, %c22, %c0_179, %c0_180] : memref<1x36x9x4xf32, #tpu.memory_space<vmem>>, vector<1x1x8x4xf32>
    %107 = vector.shape_cast %106 : vector<1x1x8x4xf32> to vector<8x4xf32>
    %c0_181 = arith.constant 0 : index
    %c23 = arith.constant 23 : index
    %c0_182 = arith.constant 0 : index
    %c0_183 = arith.constant 0 : index
    %108 = vector.load %arg1[%c0_181, %c23, %c0_182, %c0_183] : memref<1x36x9x4xf32, #tpu.memory_space<vmem>>, vector<1x1x8x4xf32>
    %109 = vector.shape_cast %108 : vector<1x1x8x4xf32> to vector<8x4xf32>
    %c0_184 = arith.constant 0 : index
    %c22_185 = arith.constant 22 : index
    %c1_186 = arith.constant 1 : index
    %c0_187 = arith.constant 0 : index
    %110 = vector.load %arg1[%c0_184, %c22_185, %c1_186, %c0_187] : memref<1x36x9x4xf32, #tpu.memory_space<vmem>>, vector<1x1x8x4xf32>
    %111 = vector.shape_cast %110 : vector<1x1x8x4xf32> to vector<8x4xf32>
    %c0_188 = arith.constant 0 : index
    %c24_189 = arith.constant 24 : index
    %c0_190 = arith.constant 0 : index
    %c0_191 = arith.constant 0 : index
    %112 = vector.load %arg1[%c0_188, %c24_189, %c0_190, %c0_191] : memref<1x36x9x4xf32, #tpu.memory_space<vmem>>, vector<1x1x8x4xf32>
    %113 = vector.shape_cast %112 : vector<1x1x8x4xf32> to vector<8x4xf32>
    %c0_192 = arith.constant 0 : index
    %c25 = arith.constant 25 : index
    %c0_193 = arith.constant 0 : index
    %c0_194 = arith.constant 0 : index
    %114 = vector.load %arg1[%c0_192, %c25, %c0_193, %c0_194] : memref<1x36x9x4xf32, #tpu.memory_space<vmem>>, vector<1x1x8x4xf32>
    %115 = vector.shape_cast %114 : vector<1x1x8x4xf32> to vector<8x4xf32>
    %c0_195 = arith.constant 0 : index
    %c24_196 = arith.constant 24 : index
    %c1_197 = arith.constant 1 : index
    %c0_198 = arith.constant 0 : index
    %116 = vector.load %arg1[%c0_195, %c24_196, %c1_197, %c0_198] : memref<1x36x9x4xf32, #tpu.memory_space<vmem>>, vector<1x1x8x4xf32>
    %117 = vector.shape_cast %116 : vector<1x1x8x4xf32> to vector<8x4xf32>
    %118 = tpu.concatenate %101, %103, %105, %107, %109, %111, %113, %115, %117 in 1 : vector<8x4xf32>, vector<8x4xf32>, vector<8x4xf32>, vector<8x4xf32>, vector<8x4xf32>, vector<8x4xf32>, vector<8x4xf32>, vector<8x4xf32>, vector<8x4xf32> -> vector<8x36xf32>
    %c40 = arith.constant 40 : index
    %c0_199 = arith.constant 0 : index
    %119 = vector.load %arg5[%c40, %c0_199] : memref<64x36xf32, #tpu.memory_space<vmem>>, vector<8x36xf32>
    tpu.vector_store %arg5[%c40, %c0_199], %118 {strides = array<i32>} : memref<64x36xf32, #tpu.memory_space<vmem>>, vector<8x36xf32>,
    %c0_200 = arith.constant 0 : index
    %c24_201 = arith.constant 24 : index
    %c0_202 = arith.constant 0 : index
    %c0_203 = arith.constant 0 : index
    %120 = vector.load %arg1[%c0_200, %c24_201, %c0_202, %c0_203] : memref<1x36x9x4xf32, #tpu.memory_space<vmem>>, vector<1x1x8x4xf32>
    %121 = vector.shape_cast %120 : vector<1x1x8x4xf32> to vector<8x4xf32>
    %c0_204 = arith.constant 0 : index
    %c25_205 = arith.constant 25 : index
    %c0_206 = arith.constant 0 : index
    %c0_207 = arith.constant 0 : index
    %122 = vector.load %arg1[%c0_204, %c25_205, %c0_206, %c0_207] : memref<1x36x9x4xf32, #tpu.memory_space<vmem>>, vector<1x1x8x4xf32>
    %123 = vector.shape_cast %122 : vector<1x1x8x4xf32> to vector<8x4xf32>
    %c0_208 = arith.constant 0 : index
    %c24_209 = arith.constant 24 : index
    %c1_210 = arith.constant 1 : index
    %c0_211 = arith.constant 0 : index
    %124 = vector.load %arg1[%c0_208, %c24_209, %c1_210, %c0_211] : memref<1x36x9x4xf32, #tpu.memory_space<vmem>>, vector<1x1x8x4xf32>
    %125 = vector.shape_cast %124 : vector<1x1x8x4xf32> to vector<8x4xf32>
    %c0_212 = arith.constant 0 : index
    %c26 = arith.constant 26 : index
    %c0_213 = arith.constant 0 : index
    %c0_214 = arith.constant 0 : index
    %126 = vector.load %arg1[%c0_212, %c26, %c0_213, %c0_214] : memref<1x36x9x4xf32, #tpu.memory_space<vmem>>, vector<1x1x8x4xf32>
    %127 = vector.shape_cast %126 : vector<1x1x8x4xf32> to vector<8x4xf32>
    %c0_215 = arith.constant 0 : index
    %c27 = arith.constant 27 : index
    %c0_216 = arith.constant 0 : index
    %c0_217 = arith.constant 0 : index
    %128 = vector.load %arg1[%c0_215, %c27, %c0_216, %c0_217] : memref<1x36x9x4xf32, #tpu.memory_space<vmem>>, vector<1x1x8x4xf32>
    %129 = vector.shape_cast %128 : vector<1x1x8x4xf32> to vector<8x4xf32>
    %c0_218 = arith.constant 0 : index
    %c26_219 = arith.constant 26 : index
    %c1_220 = arith.constant 1 : index
    %c0_221 = arith.constant 0 : index
    %130 = vector.load %arg1[%c0_218, %c26_219, %c1_220, %c0_221] : memref<1x36x9x4xf32, #tpu.memory_space<vmem>>, vector<1x1x8x4xf32>
    %131 = vector.shape_cast %130 : vector<1x1x8x4xf32> to vector<8x4xf32>
    %c0_222 = arith.constant 0 : index
    %c28 = arith.constant 28 : index
    %c0_223 = arith.constant 0 : index
    %c0_224 = arith.constant 0 : index
    %132 = vector.load %arg1[%c0_222, %c28, %c0_223, %c0_224] : memref<1x36x9x4xf32, #tpu.memory_space<vmem>>, vector<1x1x8x4xf32>
    %133 = vector.shape_cast %132 : vector<1x1x8x4xf32> to vector<8x4xf32>
    %c0_225 = arith.constant 0 : index
    %c29 = arith.constant 29 : index
    %c0_226 = arith.constant 0 : index
    %c0_227 = arith.constant 0 : index
    %134 = vector.load %arg1[%c0_225, %c29, %c0_226, %c0_227] : memref<1x36x9x4xf32, #tpu.memory_space<vmem>>, vector<1x1x8x4xf32>
    %135 = vector.shape_cast %134 : vector<1x1x8x4xf32> to vector<8x4xf32>
    %c0_228 = arith.constant 0 : index
    %c28_229 = arith.constant 28 : index
    %c1_230 = arith.constant 1 : index
    %c0_231 = arith.constant 0 : index
    %136 = vector.load %arg1[%c0_228, %c28_229, %c1_230, %c0_231] : memref<1x36x9x4xf32, #tpu.memory_space<vmem>>, vector<1x1x8x4xf32>
    %137 = vector.shape_cast %136 : vector<1x1x8x4xf32> to vector<8x4xf32>
    %138 = tpu.concatenate %121, %123, %125, %127, %129, %131, %133, %135, %137 in 1 : vector<8x4xf32>, vector<8x4xf32>, vector<8x4xf32>, vector<8x4xf32>, vector<8x4xf32>, vector<8x4xf32>, vector<8x4xf32>, vector<8x4xf32>, vector<8x4xf32> -> vector<8x36xf32>
    %c48 = arith.constant 48 : index
    %c0_232 = arith.constant 0 : index
    %139 = vector.load %arg5[%c48, %c0_232] : memref<64x36xf32, #tpu.memory_space<vmem>>, vector<8x36xf32>
    tpu.vector_store %arg5[%c48, %c0_232], %138 {strides = array<i32>} : memref<64x36xf32, #tpu.memory_space<vmem>>, vector<8x36xf32>,
    %c0_233 = arith.constant 0 : index
    %c28_234 = arith.constant 28 : index
    %c0_235 = arith.constant 0 : index
    %c0_236 = arith.constant 0 : index
    %140 = vector.load %arg1[%c0_233, %c28_234, %c0_235, %c0_236] : memref<1x36x9x4xf32, #tpu.memory_space<vmem>>, vector<1x1x8x4xf32>
    %141 = vector.shape_cast %140 : vector<1x1x8x4xf32> to vector<8x4xf32>
    %c0_237 = arith.constant 0 : index
    %c29_238 = arith.constant 29 : index
    %c0_239 = arith.constant 0 : index
    %c0_240 = arith.constant 0 : index
    %142 = vector.load %arg1[%c0_237, %c29_238, %c0_239, %c0_240] : memref<1x36x9x4xf32, #tpu.memory_space<vmem>>, vector<1x1x8x4xf32>
    %143 = vector.shape_cast %142 : vector<1x1x8x4xf32> to vector<8x4xf32>
    %c0_241 = arith.constant 0 : index
    %c28_242 = arith.constant 28 : index
    %c1_243 = arith.constant 1 : index
    %c0_244 = arith.constant 0 : index
    %144 = vector.load %arg1[%c0_241, %c28_242, %c1_243, %c0_244] : memref<1x36x9x4xf32, #tpu.memory_space<vmem>>, vector<1x1x8x4xf32>
    %145 = vector.shape_cast %144 : vector<1x1x8x4xf32> to vector<8x4xf32>
    %c0_245 = arith.constant 0 : index
    %c30 = arith.constant 30 : index
    %c0_246 = arith.constant 0 : index
    %c0_247 = arith.constant 0 : index
    %146 = vector.load %arg1[%c0_245, %c30, %c0_246, %c0_247] : memref<1x36x9x4xf32, #tpu.memory_space<vmem>>, vector<1x1x8x4xf32>
    %147 = vector.shape_cast %146 : vector<1x1x8x4xf32> to vector<8x4xf32>
    %c0_248 = arith.constant 0 : index
    %c31 = arith.constant 31 : index
    %c0_249 = arith.constant 0 : index
    %c0_250 = arith.constant 0 : index
    %148 = vector.load %arg1[%c0_248, %c31, %c0_249, %c0_250] : memref<1x36x9x4xf32, #tpu.memory_space<vmem>>, vector<1x1x8x4xf32>
    %149 = vector.shape_cast %148 : vector<1x1x8x4xf32> to vector<8x4xf32>
    %c0_251 = arith.constant 0 : index
    %c30_252 = arith.constant 30 : index
    %c1_253 = arith.constant 1 : index
    %c0_254 = arith.constant 0 : index
    %150 = vector.load %arg1[%c0_251, %c30_252, %c1_253, %c0_254] : memref<1x36x9x4xf32, #tpu.memory_space<vmem>>, vector<1x1x8x4xf32>
    %151 = vector.shape_cast %150 : vector<1x1x8x4xf32> to vector<8x4xf32>
    %c0_255 = arith.constant 0 : index
    %c32_256 = arith.constant 32 : index
    %c0_257 = arith.constant 0 : index
    %c0_258 = arith.constant 0 : index
    %152 = vector.load %arg1[%c0_255, %c32_256, %c0_257, %c0_258] : memref<1x36x9x4xf32, #tpu.memory_space<vmem>>, vector<1x1x8x4xf32>
    %153 = vector.shape_cast %152 : vector<1x1x8x4xf32> to vector<8x4xf32>
    %c0_259 = arith.constant 0 : index
    %c33 = arith.constant 33 : index
    %c0_260 = arith.constant 0 : index
    %c0_261 = arith.constant 0 : index
    %154 = vector.load %arg1[%c0_259, %c33, %c0_260, %c0_261] : memref<1x36x9x4xf32, #tpu.memory_space<vmem>>, vector<1x1x8x4xf32>
    %155 = vector.shape_cast %154 : vector<1x1x8x4xf32> to vector<8x4xf32>
    %c0_262 = arith.constant 0 : index
    %c32_263 = arith.constant 32 : index
    %c1_264 = arith.constant 1 : index
    %c0_265 = arith.constant 0 : index
    %156 = vector.load %arg1[%c0_262, %c32_263, %c1_264, %c0_265] : memref<1x36x9x4xf32, #tpu.memory_space<vmem>>, vector<1x1x8x4xf32>
    %157 = vector.shape_cast %156 : vector<1x1x8x4xf32> to vector<8x4xf32>
    %158 = tpu.concatenate %141, %143, %145, %147, %149, %151, %153, %155, %157 in 1 : vector<8x4xf32>, vector<8x4xf32>, vector<8x4xf32>, vector<8x4xf32>, vector<8x4xf32>, vector<8x4xf32>, vector<8x4xf32>, vector<8x4xf32>, vector<8x4xf32> -> vector<8x36xf32>
    %c56 = arith.constant 56 : index
    %c0_266 = arith.constant 0 : index
    %159 = vector.load %arg5[%c56, %c0_266] : memref<64x36xf32, #tpu.memory_space<vmem>>, vector<8x36xf32>
    tpu.vector_store %arg5[%c56, %c0_266], %158 {strides = array<i32>} : memref<64x36xf32, #tpu.memory_space<vmem>>, vector<8x36xf32>,
    %c0_267 = arith.constant 0 : index
    %c0_268 = arith.constant 0 : index
    %160 = vector.load %arg5[%c0_267, %c0_268] : memref<64x36xf32, #tpu.memory_space<vmem>>, vector<64x36xf32>
    %c0_269 = arith.constant 0 : index
    %c0_270 = arith.constant 0 : index
    %161 = vector.load %arg2[%c0_269, %c0_270] : memref<36x8xf32, #tpu.memory_space<vmem>>, vector<36x8xf32>
    %cst = arith.constant dense<0.000000e+00> : vector<64x8xf32>
    %162 = tpu.matmul %160, %161, %cst {dimension_numbers = #tpu.dot_dimension_numbers<[1], [0], [0], [1], [0, 0, 1, 1], [], []>} : vector<64x36xf32>, vector<36x8xf32>, vector<64x8xf32> -> vector<64x8xf32>
    %c0_271 = arith.constant 0 : index
    %c0_272 = arith.constant 0 : index
    %163 = vector.load %arg3[%c0_271, %c0_272] : memref<1x8xf32, #tpu.memory_space<vmem>>, vector<1x8xf32>
    %164 = vector.broadcast %163 : vector<1x8xf32> to vector<64x8xf32>
    %165 = arith.addf %162, %164 : vector<64x8xf32>
    %cst_273 = arith.constant 1.000000e-01 : f32
    %166 = vector.broadcast %cst_273 : f32 to vector<64x8xf32>
    %167 = arith.mulf %166, %165 : vector<64x8xf32>
    %168 = arith.maximumf %165, %167 : vector<64x8xf32>
    %c0_274 = arith.constant 0 : index
    %c0_275 = arith.constant 0 : index
    %c0_276 = arith.constant 0 : index
    %169 = vector.load %arg4[%c0_274, %c0_275, %c0_276] : memref<1x64x8xf32, #tpu.memory_space<vmem>>, vector<1x64x8xf32>
    %170 = vector.shape_cast %169 : vector<1x64x8xf32> to vector<64x8xf32>
    %171 = vector.shape_cast %168 : vector<64x8xf32> to vector<1x64x8xf32>
    tpu.vector_store %arg4[%c0_274, %c0_275, %c0_276], %171 {strides = array<i32>} : memref<1x64x8xf32, #tpu.memory_space<vmem>>, vector<1x64x8xf32>,
    return
  }
  func.func @transform_0(%arg0: i32) -> (i32, i32, i32, i32) {
    %c0_i32 = arith.constant 0 : i32
    %c0_i32_0 = arith.constant 0 : i32
    %c0_i32_1 = arith.constant 0 : i32
    %c0_i32_2 = arith.constant 0 : i32
    return %arg0, %c0_i32, %c0_i32_0, %c0_i32_1 : i32, i32, i32, i32
  }
  func.func @transform_1(%arg0: i32) -> (i32, i32) {
    %c0_i32 = arith.constant 0 : i32
    %c0_i32_0 = arith.constant 0 : i32
    %c0_i32_1 = arith.constant 0 : i32
    return %c0_i32, %c0_i32_0 : i32, i32
  }
  func.func @transform_2(%arg0: i32) -> (i32, i32) {
    %c0_i32 = arith.constant 0 : i32
    %c0_i32_0 = arith.constant 0 : i32
    %c0_i32_1 = arith.constant 0 : i32
    return %c0_i32, %c0_i32_0 : i32, i32
  }
  func.func @transform_3(%arg0: i32) -> (i32, i32, i32) {
    %c0_i32 = arith.constant 0 : i32
    %c0_i32_0 = arith.constant 0 : i32
    %c0_i32_1 = arith.constant 0 : i32
    return %arg0, %c0_i32, %c0_i32_0 : i32, i32, i32
  }
}

module attributes {stable_mosaic.version = 11 : i64} {
  func.func @_stage_block_kernel(%arg0: i32, %arg1: memref<1x64x8xf32, #tpu.memory_space<vmem>>, %arg2: memref<8x4xf32, #tpu.memory_space<vmem>>, %arg3: memref<1x4xf32, #tpu.memory_space<vmem>>, %arg4: memref<36x8xf32, #tpu.memory_space<vmem>>, %arg5: memref<1x8xf32, #tpu.memory_space<vmem>>, %arg6: memref<1x64x8xf32, #tpu.memory_space<vmem>>, %arg7: memref<82x4xf32, #tpu.memory_space<vmem>>) attributes {dimension_semantics = [#tpu.dimension_semantics<parallel>], iteration_bounds = array<i64: 2>, scalar_prefetch = 0 : i64, scratch_operands = 1 : i64, tpu.core_type = #tpu.core_type<tc>, window_params = [{transform_indices = @transform_0, window_bounds = array<i64: 1, 64, 8>}, {pipeline_mode = #tpu.pipeline_mode<synchronous>, transform_indices = @transform_1, window_bounds = array<i64: 8, 4>}, {pipeline_mode = #tpu.pipeline_mode<synchronous>, transform_indices = @transform_2, window_bounds = array<i64: 1, 4>}, {pipeline_mode = #tpu.pipeline_mode<synchronous>, transform_indices = @transform_3, window_bounds = array<i64: 36, 8>}, {pipeline_mode = #tpu.pipeline_mode<synchronous>, transform_indices = @transform_4, window_bounds = array<i64: 1, 8>}, {transform_indices = @transform_5, window_bounds = array<i64: 1, 64, 8>}]} {
    %c0 = arith.constant 0 : index
    %c0_0 = arith.constant 0 : index
    %c0_1 = arith.constant 0 : index
    %0 = vector.load %arg1[%c0, %c0_0, %c0_1] : memref<1x64x8xf32, #tpu.memory_space<vmem>>, vector<1x64x8xf32>
    %1 = vector.shape_cast %0 : vector<1x64x8xf32> to vector<64x8xf32>
    %c0_2 = arith.constant 0 : index
    %c0_3 = arith.constant 0 : index
    %2 = vector.load %arg2[%c0_2, %c0_3] : memref<8x4xf32, #tpu.memory_space<vmem>>, vector<8x4xf32>
    %cst = arith.constant dense<0.000000e+00> : vector<64x4xf32>
    %3 = tpu.matmul %1, %2, %cst {dimension_numbers = #tpu.dot_dimension_numbers<[1], [0], [0], [1], [0, 0, 1, 1], [], []>} : vector<64x8xf32>, vector<8x4xf32>, vector<64x4xf32> -> vector<64x4xf32>
    %c0_4 = arith.constant 0 : index
    %c0_5 = arith.constant 0 : index
    %4 = vector.load %arg3[%c0_4, %c0_5] : memref<1x4xf32, #tpu.memory_space<vmem>>, vector<1x4xf32>
    %5 = vector.broadcast %4 : vector<1x4xf32> to vector<64x4xf32>
    %6 = arith.addf %3, %5 : vector<64x4xf32>
    %cst_6 = arith.constant 1.000000e-01 : f32
    %7 = vector.broadcast %cst_6 : f32 to vector<64x4xf32>
    %8 = arith.mulf %7, %6 : vector<64x4xf32>
    %9 = arith.maximumf %6, %8 : vector<64x4xf32>
    %cst_7 = arith.constant 0.000000e+00 : f32
    %10 = vector.broadcast %cst_7 : f32 to vector<9x4xf32>
    %c0_8 = arith.constant 0 : index
    %c0_9 = arith.constant 0 : index
    %11 = vector.load %arg7[%c0_8, %c0_9] : memref<82x4xf32, #tpu.memory_space<vmem>>, vector<9x4xf32>
    tpu.vector_store %arg7[%c0_8, %c0_9], %10 {strides = array<i32>} : memref<82x4xf32, #tpu.memory_space<vmem>>, vector<9x4xf32>,
    %cst_10 = arith.constant 0.000000e+00 : f32
    %12 = vector.broadcast %cst_10 : f32 to vector<9x4xf32>
    %c73 = arith.constant 73 : index
    %c0_11 = arith.constant 0 : index
    %13 = vector.load %arg7[%c73, %c0_11] : memref<82x4xf32, #tpu.memory_space<vmem>>, vector<9x4xf32>
    tpu.vector_store %arg7[%c73, %c0_11], %12 {strides = array<i32>} : memref<82x4xf32, #tpu.memory_space<vmem>>, vector<9x4xf32>,
    %c9 = arith.constant 9 : index
    %c0_12 = arith.constant 0 : index
    %14 = vector.load %arg7[%c9, %c0_12] : memref<82x4xf32, #tpu.memory_space<vmem>>, vector<64x4xf32>
    tpu.vector_store %arg7[%c9, %c0_12], %9 {strides = array<i32>} : memref<82x4xf32, #tpu.memory_space<vmem>>, vector<64x4xf32>,
    %15 = tpu.iota {dimensions = array<i32: 0>} : vector<64x1xi32>
    %c8_i32 = arith.constant 8 : i32
    %c0_i32 = arith.constant 0 : i32
    %16 = arith.cmpi eq, %c8_i32, %c0_i32 : i32
    %c1_i32 = arith.constant 1 : i32
    %17 = arith.select %16, %c1_i32, %c8_i32 : i32
    %18 = vector.broadcast %17 : i32 to vector<64x1xi32>
    %19 = arith.remsi %15, %18 : vector<64x1xi32>
    %c0_i32_13 = arith.constant 0 : i32
    %20 = vector.broadcast %c0_i32_13 : i32 to vector<64x1xi32>
    %21 = arith.cmpi ne, %19, %20 : vector<64x1xi32>
    %c0_i32_14 = arith.constant 0 : i32
    %22 = vector.broadcast %c0_i32_14 : i32 to vector<64x1xi32>
    %23 = arith.cmpi slt, %19, %22 : vector<64x1xi32>
    %c0_i32_15 = arith.constant 0 : i32
    %24 = arith.cmpi slt, %17, %c0_i32_15 : i32
    %25 = vector.broadcast %24 : i1 to vector<64x1xi1>
    %26 = vector.broadcast %25 : vector<64x1xi1> to vector<64x1xi1>
    %27 = arith.xori %23, %26 : vector<64x1xi1>
    %28 = arith.andi %27, %21 : vector<64x1xi1>
    %29 = vector.broadcast %17 : i32 to vector<64x1xi32>
    %30 = arith.addi %19, %29 : vector<64x1xi32>
    %31 = arith.select %28, %30, %19 : vector<64x1xi1>, vector<64x1xi32>
    %c0_16 = arith.constant 0 : index
    %c0_17 = arith.constant 0 : index
    %32 = vector.load %arg7[%c0_16, %c0_17] : memref<82x4xf32, #tpu.memory_space<vmem>>, vector<64x4xf32>
    %c1_i32_18 = arith.constant 1 : i32
    %33 = vector.broadcast %c1_i32_18 : i32 to vector<64x1xi32>
    %34 = arith.cmpi sge, %31, %33 : vector<64x1xi32>
    %cst_19 = arith.constant 0.000000e+00 : f32
    %35 = vector.shape_cast %34 : vector<64x1xi1> to vector<64x1xi1>
    %36 = vector.broadcast %35 : vector<64x1xi1> to vector<64x4xi1>
    %37 = vector.broadcast %cst_19 : f32 to vector<64x4xf32>
    %38 = arith.select %36, %32, %37 : vector<64x4xi1>, vector<64x4xf32>
    %c1 = arith.constant 1 : index
    %c0_20 = arith.constant 0 : index
    %39 = vector.load %arg7[%c1, %c0_20] : memref<82x4xf32, #tpu.memory_space<vmem>>, vector<64x4xf32>
    %c2 = arith.constant 2 : index
    %c0_21 = arith.constant 0 : index
    %40 = vector.load %arg7[%c2, %c0_21] : memref<82x4xf32, #tpu.memory_space<vmem>>, vector<64x4xf32>
    %c7_i32 = arith.constant 7 : i32
    %41 = vector.broadcast %c7_i32 : i32 to vector<64x1xi32>
    %42 = arith.cmpi slt, %31, %41 : vector<64x1xi32>
    %cst_22 = arith.constant 0.000000e+00 : f32
    %43 = vector.shape_cast %42 : vector<64x1xi1> to vector<64x1xi1>
    %44 = vector.broadcast %43 : vector<64x1xi1> to vector<64x4xi1>
    %45 = vector.broadcast %cst_22 : f32 to vector<64x4xf32>
    %46 = arith.select %44, %40, %45 : vector<64x4xi1>, vector<64x4xf32>
    %c8 = arith.constant 8 : index
    %c0_23 = arith.constant 0 : index
    %47 = vector.load %arg7[%c8, %c0_23] : memref<82x4xf32, #tpu.memory_space<vmem>>, vector<64x4xf32>
    %c1_i32_24 = arith.constant 1 : i32
    %48 = vector.broadcast %c1_i32_24 : i32 to vector<64x1xi32>
    %49 = arith.cmpi sge, %31, %48 : vector<64x1xi32>
    %cst_25 = arith.constant 0.000000e+00 : f32
    %50 = vector.shape_cast %49 : vector<64x1xi1> to vector<64x1xi1>
    %51 = vector.broadcast %50 : vector<64x1xi1> to vector<64x4xi1>
    %52 = vector.broadcast %cst_25 : f32 to vector<64x4xf32>
    %53 = arith.select %51, %47, %52 : vector<64x4xi1>, vector<64x4xf32>
    %c9_26 = arith.constant 9 : index
    %c0_27 = arith.constant 0 : index
    %54 = vector.load %arg7[%c9_26, %c0_27] : memref<82x4xf32, #tpu.memory_space<vmem>>, vector<64x4xf32>
    %c10 = arith.constant 10 : index
    %c0_28 = arith.constant 0 : index
    %55 = vector.load %arg7[%c10, %c0_28] : memref<82x4xf32, #tpu.memory_space<vmem>>, vector<64x4xf32>
    %c7_i32_29 = arith.constant 7 : i32
    %56 = vector.broadcast %c7_i32_29 : i32 to vector<64x1xi32>
    %57 = arith.cmpi slt, %31, %56 : vector<64x1xi32>
    %cst_30 = arith.constant 0.000000e+00 : f32
    %58 = vector.shape_cast %57 : vector<64x1xi1> to vector<64x1xi1>
    %59 = vector.broadcast %58 : vector<64x1xi1> to vector<64x4xi1>
    %60 = vector.broadcast %cst_30 : f32 to vector<64x4xf32>
    %61 = arith.select %59, %55, %60 : vector<64x4xi1>, vector<64x4xf32>
    %c16 = arith.constant 16 : index
    %c0_31 = arith.constant 0 : index
    %62 = vector.load %arg7[%c16, %c0_31] : memref<82x4xf32, #tpu.memory_space<vmem>>, vector<64x4xf32>
    %c1_i32_32 = arith.constant 1 : i32
    %63 = vector.broadcast %c1_i32_32 : i32 to vector<64x1xi32>
    %64 = arith.cmpi sge, %31, %63 : vector<64x1xi32>
    %cst_33 = arith.constant 0.000000e+00 : f32
    %65 = vector.shape_cast %64 : vector<64x1xi1> to vector<64x1xi1>
    %66 = vector.broadcast %65 : vector<64x1xi1> to vector<64x4xi1>
    %67 = vector.broadcast %cst_33 : f32 to vector<64x4xf32>
    %68 = arith.select %66, %62, %67 : vector<64x4xi1>, vector<64x4xf32>
    %c17 = arith.constant 17 : index
    %c0_34 = arith.constant 0 : index
    %69 = vector.load %arg7[%c17, %c0_34] : memref<82x4xf32, #tpu.memory_space<vmem>>, vector<64x4xf32>
    %c18 = arith.constant 18 : index
    %c0_35 = arith.constant 0 : index
    %70 = vector.load %arg7[%c18, %c0_35] : memref<82x4xf32, #tpu.memory_space<vmem>>, vector<64x4xf32>
    %c7_i32_36 = arith.constant 7 : i32
    %71 = vector.broadcast %c7_i32_36 : i32 to vector<64x1xi32>
    %72 = arith.cmpi slt, %31, %71 : vector<64x1xi32>
    %cst_37 = arith.constant 0.000000e+00 : f32
    %73 = vector.shape_cast %72 : vector<64x1xi1> to vector<64x1xi1>
    %74 = vector.broadcast %73 : vector<64x1xi1> to vector<64x4xi1>
    %75 = vector.broadcast %cst_37 : f32 to vector<64x4xf32>
    %76 = arith.select %74, %70, %75 : vector<64x4xi1>, vector<64x4xf32>
    %77 = tpu.concatenate %38, %39, %46, %53, %54, %61, %68, %69, %76 in 1 : vector<64x4xf32>, vector<64x4xf32>, vector<64x4xf32>, vector<64x4xf32>, vector<64x4xf32>, vector<64x4xf32>, vector<64x4xf32>, vector<64x4xf32>, vector<64x4xf32> -> vector<64x36xf32>
    %c0_38 = arith.constant 0 : index
    %c0_39 = arith.constant 0 : index
    %78 = vector.load %arg4[%c0_38, %c0_39] : memref<36x8xf32, #tpu.memory_space<vmem>>, vector<36x8xf32>
    %cst_40 = arith.constant dense<0.000000e+00> : vector<64x8xf32>
    %79 = tpu.matmul %77, %78, %cst_40 {dimension_numbers = #tpu.dot_dimension_numbers<[1], [0], [0], [1], [0, 0, 1, 1], [], []>} : vector<64x36xf32>, vector<36x8xf32>, vector<64x8xf32> -> vector<64x8xf32>
    %c0_41 = arith.constant 0 : index
    %c0_42 = arith.constant 0 : index
    %80 = vector.load %arg5[%c0_41, %c0_42] : memref<1x8xf32, #tpu.memory_space<vmem>>, vector<1x8xf32>
    %81 = vector.broadcast %80 : vector<1x8xf32> to vector<64x8xf32>
    %82 = arith.addf %79, %81 : vector<64x8xf32>
    %cst_43 = arith.constant 1.000000e-01 : f32
    %83 = vector.broadcast %cst_43 : f32 to vector<64x8xf32>
    %84 = arith.mulf %83, %82 : vector<64x8xf32>
    %85 = arith.maximumf %82, %84 : vector<64x8xf32>
    %86 = arith.addf %1, %85 : vector<64x8xf32>
    %c0_44 = arith.constant 0 : index
    %c0_45 = arith.constant 0 : index
    %c0_46 = arith.constant 0 : index
    %87 = vector.load %arg6[%c0_44, %c0_45, %c0_46] : memref<1x64x8xf32, #tpu.memory_space<vmem>>, vector<1x64x8xf32>
    %88 = vector.shape_cast %87 : vector<1x64x8xf32> to vector<64x8xf32>
    %89 = vector.shape_cast %86 : vector<64x8xf32> to vector<1x64x8xf32>
    tpu.vector_store %arg6[%c0_44, %c0_45, %c0_46], %89 {strides = array<i32>} : memref<1x64x8xf32, #tpu.memory_space<vmem>>, vector<1x64x8xf32>,
    return
  }
  func.func @transform_0(%arg0: i32) -> (i32, i32, i32) {
    %c0_i32 = arith.constant 0 : i32
    %c0_i32_0 = arith.constant 0 : i32
    %c0_i32_1 = arith.constant 0 : i32
    return %arg0, %c0_i32, %c0_i32_0 : i32, i32, i32
  }
  func.func @transform_1(%arg0: i32) -> (i32, i32) {
    %c0_i32 = arith.constant 0 : i32
    %c0_i32_0 = arith.constant 0 : i32
    %c0_i32_1 = arith.constant 0 : i32
    return %c0_i32, %c0_i32_0 : i32, i32
  }
  func.func @transform_2(%arg0: i32) -> (i32, i32) {
    %c0_i32 = arith.constant 0 : i32
    %c0_i32_0 = arith.constant 0 : i32
    %c0_i32_1 = arith.constant 0 : i32
    return %c0_i32, %c0_i32_0 : i32, i32
  }
  func.func @transform_3(%arg0: i32) -> (i32, i32) {
    %c0_i32 = arith.constant 0 : i32
    %c0_i32_0 = arith.constant 0 : i32
    %c0_i32_1 = arith.constant 0 : i32
    return %c0_i32, %c0_i32_0 : i32, i32
  }
  func.func @transform_4(%arg0: i32) -> (i32, i32) {
    %c0_i32 = arith.constant 0 : i32
    %c0_i32_0 = arith.constant 0 : i32
    %c0_i32_1 = arith.constant 0 : i32
    return %c0_i32, %c0_i32_0 : i32, i32
  }
  func.func @transform_5(%arg0: i32) -> (i32, i32, i32) {
    %c0_i32 = arith.constant 0 : i32
    %c0_i32_0 = arith.constant 0 : i32
    %c0_i32_1 = arith.constant 0 : i32
    return %arg0, %c0_i32, %c0_i32_0 : i32, i32, i32
  }
}

module attributes {stable_mosaic.version = 11 : i64} {
  func.func @_stage_block_kernel(%arg0: i32, %arg1: memref<1x64x8xf32, #tpu.memory_space<vmem>>, %arg2: memref<8x4xf32, #tpu.memory_space<vmem>>, %arg3: memref<1x4xf32, #tpu.memory_space<vmem>>, %arg4: memref<36x8xf32, #tpu.memory_space<vmem>>, %arg5: memref<1x8xf32, #tpu.memory_space<vmem>>, %arg6: memref<1x64x8xf32, #tpu.memory_space<vmem>>, %arg7: memref<82x4xf32, #tpu.memory_space<vmem>>) attributes {dimension_semantics = [#tpu.dimension_semantics<parallel>], iteration_bounds = array<i64: 2>, scalar_prefetch = 0 : i64, scratch_operands = 1 : i64, tpu.core_type = #tpu.core_type<tc>, window_params = [{transform_indices = @transform_0, window_bounds = array<i64: 1, 64, 8>}, {pipeline_mode = #tpu.pipeline_mode<synchronous>, transform_indices = @transform_1, window_bounds = array<i64: 8, 4>}, {pipeline_mode = #tpu.pipeline_mode<synchronous>, transform_indices = @transform_2, window_bounds = array<i64: 1, 4>}, {pipeline_mode = #tpu.pipeline_mode<synchronous>, transform_indices = @transform_3, window_bounds = array<i64: 36, 8>}, {pipeline_mode = #tpu.pipeline_mode<synchronous>, transform_indices = @transform_4, window_bounds = array<i64: 1, 8>}, {transform_indices = @transform_5, window_bounds = array<i64: 1, 64, 8>}]} {
    %c0 = arith.constant 0 : index
    %c0_0 = arith.constant 0 : index
    %c0_1 = arith.constant 0 : index
    %0 = vector.load %arg1[%c0, %c0_0, %c0_1] : memref<1x64x8xf32, #tpu.memory_space<vmem>>, vector<1x64x8xf32>
    %1 = vector.shape_cast %0 : vector<1x64x8xf32> to vector<64x8xf32>
    %c0_2 = arith.constant 0 : index
    %c0_3 = arith.constant 0 : index
    %2 = vector.load %arg2[%c0_2, %c0_3] : memref<8x4xf32, #tpu.memory_space<vmem>>, vector<8x4xf32>
    %cst = arith.constant dense<0.000000e+00> : vector<64x4xf32>
    %3 = tpu.matmul %1, %2, %cst {dimension_numbers = #tpu.dot_dimension_numbers<[1], [0], [0], [1], [0, 0, 1, 1], [], []>} : vector<64x8xf32>, vector<8x4xf32>, vector<64x4xf32> -> vector<64x4xf32>
    %c0_4 = arith.constant 0 : index
    %c0_5 = arith.constant 0 : index
    %4 = vector.load %arg3[%c0_4, %c0_5] : memref<1x4xf32, #tpu.memory_space<vmem>>, vector<1x4xf32>
    %5 = vector.broadcast %4 : vector<1x4xf32> to vector<64x4xf32>
    %6 = arith.addf %3, %5 : vector<64x4xf32>
    %cst_6 = arith.constant 1.000000e-01 : f32
    %7 = vector.broadcast %cst_6 : f32 to vector<64x4xf32>
    %8 = arith.mulf %7, %6 : vector<64x4xf32>
    %9 = arith.maximumf %6, %8 : vector<64x4xf32>
    %cst_7 = arith.constant 0.000000e+00 : f32
    %10 = vector.broadcast %cst_7 : f32 to vector<9x4xf32>
    %c0_8 = arith.constant 0 : index
    %c0_9 = arith.constant 0 : index
    %11 = vector.load %arg7[%c0_8, %c0_9] : memref<82x4xf32, #tpu.memory_space<vmem>>, vector<9x4xf32>
    tpu.vector_store %arg7[%c0_8, %c0_9], %10 {strides = array<i32>} : memref<82x4xf32, #tpu.memory_space<vmem>>, vector<9x4xf32>,
    %cst_10 = arith.constant 0.000000e+00 : f32
    %12 = vector.broadcast %cst_10 : f32 to vector<9x4xf32>
    %c73 = arith.constant 73 : index
    %c0_11 = arith.constant 0 : index
    %13 = vector.load %arg7[%c73, %c0_11] : memref<82x4xf32, #tpu.memory_space<vmem>>, vector<9x4xf32>
    tpu.vector_store %arg7[%c73, %c0_11], %12 {strides = array<i32>} : memref<82x4xf32, #tpu.memory_space<vmem>>, vector<9x4xf32>,
    %c9 = arith.constant 9 : index
    %c0_12 = arith.constant 0 : index
    %14 = vector.load %arg7[%c9, %c0_12] : memref<82x4xf32, #tpu.memory_space<vmem>>, vector<64x4xf32>
    tpu.vector_store %arg7[%c9, %c0_12], %9 {strides = array<i32>} : memref<82x4xf32, #tpu.memory_space<vmem>>, vector<64x4xf32>,
    %15 = tpu.iota {dimensions = array<i32: 0>} : vector<64x1xi32>
    %c8_i32 = arith.constant 8 : i32
    %c0_i32 = arith.constant 0 : i32
    %16 = arith.cmpi eq, %c8_i32, %c0_i32 : i32
    %c1_i32 = arith.constant 1 : i32
    %17 = arith.select %16, %c1_i32, %c8_i32 : i32
    %18 = vector.broadcast %17 : i32 to vector<64x1xi32>
    %19 = arith.remsi %15, %18 : vector<64x1xi32>
    %c0_i32_13 = arith.constant 0 : i32
    %20 = vector.broadcast %c0_i32_13 : i32 to vector<64x1xi32>
    %21 = arith.cmpi ne, %19, %20 : vector<64x1xi32>
    %c0_i32_14 = arith.constant 0 : i32
    %22 = vector.broadcast %c0_i32_14 : i32 to vector<64x1xi32>
    %23 = arith.cmpi slt, %19, %22 : vector<64x1xi32>
    %c0_i32_15 = arith.constant 0 : i32
    %24 = arith.cmpi slt, %17, %c0_i32_15 : i32
    %25 = vector.broadcast %24 : i1 to vector<64x1xi1>
    %26 = vector.broadcast %25 : vector<64x1xi1> to vector<64x1xi1>
    %27 = arith.xori %23, %26 : vector<64x1xi1>
    %28 = arith.andi %27, %21 : vector<64x1xi1>
    %29 = vector.broadcast %17 : i32 to vector<64x1xi32>
    %30 = arith.addi %19, %29 : vector<64x1xi32>
    %31 = arith.select %28, %30, %19 : vector<64x1xi1>, vector<64x1xi32>
    %c0_16 = arith.constant 0 : index
    %c0_17 = arith.constant 0 : index
    %32 = vector.load %arg7[%c0_16, %c0_17] : memref<82x4xf32, #tpu.memory_space<vmem>>, vector<64x4xf32>
    %c1_i32_18 = arith.constant 1 : i32
    %33 = vector.broadcast %c1_i32_18 : i32 to vector<64x1xi32>
    %34 = arith.cmpi sge, %31, %33 : vector<64x1xi32>
    %cst_19 = arith.constant 0.000000e+00 : f32
    %35 = vector.shape_cast %34 : vector<64x1xi1> to vector<64x1xi1>
    %36 = vector.broadcast %35 : vector<64x1xi1> to vector<64x4xi1>
    %37 = vector.broadcast %cst_19 : f32 to vector<64x4xf32>
    %38 = arith.select %36, %32, %37 : vector<64x4xi1>, vector<64x4xf32>
    %c1 = arith.constant 1 : index
    %c0_20 = arith.constant 0 : index
    %39 = vector.load %arg7[%c1, %c0_20] : memref<82x4xf32, #tpu.memory_space<vmem>>, vector<64x4xf32>
    %c2 = arith.constant 2 : index
    %c0_21 = arith.constant 0 : index
    %40 = vector.load %arg7[%c2, %c0_21] : memref<82x4xf32, #tpu.memory_space<vmem>>, vector<64x4xf32>
    %c7_i32 = arith.constant 7 : i32
    %41 = vector.broadcast %c7_i32 : i32 to vector<64x1xi32>
    %42 = arith.cmpi slt, %31, %41 : vector<64x1xi32>
    %cst_22 = arith.constant 0.000000e+00 : f32
    %43 = vector.shape_cast %42 : vector<64x1xi1> to vector<64x1xi1>
    %44 = vector.broadcast %43 : vector<64x1xi1> to vector<64x4xi1>
    %45 = vector.broadcast %cst_22 : f32 to vector<64x4xf32>
    %46 = arith.select %44, %40, %45 : vector<64x4xi1>, vector<64x4xf32>
    %c8 = arith.constant 8 : index
    %c0_23 = arith.constant 0 : index
    %47 = vector.load %arg7[%c8, %c0_23] : memref<82x4xf32, #tpu.memory_space<vmem>>, vector<64x4xf32>
    %c1_i32_24 = arith.constant 1 : i32
    %48 = vector.broadcast %c1_i32_24 : i32 to vector<64x1xi32>
    %49 = arith.cmpi sge, %31, %48 : vector<64x1xi32>
    %cst_25 = arith.constant 0.000000e+00 : f32
    %50 = vector.shape_cast %49 : vector<64x1xi1> to vector<64x1xi1>
    %51 = vector.broadcast %50 : vector<64x1xi1> to vector<64x4xi1>
    %52 = vector.broadcast %cst_25 : f32 to vector<64x4xf32>
    %53 = arith.select %51, %47, %52 : vector<64x4xi1>, vector<64x4xf32>
    %c9_26 = arith.constant 9 : index
    %c0_27 = arith.constant 0 : index
    %54 = vector.load %arg7[%c9_26, %c0_27] : memref<82x4xf32, #tpu.memory_space<vmem>>, vector<64x4xf32>
    %c10 = arith.constant 10 : index
    %c0_28 = arith.constant 0 : index
    %55 = vector.load %arg7[%c10, %c0_28] : memref<82x4xf32, #tpu.memory_space<vmem>>, vector<64x4xf32>
    %c7_i32_29 = arith.constant 7 : i32
    %56 = vector.broadcast %c7_i32_29 : i32 to vector<64x1xi32>
    %57 = arith.cmpi slt, %31, %56 : vector<64x1xi32>
    %cst_30 = arith.constant 0.000000e+00 : f32
    %58 = vector.shape_cast %57 : vector<64x1xi1> to vector<64x1xi1>
    %59 = vector.broadcast %58 : vector<64x1xi1> to vector<64x4xi1>
    %60 = vector.broadcast %cst_30 : f32 to vector<64x4xf32>
    %61 = arith.select %59, %55, %60 : vector<64x4xi1>, vector<64x4xf32>
    %c16 = arith.constant 16 : index
    %c0_31 = arith.constant 0 : index
    %62 = vector.load %arg7[%c16, %c0_31] : memref<82x4xf32, #tpu.memory_space<vmem>>, vector<64x4xf32>
    %c1_i32_32 = arith.constant 1 : i32
    %63 = vector.broadcast %c1_i32_32 : i32 to vector<64x1xi32>
    %64 = arith.cmpi sge, %31, %63 : vector<64x1xi32>
    %cst_33 = arith.constant 0.000000e+00 : f32
    %65 = vector.shape_cast %64 : vector<64x1xi1> to vector<64x1xi1>
    %66 = vector.broadcast %65 : vector<64x1xi1> to vector<64x4xi1>
    %67 = vector.broadcast %cst_33 : f32 to vector<64x4xf32>
    %68 = arith.select %66, %62, %67 : vector<64x4xi1>, vector<64x4xf32>
    %c17 = arith.constant 17 : index
    %c0_34 = arith.constant 0 : index
    %69 = vector.load %arg7[%c17, %c0_34] : memref<82x4xf32, #tpu.memory_space<vmem>>, vector<64x4xf32>
    %c18 = arith.constant 18 : index
    %c0_35 = arith.constant 0 : index
    %70 = vector.load %arg7[%c18, %c0_35] : memref<82x4xf32, #tpu.memory_space<vmem>>, vector<64x4xf32>
    %c7_i32_36 = arith.constant 7 : i32
    %71 = vector.broadcast %c7_i32_36 : i32 to vector<64x1xi32>
    %72 = arith.cmpi slt, %31, %71 : vector<64x1xi32>
    %cst_37 = arith.constant 0.000000e+00 : f32
    %73 = vector.shape_cast %72 : vector<64x1xi1> to vector<64x1xi1>
    %74 = vector.broadcast %73 : vector<64x1xi1> to vector<64x4xi1>
    %75 = vector.broadcast %cst_37 : f32 to vector<64x4xf32>
    %76 = arith.select %74, %70, %75 : vector<64x4xi1>, vector<64x4xf32>
    %77 = tpu.concatenate %38, %39, %46, %53, %54, %61, %68, %69, %76 in 1 : vector<64x4xf32>, vector<64x4xf32>, vector<64x4xf32>, vector<64x4xf32>, vector<64x4xf32>, vector<64x4xf32>, vector<64x4xf32>, vector<64x4xf32>, vector<64x4xf32> -> vector<64x36xf32>
    %c0_38 = arith.constant 0 : index
    %c0_39 = arith.constant 0 : index
    %78 = vector.load %arg4[%c0_38, %c0_39] : memref<36x8xf32, #tpu.memory_space<vmem>>, vector<36x8xf32>
    %cst_40 = arith.constant dense<0.000000e+00> : vector<64x8xf32>
    %79 = tpu.matmul %77, %78, %cst_40 {dimension_numbers = #tpu.dot_dimension_numbers<[1], [0], [0], [1], [0, 0, 1, 1], [], []>} : vector<64x36xf32>, vector<36x8xf32>, vector<64x8xf32> -> vector<64x8xf32>
    %c0_41 = arith.constant 0 : index
    %c0_42 = arith.constant 0 : index
    %80 = vector.load %arg5[%c0_41, %c0_42] : memref<1x8xf32, #tpu.memory_space<vmem>>, vector<1x8xf32>
    %81 = vector.broadcast %80 : vector<1x8xf32> to vector<64x8xf32>
    %82 = arith.addf %79, %81 : vector<64x8xf32>
    %cst_43 = arith.constant 1.000000e-01 : f32
    %83 = vector.broadcast %cst_43 : f32 to vector<64x8xf32>
    %84 = arith.mulf %83, %82 : vector<64x8xf32>
    %85 = arith.maximumf %82, %84 : vector<64x8xf32>
    %86 = arith.addf %1, %85 : vector<64x8xf32>
    %c0_44 = arith.constant 0 : index
    %c0_45 = arith.constant 0 : index
    %c0_46 = arith.constant 0 : index
    %87 = vector.load %arg6[%c0_44, %c0_45, %c0_46] : memref<1x64x8xf32, #tpu.memory_space<vmem>>, vector<1x64x8xf32>
    %88 = vector.shape_cast %87 : vector<1x64x8xf32> to vector<64x8xf32>
    %89 = vector.shape_cast %86 : vector<64x8xf32> to vector<1x64x8xf32>
    tpu.vector_store %arg6[%c0_44, %c0_45, %c0_46], %89 {strides = array<i32>} : memref<1x64x8xf32, #tpu.memory_space<vmem>>, vector<1x64x8xf32>,
    return
  }
  func.func @transform_0(%arg0: i32) -> (i32, i32, i32) {
    %c0_i32 = arith.constant 0 : i32
    %c0_i32_0 = arith.constant 0 : i32
    %c0_i32_1 = arith.constant 0 : i32
    return %arg0, %c0_i32, %c0_i32_0 : i32, i32, i32
  }
  func.func @transform_1(%arg0: i32) -> (i32, i32) {
    %c0_i32 = arith.constant 0 : i32
    %c0_i32_0 = arith.constant 0 : i32
    %c0_i32_1 = arith.constant 0 : i32
    return %c0_i32, %c0_i32_0 : i32, i32
  }
  func.func @transform_2(%arg0: i32) -> (i32, i32) {
    %c0_i32 = arith.constant 0 : i32
    %c0_i32_0 = arith.constant 0 : i32
    %c0_i32_1 = arith.constant 0 : i32
    return %c0_i32, %c0_i32_0 : i32, i32
  }
  func.func @transform_3(%arg0: i32) -> (i32, i32) {
    %c0_i32 = arith.constant 0 : i32
    %c0_i32_0 = arith.constant 0 : i32
    %c0_i32_1 = arith.constant 0 : i32
    return %c0_i32, %c0_i32_0 : i32, i32
  }
  func.func @transform_4(%arg0: i32) -> (i32, i32) {
    %c0_i32 = arith.constant 0 : i32
    %c0_i32_0 = arith.constant 0 : i32
    %c0_i32_1 = arith.constant 0 : i32
    return %c0_i32, %c0_i32_0 : i32, i32
  }
  func.func @transform_5(%arg0: i32) -> (i32, i32, i32) {
    %c0_i32 = arith.constant 0 : i32
    %c0_i32_0 = arith.constant 0 : i32
    %c0_i32_1 = arith.constant 0 : i32
    return %arg0, %c0_i32, %c0_i32_0 : i32, i32, i32
  }
}

</mosaic_0001>

<llo_original>
// kernel: stage_forward_pallas.3
$region0: #{stage_forward_pallas.3}
  #allocation0 [shape = 'u32[]', space=smem, size = 0x4, offset = 0x4, fixed_abs, tag = 'smem constant byte address 0x4 - core index']
  #allocation1 [shape = 'u32[144,128]{1,0:T(1,128)}', space=vmem, size = 0x12000, scoped, tag = 'internal scratch']
  #allocation2 [shape = 'f32[64,36]{1,0:T(8,128)}', space=vmem, size = 0x8000, scoped, tag = 'scratch operand']
  %s0 = inlined_call_operand.vmem [shape: f32[2,36,9,4], index: 0, kind: input, shape index: {}]
  %s1 = inlined_call_operand.vmem [shape: f32[36,8], index: 1, kind: input, shape index: {}]
  %s2 = inlined_call_operand.vmem [shape: f32[1,8], index: 2, kind: input, shape index: {}]
  %s3 = inlined_call_operand.vmem [shape: f32[2,64,8], index: 3, kind: output, shape index: {}]
  %s4 = sld [smem:[#allocation0]]
  $region45: #{stage_forward_pallas.3} parent=0
    _
  %s6 = ssub.s32 1, %s4
  %s7 = scalar_select 0, %s6, %s4
  loop: start=0, step=1, limit=4
  $region2: #{stage_forward_pallas.3} parent=0 // loop_pre_header
    _
  $region3: #{stage_forward_pallas.3} parent=0 // loop_header
    %s9 = sphi 0, %s13
    %p10 = scmp.ge.s32.totalorder %s9, 4
    %s19 = sphi 0, %s21
    %s22 = sphi 0, %s19
    %s23 = sphi 0, %s22
    %s39 = sphi 0, %s23
    %s43 = sphi 0, %s43
    %s45 = sphi 0, %s43
    %s46 = sphi 0, %s45
    %s60 = sphi 0, %s46
    %s64 = sphi 0, %s64
    %s66 = sphi 0, %s64
    %s67 = sphi 0, %s66
    %s81 = sphi 0, %s67
    %s87 = sphi 0, %s89
    %s90 = sphi 0, %s87
    %s91 = sphi 0, %s90
    %s107 = sphi 0, %s91
  $region4: #{stage_forward_pallas.3} parent=0 // loop_header_branch
    %12 = sbr.rel (%p10) target = $region8
  $region5: #{stage_forward_pallas.3} parent=0 // loop_body
    %s14 = ssub.s32 %s9, 1
    %s15 = ssub.s32 %s9, 2
    %s16 = sadd.s32 %s9, 1
    %s17 = ssub.s32 %s9, %s16
    %p18 = scmp.eq.s32.totalorder %s17, 0
    %s20 = sadd.s32 %s19, 1
    %s21 = scalar_select %p18, %s19, %s20
    %p24 = pneg %p18
    %p25 = scmp.eq.s32.totalorder %s9, 1
    %p26 = por %p24, %p25
    %p27 = scmp.ne.s32.totalorder %s19, %s22
    %p28 = scmp.eq.s32.totalorder %s9, 0
    %p29 = por %p27, %p28
    %p30 = scmp.ne.s32.totalorder %s19, %s22
    %p31 = scmp.eq.s32.totalorder %s14, 1
    %p32 = por %p30, %p31
    %p33 = scmp.ne.s32.totalorder %s22, %s23
    %p34 = scmp.eq.s32.totalorder %s14, 0
    %p35 = por %p33, %p34
    %p36 = scmp.ne.s32.totalorder %s22, %s23
    %p37 = scmp.eq.s32.totalorder %s15, 1
    %p38 = por %p36, %p37
    %p40 = scmp.ne.s32.totalorder %s23, %s39
    %p41 = scmp.eq.s32.totalorder %s15, 0
    %p42 = por %p40, %p41
    %s44 = sadd.s32 %s43, 1
    %p47 = scmp.eq.s32.totalorder %s9, 1
    %p48 = scmp.ne.s32.totalorder %s43, %s45
    %p49 = scmp.eq.s32.totalorder %s9, 0
    %p50 = por %p48, %p49
    %p51 = scmp.ne.s32.totalorder %s43, %s45
    %p52 = scmp.eq.s32.totalorder %s14, 1
    %p53 = por %p51, %p52
    %p54 = scmp.ne.s32.totalorder %s45, %s46
    %p55 = scmp.eq.s32.totalorder %s14, 0
    %p56 = por %p54, %p55
    %p57 = scmp.ne.s32.totalorder %s45, %s46
    %p58 = scmp.eq.s32.totalorder %s15, 1
    %p59 = por %p57, %p58
    %p61 = scmp.ne.s32.totalorder %s46, %s60
    %p62 = scmp.eq.s32.totalorder %s15, 0
    %p63 = por %p61, %p62
    %s65 = sadd.s32 %s64, 1
    %p68 = scmp.eq.s32.totalorder %s9, 1
    %p69 = scmp.ne.s32.totalorder %s64, %s66
    %p70 = scmp.eq.s32.totalorder %s9, 0
    %p71 = por %p69, %p70
    %p72 = scmp.ne.s32.totalorder %s64, %s66
    %p73 = scmp.eq.s32.totalorder %s14, 1
    %p74 = por %p72, %p73
    %p75 = scmp.ne.s32.totalorder %s66, %s67
    %p76 = scmp.eq.s32.totalorder %s14, 0
    %p77 = por %p75, %p76
    %p78 = scmp.ne.s32.totalorder %s66, %s67
    %p79 = scmp.eq.s32.totalorder %s15, 1
    %p80 = por %p78, %p79
    %p82 = scmp.ne.s32.totalorder %s67, %s81
    %p83 = scmp.eq.s32.totalorder %s15, 0
    %p84 = por %p82, %p83
    %s85 = ssub.s32 %s9, %s16
    %p86 = scmp.eq.s32.totalorder %s85, 0
    %s88 = sadd.s32 %s87, 1
    %s89 = scalar_select %p86, %s87, %s88
    %p92 = pneg %p86
    %p93 = scmp.eq.s32.totalorder %s9, 1
    %p94 = por %p92, %p93
    %p95 = scmp.ne.s32.totalorder %s87, %s90
    %p96 = scmp.eq.s32.totalorder %s9, 0
    %p97 = por %p95, %p96
    %p98 = scmp.ne.s32.totalorder %s87, %s90
    %p99 = scmp.eq.s32.totalorder %s14, 1
    %p100 = por %p98, %p99
    %p101 = scmp.ne.s32.totalorder %s90, %s91
    %p102 = scmp.eq.s32.totalorder %s14, 0
    %p103 = por %p101, %p102
    %p104 = scmp.ne.s32.totalorder %s90, %s91
    %p105 = scmp.eq.s32.totalorder %s15, 1
    %p106 = por %p104, %p105
    %p108 = scmp.ne.s32.totalorder %s91, %s107
    %p109 = scmp.eq.s32.totalorder %s15, 0
    %p110 = por %p108, %p109
    %p111 = scmp.le.s32.totalorder 1, %s9
    %p112 = scmp.lt.s32.totalorder %s9, 3
    %p113 = pnand %p111, %p112
    %p114 = pneg %p113
    // Predicated region
    $region9: #{stage_forward_pallas.3} parent=5 // pred_check
      _
    $region10: #{stage_forward_pallas.3} parent=5 // pred_check_branch
      %116 = sbr.rel (%p113) target = $region12
    $region11: #{stage_forward_pallas.3} parent=5 // pred_region
      %s117 = ssub.s32 %s9, 1
      // Predicated region
      $region13: #{stage_forward_pallas.3} parent=11 // pred_check
        %p118 = pneg %p56
      $region14: #{stage_forward_pallas.3} parent=11 // pred_check_branch
        %120 = sbr.rel (%p118) target = $region16
      $region15: #{stage_forward_pallas.3} parent=11 // pred_region
        _
      $region16: #{stage_forward_pallas.3} parent=11 // pred_fallthru
        _
      // Predicated region
      $region17: #{stage_forward_pallas.3} parent=11 // pred_check
        %p121 = pneg %p77
      $region18: #{stage_forward_pallas.3} parent=11 // pred_check_branch
        %123 = sbr.rel (%p121) target = $region20
      $region19: #{stage_forward_pallas.3} parent=11 // pred_region
        _
      $region20: #{stage_forward_pallas.3} parent=11 // pred_fallthru
        _
    $region12: #{stage_forward_pallas.3} parent=5 // pred_fallthru
      _
    %p124 = scmp.lt.s32.totalorder %s9, 2
    // Predicated region
    $region21: #{stage_forward_pallas.3} parent=5 // pred_check
      %p125 = pneg %p124
    $region22: #{stage_forward_pallas.3} parent=5 // pred_check_branch
      %127 = sbr.rel (%p125) target = $region24
    $region23: #{stage_forward_pallas.3} parent=5 // pred_region
      // Predicated region
      $region25: #{stage_forward_pallas.3} parent=23 // pred_check
        %p128 = pneg %p29
      $region26: #{stage_forward_pallas.3} parent=23 // pred_check_branch
        %130 = sbr.rel (%p128) target = $region28
      $region27: #{stage_forward_pallas.3} parent=23 // pred_region
        %p131 = scmp.lt.s32.totalorder %s9, 1
        %s132 = scalar_select %p131, %s9, 1
        %s133 = smul.addr %s132, 72
        %s134 = smul.addr %s133, 8
        %s135 = scalar_lea.vmem %s0, %s134
      $region28: #{stage_forward_pallas.3} parent=23 // pred_fallthru
        _
    $region24: #{stage_forward_pallas.3} parent=5 // pred_fallthru
      _
    %p136 = scmp.le.s32.totalorder 1, %s9
    %p137 = scmp.lt.s32.totalorder %s9, 3
    %p138 = pnand %p136, %p137
    %p139 = pneg %p138
    // Predicated region
    $region29: #{stage_forward_pallas.3} parent=5 // pred_check
      _
    $region30: #{stage_forward_pallas.3} parent=5 // pred_check_branch
      %141 = sbr.rel (%p138) target = $region32
    $region31: #{stage_forward_pallas.3} parent=5 // pred_region
      %s142 = ssub.s32 %s9, 1
      %p143 = scmp.lt.s32.totalorder %s14, 1
      %s144 = scalar_select %p143, %s14, 1
      %s145 = smul.addr %s144, 72
      %s146 = smul.addr %s145, 8
      %s147 = scalar_lea.vmem %s0, %s146
      %p148 = pneg %p35
      %p149 = pneg %p32
      %p150 = pneg %p56
      %p151 = pneg %p53
      %p152 = pneg %p77
      %p153 = pneg %p74
      %p154 = pneg %p103
      %p155 = pneg %p100
      %p156 = scmp.lt.s32.totalorder %s14, 1
      %s157 = scalar_select %p156, %s14, 1
      %s158 = smul.addr %s157, 8
      %s159 = smul.addr %s158, 8
      %s160 = scalar_lea.vmem %s3, %s159
      %p161 = scmp.lt.s32.totalorder %s14, 1
      %s162 = scalar_select %p161, %s14, 1
      %s163 = smul.addr %s162, 72
      %s164 = smul.addr %s163, 8
      %s165 = scalar_lea.vmem %s0, %s164
      %p166 = scmp.lt.s32.totalorder %s14, 1
      %s167 = scalar_select %p166, %s14, 1
      %s168 = smul.addr %s167, 8
      %s169 = smul.addr %s168, 8
      %s170 = scalar_lea.vmem %s3, %s169
      %v171 = vld [vmem:[%s165] sm:$0xff]
      %s172 = scalar_lea.vmem %s165, 16
      %v173 = vld [vmem:[%s172] sm:$0xff]
      %v174 = vld [vmem:[%s165 + $0x1] sm:$0xff]
      %s175 = scalar_lea.vmem %s165, 32
      %v176 = vld [vmem:[%s175] sm:$0xff]
      %s177 = scalar_lea.vmem %s165, 48
      %v178 = vld [vmem:[%s177] sm:$0xff]
      %v179 = vld [vmem:[%s175 + $0x1] sm:$0xff]
      %s180 = scalar_lea.vmem %s165, 64
      %v181 = vld [vmem:[%s180] sm:$0xff]
      %s182 = scalar_lea.vmem %s165, 80
      %v183 = vld [vmem:[%s182] sm:$0xff]
      %v184 = vld [vmem:[%s180 + $0x1] sm:$0xff]
      %186 = vrot.lane.b32.xlu0 %v173, 4
      %v187 = vpop.permute.xlu0 %186
      %190 = vrot.lane.b32.xlu0 %v174, 8
      %v191 = vpop.permute.xlu0 %190
      %194 = vrot.lane.b32.xlu0 %v176, 12
      %v195 = vpop.permute.xlu0 %194
      %198 = vrot.lane.b32.xlu0 %v178, 16
      %v199 = vpop.permute.xlu0 %198
      %202 = vrot.lane.b32.xlu0 %v179, 20
      %v203 = vpop.permute.xlu0 %202
      %206 = vrot.lane.b32.xlu0 %v181, 24
      %v207 = vpop.permute.xlu0 %206
      %210 = vrot.lane.b32.xlu0 %v183, 28
      %v211 = vpop.permute.xlu0 %210
      %214 = vrot.lane.b32.xlu0 %v184, 32
      %v215 = vpop.permute.xlu0 %214
      %vm217 = vcmask 31744
      %v218 = vsel %vm217, %v171, %v187
      %vm219 = vcmask 64512
      %v220 = vsel %vm219, %v218, %v191
      %vm221 = vcmask 97280
      %v222 = vsel %vm221, %v220, %v195
      %vm223 = vcmask 130048
      %v224 = vsel %vm223, %v222, %v199
      %vm225 = vcmask 162816
      %v226 = vsel %vm225, %v224, %v203
      %vm227 = vcmask 195584
      %v228 = vsel %vm227, %v226, %v207
      %vm229 = vcmask 228352
      %v230 = vsel %vm229, %v228, %v211
      %vm231 = vcmask 261120
      %v232 = vsel %vm231, %v230, %v215
      %vm233 = vcmask 293888
      %234 = vst.msk [vmem:[#allocation2] sm:$0xff] %vm233, %v232
      %v235 = vld [vmem:[%s180] sm:$0xff]
      %v236 = vld [vmem:[%s182] sm:$0xff]
      %v237 = vld [vmem:[%s180 + $0x1] sm:$0xff]
      %s238 = scalar_lea.vmem %s165, 96
      %v239 = vld [vmem:[%s238] sm:$0xff]
      %s240 = scalar_lea.vmem %s165, 112
      %v241 = vld [vmem:[%s240] sm:$0xff]
      %v242 = vld [vmem:[%s238 + $0x1] sm:$0xff]
      %s243 = scalar_lea.vmem %s165, 128
      %v244 = vld [vmem:[%s243] sm:$0xff]
      %s245 = scalar_lea.vmem %s165, 144
      %v246 = vld [vmem:[%s245] sm:$0xff]
      %v247 = vld [vmem:[%s243 + $0x1] sm:$0xff]
      %249 = vrot.lane.b32.xlu0 %v236, 4
      %v250 = vpop.permute.xlu0 %249
      %253 = vrot.lane.b32.xlu0 %v237, 8
      %v254 = vpop.permute.xlu0 %253
      %257 = vrot.lane.b32.xlu0 %v239, 12
      %v258 = vpop.permute.xlu0 %257
      %261 = vrot.lane.b32.xlu0 %v241, 16
      %v262 = vpop.permute.xlu0 %261
      %265 = vrot.lane.b32.xlu0 %v242, 20
      %v266 = vpop.permute.xlu0 %265
      %269 = vrot.lane.b32.xlu0 %v244, 24
      %v270 = vpop.permute.xlu0 %269
      %273 = vrot.lane.b32.xlu0 %v246, 28
      %v274 = vpop.permute.xlu0 %273
      %277 = vrot.lane.b32.xlu0 %v247, 32
      %v278 = vpop.permute.xlu0 %277
      %v280 = vsel %vm217, %v235, %v250
      %v281 = vsel %vm219, %v280, %v254
      %v282 = vsel %vm221, %v281, %v258
      %v283 = vsel %vm223, %v282, %v262
      %v284 = vsel %vm225, %v283, %v266
      %v285 = vsel %vm227, %v284, %v270
      %v286 = vsel %vm229, %v285, %v274
      %v287 = vsel %vm231, %v286, %v278
      %288 = vst.msk [vmem:[#allocation2 + $0x8] sm:$0xff] %vm233, %v287
      %v289 = vld [vmem:[%s243] sm:$0xff]
      %v290 = vld [vmem:[%s245] sm:$0xff]
      %v291 = vld [vmem:[%s243 + $0x1] sm:$0xff]
      %s292 = scalar_lea.vmem %s165, 160
      %v293 = vld [vmem:[%s292] sm:$0xff]
      %s294 = scalar_lea.vmem %s165, 176
      %v295 = vld [vmem:[%s294] sm:$0xff]
      %v296 = vld [vmem:[%s292 + $0x1] sm:$0xff]
      %s297 = scalar_lea.vmem %s165, 192
      %v298 = vld [vmem:[%s297] sm:$0xff]
      %s299 = scalar_lea.vmem %s165, 208
      %v300 = vld [vmem:[%s299] sm:$0xff]
      %v301 = vld [vmem:[%s297 + $0x1] sm:$0xff]
      %303 = vrot.lane.b32.xlu0 %v290, 4
      %v304 = vpop.permute.xlu0 %303
      %307 = vrot.lane.b32.xlu0 %v291, 8
      %v308 = vpop.permute.xlu0 %307
      %311 = vrot.lane.b32.xlu0 %v293, 12
      %v312 = vpop.permute.xlu0 %311
      %315 = vrot.lane.b32.xlu0 %v295, 16
      %v316 = vpop.permute.xlu0 %315
      %319 = vrot.lane.b32.xlu0 %v296, 20
      %v320 = vpop.permute.xlu0 %319
      %323 = vrot.lane.b32.xlu0 %v298, 24
      %v324 = vpop.permute.xlu0 %323
      %327 = vrot.lane.b32.xlu0 %v300, 28
      %v328 = vpop.permute.xlu0 %327
      %331 = vrot.lane.b32.xlu0 %v301, 32
      %v332 = vpop.permute.xlu0 %331
      %v334 = vsel %vm217, %v289, %v304
      %v335 = vsel %vm219, %v334, %v308
      %v336 = vsel %vm221, %v335, %v312
      %v337 = vsel %vm223, %v336, %v316
      %v338 = vsel %vm225, %v337, %v320
      %v339 = vsel %vm227, %v338, %v324
      %v340 = vsel %vm229, %v339, %v328
      %v341 = vsel %vm231, %v340, %v332
      %342 = vst.msk [vmem:[#allocation2 + $0x10] sm:$0xff] %vm233, %v341
      %v343 = vld [vmem:[%s297] sm:$0xff]
      %v344 = vld [vmem:[%s299] sm:$0xff]
      %v345 = vld [vmem:[%s297 + $0x1] sm:$0xff]
      %s346 = scalar_lea.vmem %s165, 224
      %v347 = vld [vmem:[%s346] sm:$0xff]
      %s348 = scalar_lea.vmem %s165, 240
      %v349 = vld [vmem:[%s348] sm:$0xff]
      %v350 = vld [vmem:[%s346 + $0x1] sm:$0xff]
      %s351 = scalar_lea.vmem %s165, 256
      %v352 = vld [vmem:[%s351] sm:$0xff]
      %s353 = scalar_lea.vmem %s165, 272
      %v354 = vld [vmem:[%s353] sm:$0xff]
      %v355 = vld [vmem:[%s351 + $0x1] sm:$0xff]
      %357 = vrot.lane.b32.xlu0 %v344, 4
      %v358 = vpop.permute.xlu0 %357
      %361 = vrot.lane.b32.xlu0 %v345, 8
      %v362 = vpop.permute.xlu0 %361
      %365 = vrot.lane.b32.xlu0 %v347, 12
      %v366 = vpop.permute.xlu0 %365
      %369 = vrot.lane.b32.xlu0 %v349, 16
      %v370 = vpop.permute.xlu0 %369
      %373 = vrot.lane.b32.xlu0 %v350, 20
      %v374 = vpop.permute.xlu0 %373
      %377 = vrot.lane.b32.xlu0 %v352, 24
      %v378 = vpop.permute.xlu0 %377
      %381 = vrot.lane.b32.xlu0 %v354, 28
      %v382 = vpop.permute.xlu0 %381
      %385 = vrot.lane.b32.xlu0 %v355, 32
      %v386 = vpop.permute.xlu0 %385
      %v388 = vsel %vm217, %v343, %v358
      %v389 = vsel %vm219, %v388, %v362
      %v390 = vsel %vm221, %v389, %v366
      %v391 = vsel %vm223, %v390, %v370
      %v392 = vsel %vm225, %v391, %v374
      %v393 = vsel %vm227, %v392, %v378
      %v394 = vsel %vm229, %v393, %v382
      %v395 = vsel %vm231, %v394, %v386
      %396 = vst.msk [vmem:[#allocation2 + $0x18] sm:$0xff] %vm233, %v395
      %v397 = vld [vmem:[%s351] sm:$0xff]
      %v398 = vld [vmem:[%s353] sm:$0xff]
      %v399 = vld [vmem:[%s351 + $0x1] sm:$0xff]
      %s400 = scalar_lea.vmem %s165, 288
      %v401 = vld [vmem:[%s400] sm:$0xff]
      %s402 = scalar_lea.vmem %s165, 304
      %v403 = vld [vmem:[%s402] sm:$0xff]
      %v404 = vld [vmem:[%s400 + $0x1] sm:$0xff]
      %s405 = scalar_lea.vmem %s165, 320
      %v406 = vld [vmem:[%s405] sm:$0xff]
      %s407 = scalar_lea.vmem %s165, 336
      %v408 = vld [vmem:[%s407] sm:$0xff]
      %v409 = vld [vmem:[%s405 + $0x1] sm:$0xff]
      %411 = vrot.lane.b32.xlu0 %v398, 4
      %v412 = vpop.permute.xlu0 %411
      %415 = vrot.lane.b32.xlu0 %v399, 8
      %v416 = vpop.permute.xlu0 %415
      %419 = vrot.lane.b32.xlu0 %v401, 12
      %v420 = vpop.permute.xlu0 %419
      %423 = vrot.lane.b32.xlu0 %v403, 16
      %v424 = vpop.permute.xlu0 %423
      %427 = vrot.lane.b32.xlu0 %v404, 20
      %v428 = vpop.permute.xlu0 %427
      %431 = vrot.lane.b32.xlu0 %v406, 24
      %v432 = vpop.permute.xlu0 %431
      %435 = vrot.lane.b32.xlu0 %v408, 28
      %v436 = vpop.permute.xlu0 %435
      %439 = vrot.lane.b32.xlu0 %v409, 32
      %v440 = vpop.permute.xlu0 %439
      %v442 = vsel %vm217, %v397, %v412
      %v443 = vsel %vm219, %v442, %v416
      %v444 = vsel %vm221, %v443, %v420
      %v445 = vsel %vm223, %v444, %v424
      %v446 = vsel %vm225, %v445, %v428
      %v447 = vsel %vm227, %v446, %v432
      %v448 = vsel %vm229, %v447, %v436
      %v449 = vsel %vm231, %v448, %v440
      %450 = vst.msk [vmem:[#allocation2 + $0x20] sm:$0xff] %vm233, %v449
      %v451 = vld [vmem:[%s405] sm:$0xff]
      %v452 = vld [vmem:[%s407] sm:$0xff]
      %v453 = vld [vmem:[%s405 + $0x1] sm:$0xff]
      %s454 = scalar_lea.vmem %s165, 352
      %v455 = vld [vmem:[%s454] sm:$0xff]
      %s456 = scalar_lea.vmem %s165, 368
      %v457 = vld [vmem:[%s456] sm:$0xff]
      %v458 = vld [vmem:[%s454 + $0x1] sm:$0xff]
      %s459 = scalar_lea.vmem %s165, 384
      %v460 = vld [vmem:[%s459] sm:$0xff]
      %s461 = scalar_lea.vmem %s165, 400
      %v462 = vld [vmem:[%s461] sm:$0xff]
      %v463 = vld [vmem:[%s459 + $0x1] sm:$0xff]
      %465 = vrot.lane.b32.xlu0 %v452, 4
      %v466 = vpop.permute.xlu0 %465
      %469 = vrot.lane.b32.xlu0 %v453, 8
      %v470 = vpop.permute.xlu0 %469
      %473 = vrot.lane.b32.xlu0 %v455, 12
      %v474 = vpop.permute.xlu0 %473
      %477 = vrot.lane.b32.xlu0 %v457, 16
      %v478 = vpop.permute.xlu0 %477
      %481 = vrot.lane.b32.xlu0 %v458, 20
      %v482 = vpop.permute.xlu0 %481
      %485 = vrot.lane.b32.xlu0 %v460, 24
      %v486 = vpop.permute.xlu0 %485
      %489 = vrot.lane.b32.xlu0 %v462, 28
      %v490 = vpop.permute.xlu0 %489
      %493 = vrot.lane.b32.xlu0 %v463, 32
      %v494 = vpop.permute.xlu0 %493
      %v496 = vsel %vm217, %v451, %v466
      %v497 = vsel %vm219, %v496, %v470
      %v498 = vsel %vm221, %v497, %v474
      %v499 = vsel %vm223, %v498, %v478
      %v500 = vsel %vm225, %v499, %v482
      %v501 = vsel %vm227, %v500, %v486
      %v502 = vsel %vm229, %v501, %v490
      %v503 = vsel %vm231, %v502, %v494
      %504 = vst.msk [vmem:[#allocation2 + $0x28] sm:$0xff] %vm233, %v503
      %v505 = vld [vmem:[%s459] sm:$0xff]
      %v506 = vld [vmem:[%s461] sm:$0xff]
      %v507 = vld [vmem:[%s459 + $0x1] sm:$0xff]
      %s508 = scalar_lea.vmem %s165, 416
      %v509 = vld [vmem:[%s508] sm:$0xff]
      %s510 = scalar_lea.vmem %s165, 432
      %v511 = vld [vmem:[%s510] sm:$0xff]
      %v512 = vld [vmem:[%s508 + $0x1] sm:$0xff]
      %s513 = scalar_lea.vmem %s165, 448
      %v514 = vld [vmem:[%s513] sm:$0xff]
      %s515 = scalar_lea.vmem %s165, 464
      %v516 = vld [vmem:[%s515] sm:$0xff]
      %v517 = vld [vmem:[%s513 + $0x1] sm:$0xff]
      %519 = vrot.lane.b32.xlu0 %v506, 4
      %v520 = vpop.permute.xlu0 %519
      %523 = vrot.lane.b32.xlu0 %v507, 8
      %v524 = vpop.permute.xlu0 %523
      %527 = vrot.lane.b32.xlu0 %v509, 12
      %v528 = vpop.permute.xlu0 %527
      %531 = vrot.lane.b32.xlu0 %v511, 16
      %v532 = vpop.permute.xlu0 %531
      %535 = vrot.lane.b32.xlu0 %v512, 20
      %v536 = vpop.permute.xlu0 %535
      %539 = vrot.lane.b32.xlu0 %v514, 24
      %v540 = vpop.permute.xlu0 %539
      %543 = vrot.lane.b32.xlu0 %v516, 28
      %v544 = vpop.permute.xlu0 %543
      %547 = vrot.lane.b32.xlu0 %v517, 32
      %v548 = vpop.permute.xlu0 %547
      %v550 = vsel %vm217, %v505, %v520
      %v551 = vsel %vm219, %v550, %v524
      %v552 = vsel %vm221, %v551, %v528
      %v553 = vsel %vm223, %v552, %v532
      %v554 = vsel %vm225, %v553, %v536
      %v555 = vsel %vm227, %v554, %v540
      %v556 = vsel %vm229, %v555, %v544
      %v557 = vsel %vm231, %v556, %v548
      %558 = vst.msk [vmem:[#allocation2 + $0x30] sm:$0xff] %vm233, %v557
      %v559 = vld [vmem:[%s513] sm:$0xff]
      %v560 = vld [vmem:[%s515] sm:$0xff]
      %v561 = vld [vmem:[%s513 + $0x1] sm:$0xff]
      %s562 = scalar_lea.vmem %s165, 480
      %v563 = vld [vmem:[%s562] sm:$0xff]
      %s564 = scalar_lea.vmem %s165, 496
      %v565 = vld [vmem:[%s564] sm:$0xff]
      %v566 = vld [vmem:[%s562 + $0x1] sm:$0xff]
      %s567 = scalar_lea.vmem %s165, 512
      %v568 = vld [vmem:[%s567] sm:$0xff]
      %s569 = scalar_lea.vmem %s165, 528
      %v570 = vld [vmem:[%s569] sm:$0xff]
      %v571 = vld [vmem:[%s567 + $0x1] sm:$0xff]
      %573 = vrot.lane.b32.xlu0 %v560, 4
      %v574 = vpop.permute.xlu0 %573
      %577 = vrot.lane.b32.xlu0 %v561, 8
      %v578 = vpop.permute.xlu0 %577
      %581 = vrot.lane.b32.xlu0 %v563, 12
      %v582 = vpop.permute.xlu0 %581
      %585 = vrot.lane.b32.xlu0 %v565, 16
      %v586 = vpop.permute.xlu0 %585
      %589 = vrot.lane.b32.xlu0 %v566, 20
      %v590 = vpop.permute.xlu0 %589
      %593 = vrot.lane.b32.xlu0 %v568, 24
      %v594 = vpop.permute.xlu0 %593
      %597 = vrot.lane.b32.xlu0 %v570, 28
      %v598 = vpop.permute.xlu0 %597
      %601 = vrot.lane.b32.xlu0 %v571, 32
      %v602 = vpop.permute.xlu0 %601
      %v604 = vsel %vm217, %v559, %v574
      %v605 = vsel %vm219, %v604, %v578
      %v606 = vsel %vm221, %v605, %v582
      %v607 = vsel %vm223, %v606, %v586
      %v608 = vsel %vm225, %v607, %v590
      %v609 = vsel %vm227, %v608, %v594
      %v610 = vsel %vm229, %v609, %v598
      %v611 = vsel %vm231, %v610, %v602
      %612 = vst.msk [vmem:[#allocation2 + $0x38] sm:$0xff] %vm233, %v611
      %v613 = vld [vmem:[#allocation2] sm:$0xff]
      %v614 = vld [vmem:[#allocation2 + $0x8] sm:$0xff]
      %v615 = vld [vmem:[#allocation2 + $0x10] sm:$0xff]
      %v616 = vld [vmem:[#allocation2 + $0x18] sm:$0xff]
      %v617 = vld [vmem:[#allocation2 + $0x20] sm:$0xff]
      %v618 = vld [vmem:[#allocation2 + $0x28] sm:$0xff]
      %v619 = vld [vmem:[#allocation2 + $0x30] sm:$0xff]
      %v620 = vld [vmem:[#allocation2 + $0x38] sm:$0xff]
      %v621 = vld [vmem:[%s1] sm:$0xff]
      %v622 = vld [vmem:[%s1 + $0x8] sm:$0xff]
      %v623 = vld [vmem:[%s1 + $0x10] sm:$0xff]
      %v624 = vld [vmem:[%s1 + $0x18] sm:$0xff]
      %v625 = vld [vmem:[%s1 + $0x20] sm:$0xf]
      %v626 = vld [vmem:[%s2] sm:$0x1]
      %v628 = vlaneseq
      %v629 = vshrl.u32 %v628, 7
      %v630 = vsub.s32 0, %v629
      %v631 = vrot.slane %v626, %v630
      %v634 = vsel %vm233, %v613, 0
      %v637 = vsel %vm233, %v614, 0
      %v640 = vsel %vm233, %v615, 0
      %v643 = vsel %vm233, %v616, 0
      %v646 = vsel %vm233, %v617, 0
      %v649 = vsel %vm233, %v618, 0
      %v652 = vsel %vm233, %v619, 0
      %v655 = vsel %vm233, %v620, 0
      %vm657 = vcmask 1043456
      %v659 = vsel %vm657, %v625, 0
      %661 = vmatprep.subr.mxu0 0.0
      %662 = vmatpush1.msra.mxu0 %v621
      %663 = vmatprep.subr.mxu0 0.0
      %664 = vmatpush1.msra.mxu0 %v622
      %665 = vmatprep.subr.mxu0 0.0
      %666 = vmatpush1.msra.mxu0 %v623
      %667 = vmatprep.subr.mxu0 0.0
      %668 = vmatpush1.msra.mxu0 %v624
      %669 = vmatprep.subr.mxu0 0.0
      %670 = vmatpush1.msra.mxu0 %v659
      %671 = vmatprep.subr.mxu0 0.0
      %672 = vmatpush1.msra.mxu0 0.0
      %673 = vmatprep.subr.mxu0 0.0
      %674 = vmatpush1.msra.mxu0 0.0
      %675 = vmatprep.subr.mxu0 0.0
      %676 = vmatpush1.msra.mxu0 0.0
      %677 = vmatprep.subr.mxu0 0.0
      %678 = vmatpush1.msra.mxu0 0.0
      %679 = vmatprep.subr.mxu0 0.0
      %680 = vmatpush1.msra.mxu0 0.0
      %681 = vmatprep.subr.mxu0 0.0
      %682 = vmatpush1.msra.mxu0 0.0
      %683 = vmatprep.subr.mxu0 0.0
      %684 = vmatpush1.msra.mxu0 0.0
      %685 = vmatprep.subr.mxu0 0.0
      %686 = vmatpush1.msra.mxu0 0.0
      %687 = vmatprep.subr.mxu0 0.0
      %688 = vmatpush1.msra.mxu0 0.0
      %689 = vmatprep.subr.mxu0 0.0
      %690 = vmatpush1.msra.mxu0 0.0
      %691 = vmatprep.subr.mxu0 0.0
      %692 = vmatpush1.msra.mxu0 0.0
      %693 = vmatprep.subr.mxu0 0.0
      %694 = vmatpush1.msra.mxu0 0.0
      %695 = vmatprep.subr.mxu0 0.0
      %696 = vmatpush1.msra.mxu0 0.0
      %697 = vmatprep.subr.mxu0 0.0
      %698 = vmatpush1.msra.mxu0 0.0
      %699 = vmatprep.subr.mxu0 0.0
      %700 = vmatpush1.msra.mxu0 0.0
      %701 = vmatprep.subr.mxu0 0.0
      %702 = vmatpush1.msra.mxu0 0.0
      %703 = vmatprep.subr.mxu0 0.0
      %704 = vmatpush1.msra.mxu0 0.0
      %705 = vmatprep.subr.mxu0 0.0
      %706 = vmatpush1.msra.mxu0 0.0
      %707 = vmatprep.subr.mxu0 0.0
      %708 = vmatpush1.msra.mxu0 0.0
      %709 = vmatprep.subr.mxu0 0.0
      %710 = vmatpush1.msra.mxu0 0.0
      %711 = vmatprep.subr.mxu0 0.0
      %712 = vmatpush1.msra.mxu0 0.0
      %713 = vmatprep.subr.mxu0 0.0
      %714 = vmatpush1.msra.mxu0 0.0
      %715 = vmatprep.subr.mxu0 0.0
      %716 = vmatpush1.msra.mxu0 0.0
      %717 = vmatprep.subr.mxu0 0.0
      %718 = vmatpush1.msra.mxu0 0.0
      %719 = vmatprep.subr.mxu0 0.0
      %720 = vmatpush1.msra.mxu0 0.0
      %721 = vmatprep.subr.mxu0 0.0
      %722 = vmatpush1.msra.mxu0 0.0
      %723 = vmatprep.subr.mxu0 0.0
      %724 = vmatpush1.msra.mxu0 0.0
      %725 = vmatprep.mubr.f32.mxu0 0.0
      %726 = vmatmul.mubr.f32.gmra.mrb[0].mxu0 %v634
      %v727 = vpop.f32.mrb[0].mxu0
      %v728 = vadd.f32 %v631, %v727
      %v729 = vpop.f32.mrb[0].mxu0
      %730 = vmatprep.mubr.f32.mxu0 0.0
      %731 = vmatmul.mubr.f32.gmra.mrb[0].mxu0 %v637
      %v732 = vpop.f32.mrb[0].mxu0
      %v733 = vadd.f32 %v631, %v732
      %v734 = vpop.f32.mrb[0].mxu0
      %735 = vmatprep.mubr.f32.mxu0 0.0
      %736 = vmatmul.mubr.f32.gmra.mrb[0].mxu0 %v640
      %v737 = vpop.f32.mrb[0].mxu0
      %v738 = vadd.f32 %v631, %v737
      %v739 = vpop.f32.mrb[0].mxu0
      %740 = vmatprep.mubr.f32.mxu0 0.0
      %741 = vmatmul.mubr.f32.gmra.mrb[0].mxu0 %v643
      %v742 = vpop.f32.mrb[0].mxu0
      %v743 = vadd.f32 %v631, %v742
      %v744 = vpop.f32.mrb[0].mxu0
      %745 = vmatprep.mubr.f32.mxu0 0.0
      %746 = vmatmul.mubr.f32.gmra.mrb[0].mxu0 %v646
      %v747 = vpop.f32.mrb[0].mxu0
      %v748 = vadd.f32 %v631, %v747
      %v749 = vpop.f32.mrb[0].mxu0
      %750 = vmatprep.mubr.f32.mxu0 0.0
      %751 = vmatmul.mubr.f32.gmra.mrb[0].mxu0 %v649
      %v752 = vpop.f32.mrb[0].mxu0
      %v753 = vadd.f32 %v631, %v752
      %v754 = vpop.f32.mrb[0].mxu0
      %755 = vmatprep.mubr.f32.mxu0 0.0
      %756 = vmatmul.mubr.f32.gmra.mrb[0].mxu0 %v652
      %v757 = vpop.f32.mrb[0].mxu0
      %v758 = vadd.f32 %v631, %v757
      %v759 = vpop.f32.mrb[0].mxu0
      %760 = vmatprep.mubr.f32.mxu0 0.0
      %761 = vmatmul.mubr.f32.gmra.mrb[0].mxu0 %v655
      %v762 = vpop.f32.mrb[0].mxu0
      %v763 = vadd.f32 %v631, %v762
      %v764 = vpop.f32.mrb[0].mxu0
      %765 = vdwg.mxu0
      %v766 = vmul.f32 %v728, 0.1
      %v767 = vmul.f32 %v733, 0.1
      %v768 = vmul.f32 %v738, 0.1
      %v769 = vmul.f32 %v743, 0.1
      %v770 = vmul.f32 %v748, 0.1
      %v771 = vmul.f32 %v753, 0.1
      %v772 = vmul.f32 %v758, 0.1
      %v773 = vmul.f32 %v763, 0.1
      %v774 = vmax.f32 %v728, %v766
      %v775 = vmax.f32 %v733, %v767
      %v776 = vmax.f32 %v738, %v768
      %v777 = vmax.f32 %v743, %v769
      %v778 = vmax.f32 %v748, %v770
      %v779 = vmax.f32 %v753, %v771
      %v780 = vmax.f32 %v758, %v772
      %v781 = vmax.f32 %v763, %v773
      %782 = vst.msk [vmem:[%s170] sm:$0xff] %vm219, %v774
      %783 = vst.msk [vmem:[%s170 + $0x8] sm:$0xff] %vm219, %v775
      %784 = vst.msk [vmem:[%s170 + $0x10] sm:$0xff] %vm219, %v776
      %785 = vst.msk [vmem:[%s170 + $0x18] sm:$0xff] %vm219, %v777
      %786 = vst.msk [vmem:[%s170 + $0x20] sm:$0xff] %vm219, %v778
      %787 = vst.msk [vmem:[%s170 + $0x28] sm:$0xff] %vm219, %v779
      %788 = vst.msk [vmem:[%s170 + $0x30] sm:$0xff] %vm219, %v780
      %789 = vst.msk [vmem:[%s170 + $0x38] sm:$0xff] %vm219, %v781
      %p790 = scmp.lt.s32.totalorder %s14, 1
      %s791 = scalar_select %p790, %s14, 1
      %s792 = smul.addr %s791, 8
      %s793 = smul.addr %s792, 8
      %s794 = scalar_lea.vmem %s3, %s793
      // Predicated region
      $region33: #{stage_forward_pallas.3} parent=31 // pred_check
        %p795 = pneg %p100
      $region34: #{stage_forward_pallas.3} parent=31 // pred_check_branch
        %797 = sbr.rel (%p795) target = $region36
      $region35: #{stage_forward_pallas.3} parent=31 // pred_region
        _
      $region36: #{stage_forward_pallas.3} parent=31 // pred_fallthru
        _
    $region32: #{stage_forward_pallas.3} parent=5 // pred_fallthru
      _
    %p798 = scmp.le.s32.totalorder 2, %s9
    // Predicated region
    $region37: #{stage_forward_pallas.3} parent=5 // pred_check
      %p799 = pneg %p798
    $region38: #{stage_forward_pallas.3} parent=5 // pred_check_branch
      %801 = sbr.rel (%p799) target = $region40
    $region39: #{stage_forward_pallas.3} parent=5 // pred_region
      %s802 = ssub.s32 %s9, 2
      // Predicated region
      $region41: #{stage_forward_pallas.3} parent=39 // pred_check
        %p803 = pneg %p106
      $region42: #{stage_forward_pallas.3} parent=39 // pred_check_branch
        %805 = sbr.rel (%p803) target = $region44
      $region43: #{stage_forward_pallas.3} parent=39 // pred_region
        %p806 = scmp.lt.s32.totalorder %s15, 1
        %s807 = scalar_select %p806, %s15, 1
        %s808 = smul.addr %s807, 8
        %s809 = smul.addr %s808, 8
        %s810 = scalar_lea.vmem %s3, %s809
      $region44: #{stage_forward_pallas.3} parent=39 // pred_fallthru
        _
    $region40: #{stage_forward_pallas.3} parent=5 // pred_fallthru
      _
  $region6: #{stage_forward_pallas.3} parent=0 // loop_footer
    %s13 = sadd.s32 1, %s9
  $region7: #{stage_forward_pallas.3} parent=0 // loop_footer_branch
    %8 = sbr.rel target = $region3
  $region8: #{stage_forward_pallas.3} parent=0 // loop_exit
    _

// kernel: stage_forward_pallas.4
$region0: #{stage_forward_pallas.4}
  #allocation0 [shape = 'u32[]', space=smem, size = 0x4, offset = 0x4, fixed_abs, tag = 'smem constant byte address 0x4 - core index']
  #allocation1 [shape = 'u32[144,128]{1,0:T(1,128)}', space=vmem, size = 0x12000, scoped, tag = 'internal scratch']
  #allocation2 [shape = 'f32[82,4]{1,0:T(8,128)}', space=vmem, size = 0xb000, scoped, tag = 'scratch operand']
  %s0 = inlined_call_operand.vmem [shape: f32[2,64,8], index: 0, kind: input, shape index: {}]
  %s1 = inlined_call_operand.vmem [shape: f32[8,4], index: 1, kind: input, shape index: {}]
  %s2 = inlined_call_operand.vmem [shape: f32[1,4], index: 2, kind: input, shape index: {}]
  %s3 = inlined_call_operand.vmem [shape: f32[36,8], index: 3, kind: input, shape index: {}]
  %s4 = inlined_call_operand.vmem [shape: f32[1,8], index: 4, kind: input, shape index: {}]
  %s5 = inlined_call_operand.vmem [shape: f32[2,64,8], index: 5, kind: output, shape index: {}]
  %s6 = sld [smem:[#allocation0]]
  $region53: #{stage_forward_pallas.4} parent=0
    _
  %s8 = ssub.s32 1, %s6
  %s9 = scalar_select 0, %s8, %s6
  loop: start=0, step=1, limit=4
  $region2: #{stage_forward_pallas.4} parent=0 // loop_pre_header
    _
  $region3: #{stage_forward_pallas.4} parent=0 // loop_header
    %s11 = sphi 0, %s15
    %p12 = scmp.ge.s32.totalorder %s11, 4
    %s21 = sphi 0, %s23
    %s24 = sphi 0, %s21
    %s25 = sphi 0, %s24
    %s41 = sphi 0, %s25
    %s45 = sphi 0, %s45
    %s47 = sphi 0, %s45
    %s48 = sphi 0, %s47
    %s62 = sphi 0, %s48
    %s66 = sphi 0, %s66
    %s68 = sphi 0, %s66
    %s69 = sphi 0, %s68
    %s83 = sphi 0, %s69
    %s87 = sphi 0, %s87
    %s89 = sphi 0, %s87
    %s90 = sphi 0, %s89
    %s104 = sphi 0, %s90
    %s108 = sphi 0, %s108
    %s110 = sphi 0, %s108
    %s111 = sphi 0, %s110
    %s125 = sphi 0, %s111
    %s131 = sphi 0, %s133
    %s134 = sphi 0, %s131
    %s135 = sphi 0, %s134
    %s151 = sphi 0, %s135
  $region4: #{stage_forward_pallas.4} parent=0 // loop_header_branch
    %14 = sbr.rel (%p12) target = $region8
  $region5: #{stage_forward_pallas.4} parent=0 // loop_body
    %s16 = ssub.s32 %s11, 1
    %s17 = ssub.s32 %s11, 2
    %s18 = sadd.s32 %s11, 1
    %s19 = ssub.s32 %s11, %s18
    %p20 = scmp.eq.s32.totalorder %s19, 0
    %s22 = sadd.s32 %s21, 1
    %s23 = scalar_select %p20, %s21, %s22
    %p26 = pneg %p20
    %p27 = scmp.eq.s32.totalorder %s11, 1
    %p28 = por %p26, %p27
    %p29 = scmp.ne.s32.totalorder %s21, %s24
    %p30 = scmp.eq.s32.totalorder %s11, 0
    %p31 = por %p29, %p30
    %p32 = scmp.ne.s32.totalorder %s21, %s24
    %p33 = scmp.eq.s32.totalorder %s16, 1
    %p34 = por %p32, %p33
    %p35 = scmp.ne.s32.totalorder %s24, %s25
    %p36 = scmp.eq.s32.totalorder %s16, 0
    %p37 = por %p35, %p36
    %p38 = scmp.ne.s32.totalorder %s24, %s25
    %p39 = scmp.eq.s32.totalorder %s17, 1
    %p40 = por %p38, %p39
    %p42 = scmp.ne.s32.totalorder %s25, %s41
    %p43 = scmp.eq.s32.totalorder %s17, 0
    %p44 = por %p42, %p43
    %s46 = sadd.s32 %s45, 1
    %p49 = scmp.eq.s32.totalorder %s11, 1
    %p50 = scmp.ne.s32.totalorder %s45, %s47
    %p51 = scmp.eq.s32.totalorder %s11, 0
    %p52 = por %p50, %p51
    %p53 = scmp.ne.s32.totalorder %s45, %s47
    %p54 = scmp.eq.s32.totalorder %s16, 1
    %p55 = por %p53, %p54
    %p56 = scmp.ne.s32.totalorder %s47, %s48
    %p57 = scmp.eq.s32.totalorder %s16, 0
    %p58 = por %p56, %p57
    %p59 = scmp.ne.s32.totalorder %s47, %s48
    %p60 = scmp.eq.s32.totalorder %s17, 1
    %p61 = por %p59, %p60
    %p63 = scmp.ne.s32.totalorder %s48, %s62
    %p64 = scmp.eq.s32.totalorder %s17, 0
    %p65 = por %p63, %p64
    %s67 = sadd.s32 %s66, 1
    %p70 = scmp.eq.s32.totalorder %s11, 1
    %p71 = scmp.ne.s32.totalorder %s66, %s68
    %p72 = scmp.eq.s32.totalorder %s11, 0
    %p73 = por %p71, %p72
    %p74 = scmp.ne.s32.totalorder %s66, %s68
    %p75 = scmp.eq.s32.totalorder %s16, 1
    %p76 = por %p74, %p75
    %p77 = scmp.ne.s32.totalorder %s68, %s69
    %p78 = scmp.eq.s32.totalorder %s16, 0
    %p79 = por %p77, %p78
    %p80 = scmp.ne.s32.totalorder %s68, %s69
    %p81 = scmp.eq.s32.totalorder %s17, 1
    %p82 = por %p80, %p81
    %p84 = scmp.ne.s32.totalorder %s69, %s83
    %p85 = scmp.eq.s32.totalorder %s17, 0
    %p86 = por %p84, %p85
    %s88 = sadd.s32 %s87, 1
    %p91 = scmp.eq.s32.totalorder %s11, 1
    %p92 = scmp.ne.s32.totalorder %s87, %s89
    %p93 = scmp.eq.s32.totalorder %s11, 0
    %p94 = por %p92, %p93
    %p95 = scmp.ne.s32.totalorder %s87, %s89
    %p96 = scmp.eq.s32.totalorder %s16, 1
    %p97 = por %p95, %p96
    %p98 = scmp.ne.s32.totalorder %s89, %s90
    %p99 = scmp.eq.s32.totalorder %s16, 0
    %p100 = por %p98, %p99
    %p101 = scmp.ne.s32.totalorder %s89, %s90
    %p102 = scmp.eq.s32.totalorder %s17, 1
    %p103 = por %p101, %p102
    %p105 = scmp.ne.s32.totalorder %s90, %s104
    %p106 = scmp.eq.s32.totalorder %s17, 0
    %p107 = por %p105, %p106
    %s109 = sadd.s32 %s108, 1
    %p112 = scmp.eq.s32.totalorder %s11, 1
    %p113 = scmp.ne.s32.totalorder %s108, %s110
    %p114 = scmp.eq.s32.totalorder %s11, 0
    %p115 = por %p113, %p114
    %p116 = scmp.ne.s32.totalorder %s108, %s110
    %p117 = scmp.eq.s32.totalorder %s16, 1
    %p118 = por %p116, %p117
    %p119 = scmp.ne.s32.totalorder %s110, %s111
    %p120 = scmp.eq.s32.totalorder %s16, 0
    %p121 = por %p119, %p120
    %p122 = scmp.ne.s32.totalorder %s110, %s111
    %p123 = scmp.eq.s32.totalorder %s17, 1
    %p124 = por %p122, %p123
    %p126 = scmp.ne.s32.totalorder %s111, %s125
    %p127 = scmp.eq.s32.totalorder %s17, 0
    %p128 = por %p126, %p127
    %s129 = ssub.s32 %s11, %s18
    %p130 = scmp.eq.s32.totalorder %s129, 0
    %s132 = sadd.s32 %s131, 1
    %s133 = scalar_select %p130, %s131, %s132
    %p136 = pneg %p130
    %p137 = scmp.eq.s32.totalorder %s11, 1
    %p138 = por %p136, %p137
    %p139 = scmp.ne.s32.totalorder %s131, %s134
    %p140 = scmp.eq.s32.totalorder %s11, 0
    %p141 = por %p139, %p140
    %p142 = scmp.ne.s32.totalorder %s131, %s134
    %p143 = scmp.eq.s32.totalorder %s16, 1
    %p144 = por %p142, %p143
    %p145 = scmp.ne.s32.totalorder %s134, %s135
    %p146 = scmp.eq.s32.totalorder %s16, 0
    %p147 = por %p145, %p146
    %p148 = scmp.ne.s32.totalorder %s134, %s135
    %p149 = scmp.eq.s32.totalorder %s17, 1
    %p150 = por %p148, %p149
    %p152 = scmp.ne.s32.totalorder %s135, %s151
    %p153 = scmp.eq.s32.totalorder %s17, 0
    %p154 = por %p152, %p153
    %p155 = scmp.le.s32.totalorder 1, %s11
    %p156 = scmp.lt.s32.totalorder %s11, 3
    %p157 = pnand %p155, %p156
    %p158 = pneg %p157
    // Predicated region
    $region9: #{stage_forward_pallas.4} parent=5 // pred_check
      _
    $region10: #{stage_forward_pallas.4} parent=5 // pred_check_branch
      %160 = sbr.rel (%p157) target = $region12
    $region11: #{stage_forward_pallas.4} parent=5 // pred_region
      %s161 = ssub.s32 %s11, 1
      // Predicated region
      $region13: #{stage_forward_pallas.4} parent=11 // pred_check
        %p162 = pneg %p58
      $region14: #{stage_forward_pallas.4} parent=11 // pred_check_branch
        %164 = sbr.rel (%p162) target = $region16
      $region15: #{stage_forward_pallas.4} parent=11 // pred_region
        _
      $region16: #{stage_forward_pallas.4} parent=11 // pred_fallthru
        _
      // Predicated region
      $region17: #{stage_forward_pallas.4} parent=11 // pred_check
        %p165 = pneg %p79
      $region18: #{stage_forward_pallas.4} parent=11 // pred_check_branch
        %167 = sbr.rel (%p165) target = $region20
      $region19: #{stage_forward_pallas.4} parent=11 // pred_region
        _
      $region20: #{stage_forward_pallas.4} parent=11 // pred_fallthru
        _
      // Predicated region
      $region21: #{stage_forward_pallas.4} parent=11 // pred_check
        %p168 = pneg %p100
      $region22: #{stage_forward_pallas.4} parent=11 // pred_check_branch
        %170 = sbr.rel (%p168) target = $region24
      $region23: #{stage_forward_pallas.4} parent=11 // pred_region
        _
      $region24: #{stage_forward_pallas.4} parent=11 // pred_fallthru
        _
      // Predicated region
      $region25: #{stage_forward_pallas.4} parent=11 // pred_check
        %p171 = pneg %p121
      $region26: #{stage_forward_pallas.4} parent=11 // pred_check_branch
        %173 = sbr.rel (%p171) target = $region28
      $region27: #{stage_forward_pallas.4} parent=11 // pred_region
        _
      $region28: #{stage_forward_pallas.4} parent=11 // pred_fallthru
        _
    $region12: #{stage_forward_pallas.4} parent=5 // pred_fallthru
      _
    %p174 = scmp.lt.s32.totalorder %s11, 2
    // Predicated region
    $region29: #{stage_forward_pallas.4} parent=5 // pred_check
      %p175 = pneg %p174
    $region30: #{stage_forward_pallas.4} parent=5 // pred_check_branch
      %177 = sbr.rel (%p175) target = $region32
    $region31: #{stage_forward_pallas.4} parent=5 // pred_region
      // Predicated region
      $region33: #{stage_forward_pallas.4} parent=31 // pred_check
        %p178 = pneg %p31
      $region34: #{stage_forward_pallas.4} parent=31 // pred_check_branch
        %180 = sbr.rel (%p178) target = $region36
      $region35: #{stage_forward_pallas.4} parent=31 // pred_region
        %p181 = scmp.lt.s32.totalorder %s11, 1
        %s182 = scalar_select %p181, %s11, 1
        %s183 = smul.addr %s182, 8
        %s184 = smul.addr %s183, 8
        %s185 = scalar_lea.vmem %s0, %s184
      $region36: #{stage_forward_pallas.4} parent=31 // pred_fallthru
        _
    $region32: #{stage_forward_pallas.4} parent=5 // pred_fallthru
      _
    %p186 = scmp.le.s32.totalorder 1, %s11
    %p187 = scmp.lt.s32.totalorder %s11, 3
    %p188 = pnand %p186, %p187
    %p189 = pneg %p188
    // Predicated region
    $region37: #{stage_forward_pallas.4} parent=5 // pred_check
      _
    $region38: #{stage_forward_pallas.4} parent=5 // pred_check_branch
      %191 = sbr.rel (%p188) target = $region40
    $region39: #{stage_forward_pallas.4} parent=5 // pred_region
      %s192 = ssub.s32 %s11, 1
      %p193 = scmp.lt.s32.totalorder %s16, 1
      %s194 = scalar_select %p193, %s16, 1
      %s195 = smul.addr %s194, 8
      %s196 = smul.addr %s195, 8
      %s197 = scalar_lea.vmem %s0, %s196
      %p198 = pneg %p37
      %p199 = pneg %p34
      %p200 = pneg %p58
      %p201 = pneg %p55
      %p202 = pneg %p79
      %p203 = pneg %p76
      %p204 = pneg %p100
      %p205 = pneg %p97
      %p206 = pneg %p121
      %p207 = pneg %p118
      %p208 = pneg %p147
      %p209 = pneg %p144
      %p210 = scmp.lt.s32.totalorder %s16, 1
      %s211 = scalar_select %p210, %s16, 1
      %s212 = smul.addr %s211, 8
      %s213 = smul.addr %s212, 8
      %s214 = scalar_lea.vmem %s5, %s213
      %p215 = scmp.lt.s32.totalorder %s16, 1
      %s216 = scalar_select %p215, %s16, 1
      %s217 = smul.addr %s216, 8
      %s218 = smul.addr %s217, 8
      %s219 = scalar_lea.vmem %s0, %s218
      %p220 = scmp.lt.s32.totalorder %s16, 1
      %s221 = scalar_select %p220, %s16, 1
      %s222 = smul.addr %s221, 8
      %s223 = smul.addr %s222, 8
      %s224 = scalar_lea.vmem %s5, %s223
      %v225 = vld [vmem:[%s219] sm:$0xff]
      %v226 = vld [vmem:[%s219 + $0x8] sm:$0xff]
      %v227 = vld [vmem:[%s219 + $0x10] sm:$0xff]
      %v228 = vld [vmem:[%s219 + $0x18] sm:$0xff]
      %v229 = vld [vmem:[%s219 + $0x20] sm:$0xff]
      %v230 = vld [vmem:[%s219 + $0x28] sm:$0xff]
      %v231 = vld [vmem:[%s219 + $0x30] sm:$0xff]
      %v232 = vld [vmem:[%s219 + $0x38] sm:$0xff]
      %v233 = vld [vmem:[%s1] sm:$0xff]
      %v234 = vld [vmem:[%s2] sm:$0x1]
      %v236 = vlaneseq
      %v237 = vshrl.u32 %v236, 7
      %v238 = vsub.s32 0, %v237
      %v239 = vrot.slane %v234, %v238
      %vm241 = vcmask 64512
      %v243 = vsel %vm241, %v225, 0
      %v246 = vsel %vm241, %v226, 0
      %v249 = vsel %vm241, %v227, 0
      %v252 = vsel %vm241, %v228, 0
      %v255 = vsel %vm241, %v229, 0
      %v258 = vsel %vm241, %v230, 0
      %v261 = vsel %vm241, %v231, 0
      %v264 = vsel %vm241, %v232, 0
      %266 = vmatprep.subr.mxu0 0.0
      %267 = vmatpush1.msra.mxu0 %v233
      %268 = vmatprep.subr.mxu0 0.0
      %269 = vmatpush1.msra.mxu0 0.0
      %270 = vmatprep.subr.mxu0 0.0
      %271 = vmatpush1.msra.mxu0 0.0
      %272 = vmatprep.subr.mxu0 0.0
      %273 = vmatpush1.msra.mxu0 0.0
      %274 = vmatprep.subr.mxu0 0.0
      %275 = vmatpush1.msra.mxu0 0.0
      %276 = vmatprep.subr.mxu0 0.0
      %277 = vmatpush1.msra.mxu0 0.0
      %278 = vmatprep.subr.mxu0 0.0
      %279 = vmatpush1.msra.mxu0 0.0
      %280 = vmatprep.subr.mxu0 0.0
      %281 = vmatpush1.msra.mxu0 0.0
      %282 = vmatprep.subr.mxu0 0.0
      %283 = vmatpush1.msra.mxu0 0.0
      %284 = vmatprep.subr.mxu0 0.0
      %285 = vmatpush1.msra.mxu0 0.0
      %286 = vmatprep.subr.mxu0 0.0
      %287 = vmatpush1.msra.mxu0 0.0
      %288 = vmatprep.subr.mxu0 0.0
      %289 = vmatpush1.msra.mxu0 0.0
      %290 = vmatprep.subr.mxu0 0.0
      %291 = vmatpush1.msra.mxu0 0.0
      %292 = vmatprep.subr.mxu0 0.0
      %293 = vmatpush1.msra.mxu0 0.0
      %294 = vmatprep.subr.mxu0 0.0
      %295 = vmatpush1.msra.mxu0 0.0
      %296 = vmatprep.subr.mxu0 0.0
      %297 = vmatpush1.msra.mxu0 0.0
      %298 = vmatprep.subr.mxu0 0.0
      %299 = vmatpush1.msra.mxu0 0.0
      %300 = vmatprep.subr.mxu0 0.0
      %301 = vmatpush1.msra.mxu0 0.0
      %302 = vmatprep.subr.mxu0 0.0
      %303 = vmatpush1.msra.mxu0 0.0
      %304 = vmatprep.subr.mxu0 0.0
      %305 = vmatpush1.msra.mxu0 0.0
      %306 = vmatprep.subr.mxu0 0.0
      %307 = vmatpush1.msra.mxu0 0.0
      %308 = vmatprep.subr.mxu0 0.0
      %309 = vmatpush1.msra.mxu0 0.0
      %310 = vmatprep.subr.mxu0 0.0
      %311 = vmatpush1.msra.mxu0 0.0
      %312 = vmatprep.subr.mxu0 0.0
      %313 = vmatpush1.msra.mxu0 0.0
      %314 = vmatprep.subr.mxu0 0.0
      %315 = vmatpush1.msra.mxu0 0.0
      %316 = vmatprep.subr.mxu0 0.0
      %317 = vmatpush1.msra.mxu0 0.0
      %318 = vmatprep.subr.mxu0 0.0
      %319 = vmatpush1.msra.mxu0 0.0
      %320 = vmatprep.subr.mxu0 0.0
      %321 = vmatpush1.msra.mxu0 0.0
      %322 = vmatprep.subr.mxu0 0.0
      %323 = vmatpush1.msra.mxu0 0.0
      %324 = vmatprep.subr.mxu0 0.0
      %325 = vmatpush1.msra.mxu0 0.0
      %326 = vmatprep.subr.mxu0 0.0
      %327 = vmatpush1.msra.mxu0 0.0
      %328 = vmatprep.subr.mxu0 0.0
      %329 = vmatpush1.msra.mxu0 0.0
      %330 = vmatprep.mubr.f32.mxu0 0.0
      %331 = vmatmul.mubr.f32.gmra.mrb[0].mxu0 %v243
      %v332 = vpop.f32.mrb[0].mxu0
      %v333 = vadd.f32 %v239, %v332
      %v334 = vpop.f32.mrb[0].mxu0
      %335 = vmatprep.mubr.f32.mxu0 0.0
      %336 = vmatmul.mubr.f32.gmra.mrb[0].mxu0 %v246
      %v337 = vpop.f32.mrb[0].mxu0
      %v338 = vadd.f32 %v239, %v337
      %v339 = vpop.f32.mrb[0].mxu0
      %340 = vmatprep.mubr.f32.mxu0 0.0
      %341 = vmatmul.mubr.f32.gmra.mrb[0].mxu0 %v249
      %v342 = vpop.f32.mrb[0].mxu0
      %v343 = vadd.f32 %v239, %v342
      %v344 = vpop.f32.mrb[0].mxu0
      %345 = vmatprep.mubr.f32.mxu0 0.0
      %346 = vmatmul.mubr.f32.gmra.mrb[0].mxu0 %v252
      %v347 = vpop.f32.mrb[0].mxu0
      %v348 = vadd.f32 %v239, %v347
      %v349 = vpop.f32.mrb[0].mxu0
      %350 = vmatprep.mubr.f32.mxu0 0.0
      %351 = vmatmul.mubr.f32.gmra.mrb[0].mxu0 %v255
      %v352 = vpop.f32.mrb[0].mxu0
      %v353 = vadd.f32 %v239, %v352
      %v354 = vpop.f32.mrb[0].mxu0
      %355 = vmatprep.mubr.f32.mxu0 0.0
      %356 = vmatmul.mubr.f32.gmra.mrb[0].mxu0 %v258
      %v357 = vpop.f32.mrb[0].mxu0
      %v358 = vadd.f32 %v239, %v357
      %v359 = vpop.f32.mrb[0].mxu0
      %360 = vmatprep.mubr.f32.mxu0 0.0
      %361 = vmatmul.mubr.f32.gmra.mrb[0].mxu0 %v261
      %v362 = vpop.f32.mrb[0].mxu0
      %v363 = vadd.f32 %v239, %v362
      %v364 = vpop.f32.mrb[0].mxu0
      %365 = vmatprep.mubr.f32.mxu0 0.0
      %366 = vmatmul.mubr.f32.gmra.mrb[0].mxu0 %v264
      %v367 = vpop.f32.mrb[0].mxu0
      %v368 = vadd.f32 %v239, %v367
      %v369 = vpop.f32.mrb[0].mxu0
      %370 = vdwg.mxu0
      %v371 = vmul.f32 %v333, 0.1
      %v372 = vmul.f32 %v338, 0.1
      %v373 = vmul.f32 %v343, 0.1
      %v374 = vmul.f32 %v348, 0.1
      %v375 = vmul.f32 %v353, 0.1
      %v376 = vmul.f32 %v358, 0.1
      %v377 = vmul.f32 %v363, 0.1
      %v378 = vmul.f32 %v368, 0.1
      %v379 = vmax.f32 %v333, %v371
      %v380 = vmax.f32 %v338, %v372
      %v381 = vmax.f32 %v343, %v373
      %v382 = vmax.f32 %v348, %v374
      %v383 = vmax.f32 %v353, %v375
      %v384 = vmax.f32 %v358, %v376
      %v385 = vmax.f32 %v363, %v377
      %v386 = vmax.f32 %v368, %v378
      %vm387 = vcmask 31744
      %388 = vst.msk [vmem:[#allocation2] sm:$0xff] %vm387, 0.0
      %vm389 = vcmask 24576
      %390 = vst.msk [vmem:[#allocation2 + $0x8] sm:$0x1] %vm389, 0.0
      %391 = vst.msk [vmem:[#allocation2 + $0x49] sm:$0xff] %vm387, 0.0
      %392 = vst.msk [vmem:[#allocation2 + $0x51] sm:$0x1] %vm389, 0.0
      %393 = vst.msk [vmem:[#allocation2 + $0x9] sm:$0xff] %vm387, %v379
      %394 = vst.msk [vmem:[#allocation2 + $0x11] sm:$0xff] %vm387, %v380
      %395 = vst.msk [vmem:[#allocation2 + $0x19] sm:$0xff] %vm387, %v381
      %396 = vst.msk [vmem:[#allocation2 + $0x21] sm:$0xff] %vm387, %v382
      %397 = vst.msk [vmem:[#allocation2 + $0x29] sm:$0xff] %vm387, %v383
      %398 = vst.msk [vmem:[#allocation2 + $0x31] sm:$0xff] %vm387, %v384
      %399 = vst.msk [vmem:[#allocation2 + $0x39] sm:$0xff] %vm387, %v385
      %400 = vst.msk [vmem:[#allocation2 + $0x41] sm:$0xff] %vm387, %v386
      %v401 = vlaneseq
      %v402 = vshrl.u32 %v401, 7
      %v403 = vadd.s32 %v402, 8
      %v404 = vadd.s32 %v402, 16
      %v405 = vadd.s32 %v402, 24
      %v406 = vadd.s32 %v402, 32
      %v407 = vadd.s32 %v402, 40
      %v408 = vadd.s32 %v402, 48
      %v409 = vadd.s32 %v402, 56
      %vm410 = vcmp.lt.s32.totalorder %v402, 0
      %v411 = vsub.s32 0, %v402
      %v412 = vsel %vm410, %v411, %v402
      %v413 = vshrl.u32 %v412, 3
      %v414 = vand.u32 %v412, 7
      %v415 = vsub.s32 0, %v414
      %v416 = vsel %vm410, %v415, %v414
      %vm417 = vcmp.lt.s32.totalorder %v403, 0
      %v418 = vsub.s32 0, %v403
      %v419 = vsel %vm417, %v418, %v403
      %v420 = vshrl.u32 %v419, 3
      %v421 = vand.u32 %v419, 7
      %v422 = vsub.s32 0, %v421
      %v423 = vsel %vm417, %v422, %v421
      %vm424 = vcmp.lt.s32.totalorder %v404, 0
      %v425 = vsub.s32 0, %v404
      %v426 = vsel %vm424, %v425, %v404
      %v427 = vshrl.u32 %v426, 3
      %v428 = vand.u32 %v426, 7
      %v429 = vsub.s32 0, %v428
      %v430 = vsel %vm424, %v429, %v428
      %vm431 = vcmp.lt.s32.totalorder %v405, 0
      %v432 = vsub.s32 0, %v405
      %v433 = vsel %vm431, %v432, %v405
      %v434 = vshrl.u32 %v433, 3
      %v435 = vand.u32 %v433, 7
      %v436 = vsub.s32 0, %v435
      %v437 = vsel %vm431, %v436, %v435
      %vm438 = vcmp.lt.s32.totalorder %v406, 0
      %v439 = vsub.s32 0, %v406
      %v440 = vsel %vm438, %v439, %v406
      %v441 = vshrl.u32 %v440, 3
      %v442 = vand.u32 %v440, 7
      %v443 = vsub.s32 0, %v442
      %v444 = vsel %vm438, %v443, %v442
      %vm445 = vcmp.lt.s32.totalorder %v407, 0
      %v446 = vsub.s32 0, %v407
      %v447 = vsel %vm445, %v446, %v407
      %v448 = vshrl.u32 %v447, 3
      %v449 = vand.u32 %v447, 7
      %v450 = vsub.s32 0, %v449
      %v451 = vsel %vm445, %v450, %v449
      %vm452 = vcmp.lt.s32.totalorder %v408, 0
      %v453 = vsub.s32 0, %v408
      %v454 = vsel %vm452, %v453, %v408
      %v455 = vshrl.u32 %v454, 3
      %v456 = vand.u32 %v454, 7
      %v457 = vsub.s32 0, %v456
      %v458 = vsel %vm452, %v457, %v456
      %vm459 = vcmp.lt.s32.totalorder %v409, 0
      %v460 = vsub.s32 0, %v409
      %v461 = vsel %vm459, %v460, %v409
      %v462 = vshrl.u32 %v461, 3
      %v463 = vand.u32 %v461, 7
      %v464 = vsub.s32 0, %v463
      %v465 = vsel %vm459, %v464, %v463
      %vm466 = vcmp.ne.s32.totalorder %v416, 0
      %vm467 = vcmp.ne.s32.totalorder %v423, 0
      %vm468 = vcmp.ne.s32.totalorder %v430, 0
      %vm469 = vcmp.ne.s32.totalorder %v437, 0
      %vm470 = vcmp.ne.s32.totalorder %v444, 0
      %vm471 = vcmp.ne.s32.totalorder %v451, 0
      %vm472 = vcmp.ne.s32.totalorder %v458, 0
      %vm473 = vcmp.ne.s32.totalorder %v465, 0
      %vm474 = vcmp.lt.s32.totalorder %v416, 0
      %vm475 = vcmp.lt.s32.totalorder %v423, 0
      %vm476 = vcmp.lt.s32.totalorder %v430, 0
      %vm477 = vcmp.lt.s32.totalorder %v437, 0
      %vm478 = vcmp.lt.s32.totalorder %v444, 0
      %vm479 = vcmp.lt.s32.totalorder %v451, 0
      %vm480 = vcmp.lt.s32.totalorder %v458, 0
      %vm481 = vcmp.lt.s32.totalorder %v465, 0
      %vm482 = vmand %vm474, %vm466
      %vm483 = vmand %vm475, %vm467
      %vm484 = vmand %vm476, %vm468
      %vm485 = vmand %vm477, %vm469
      %vm486 = vmand %vm478, %vm470
      %vm487 = vmand %vm479, %vm471
      %vm488 = vmand %vm480, %vm472
      %vm489 = vmand %vm481, %vm473
      %v490 = vadd.s32 %v416, 8
      %v491 = vadd.s32 %v423, 8
      %v492 = vadd.s32 %v430, 8
      %v493 = vadd.s32 %v437, 8
      %v494 = vadd.s32 %v444, 8
      %v495 = vadd.s32 %v451, 8
      %v496 = vadd.s32 %v458, 8
      %v497 = vadd.s32 %v465, 8
      %v498 = vsel %vm482, %v490, %v416
      %v499 = vsel %vm483, %v491, %v423
      %v500 = vsel %vm484, %v492, %v430
      %v501 = vsel %vm485, %v493, %v437
      %v502 = vsel %vm486, %v494, %v444
      %v503 = vsel %vm487, %v495, %v451
      %v504 = vsel %vm488, %v496, %v458
      %v505 = vsel %vm489, %v497, %v465
      %v506 = vld [vmem:[#allocation2] sm:$0xff]
      %v507 = vld [vmem:[#allocation2 + $0x8] sm:$0xff]
      %v508 = vld [vmem:[#allocation2 + $0x10] sm:$0xff]
      %v509 = vld [vmem:[#allocation2 + $0x18] sm:$0xff]
      %v510 = vld [vmem:[#allocation2 + $0x20] sm:$0xff]
      %v511 = vld [vmem:[#allocation2 + $0x28] sm:$0xff]
      %v512 = vld [vmem:[#allocation2 + $0x30] sm:$0xff]
      %v513 = vld [vmem:[#allocation2 + $0x38] sm:$0xff]
      %vm514 = vcmp.ge.s32.totalorder %v498, 1
      %vm515 = vcmp.ge.s32.totalorder %v499, 1
      %vm516 = vcmp.ge.s32.totalorder %v500, 1
      %vm517 = vcmp.ge.s32.totalorder %v501, 1
      %vm518 = vcmp.ge.s32.totalorder %v502, 1
      %vm519 = vcmp.ge.s32.totalorder %v503, 1
      %vm520 = vcmp.ge.s32.totalorder %v504, 1
      %vm521 = vcmp.ge.s32.totalorder %v505, 1
      %v522 = vsel %vm514, 1, 0
      %v523 = vsel %vm515, 1, 0
      %v524 = vsel %vm516, 1, 0
      %v525 = vsel %vm517, 1, 0
      %v526 = vsel %vm518, 1, 0
      %v527 = vsel %vm519, 1, 0
      %v528 = vsel %vm520, 1, 0
      %v529 = vsel %vm521, 1, 0
      %vm530 = vcmp.eq.s32.totalorder %v522, 1
      %vm531 = vcmp.eq.s32.totalorder %v523, 1
      %vm532 = vcmp.eq.s32.totalorder %v524, 1
      %vm533 = vcmp.eq.s32.totalorder %v525, 1
      %vm534 = vcmp.eq.s32.totalorder %v526, 1
      %vm535 = vcmp.eq.s32.totalorder %v527, 1
      %vm536 = vcmp.eq.s32.totalorder %v528, 1
      %vm537 = vcmp.eq.s32.totalorder %v529, 1
      %v538 = vsel %vm530, %v506, 0.0
      %v539 = vsel %vm531, %v507, 0.0
      %v540 = vsel %vm532, %v508, 0.0
      %v541 = vsel %vm533, %v509, 0.0
      %v542 = vsel %vm534, %v510, 0.0
      %v543 = vsel %vm535, %v511, 0.0
      %v544 = vsel %vm536, %v512, 0.0
      %v545 = vsel %vm537, %v513, 0.0
      %v546 = vld [vmem:[#allocation2 + $0x1] sm:$0xff]
      %v547 = vld [vmem:[#allocation2 + $0x9] sm:$0xff]
      %v548 = vld [vmem:[#allocation2 + $0x11] sm:$0xff]
      %v549 = vld [vmem:[#allocation2 + $0x19] sm:$0xff]
      %v550 = vld [vmem:[#allocation2 + $0x21] sm:$0xff]
      %v551 = vld [vmem:[#allocation2 + $0x29] sm:$0xff]
      %v552 = vld [vmem:[#allocation2 + $0x31] sm:$0xff]
      %v553 = vld [vmem:[#allocation2 + $0x39] sm:$0xff]
      %v554 = vld [vmem:[#allocation2 + $0x2] sm:$0xff]
      %v555 = vld [vmem:[#allocation2 + $0xa] sm:$0xff]
      %v556 = vld [vmem:[#allocation2 + $0x12] sm:$0xff]
      %v557 = vld [vmem:[#allocation2 + $0x1a] sm:$0xff]
      %v558 = vld [vmem:[#allocation2 + $0x22] sm:$0xff]
      %v559 = vld [vmem:[#allocation2 + $0x2a] sm:$0xff]
      %v560 = vld [vmem:[#allocation2 + $0x32] sm:$0xff]
      %v561 = vld [vmem:[#allocation2 + $0x3a] sm:$0xff]
      %vm562 = vcmp.lt.s32.totalorder %v498, 7
      %vm563 = vcmp.lt.s32.totalorder %v499, 7
      %vm564 = vcmp.lt.s32.totalorder %v500, 7
      %vm565 = vcmp.lt.s32.totalorder %v501, 7
      %vm566 = vcmp.lt.s32.totalorder %v502, 7
      %vm567 = vcmp.lt.s32.totalorder %v503, 7
      %vm568 = vcmp.lt.s32.totalorder %v504, 7
      %vm569 = vcmp.lt.s32.totalorder %v505, 7
      %v570 = vsel %vm562, 1, 0
      %v571 = vsel %vm563, 1, 0
      %v572 = vsel %vm564, 1, 0
      %v573 = vsel %vm565, 1, 0
      %v574 = vsel %vm566, 1, 0
      %v575 = vsel %vm567, 1, 0
      %v576 = vsel %vm568, 1, 0
      %v577 = vsel %vm569, 1, 0
      %vm578 = vcmp.eq.s32.totalorder %v570, 1
      %vm579 = vcmp.eq.s32.totalorder %v571, 1
      %vm580 = vcmp.eq.s32.totalorder %v572, 1
      %vm581 = vcmp.eq.s32.totalorder %v573, 1
      %vm582 = vcmp.eq.s32.totalorder %v574, 1
      %vm583 = vcmp.eq.s32.totalorder %v575, 1
      %vm584 = vcmp.eq.s32.totalorder %v576, 1
      %vm585 = vcmp.eq.s32.totalorder %v577, 1
      %v586 = vsel %vm578, %v554, 0.0
      %v587 = vsel %vm579, %v555, 0.0
      %v588 = vsel %vm580, %v556, 0.0
      %v589 = vsel %vm581, %v557, 0.0
      %v590 = vsel %vm582, %v558, 0.0
      %v591 = vsel %vm583, %v559, 0.0
      %v592 = vsel %vm584, %v560, 0.0
      %v593 = vsel %vm585, %v561, 0.0
      %v594 = vld [vmem:[#allocation2 + $0x40] sm:$0xff]
      %v595 = vsel %vm530, %v507, 0.0
      %v596 = vsel %vm531, %v508, 0.0
      %v597 = vsel %vm532, %v509, 0.0
      %v598 = vsel %vm533, %v510, 0.0
      %v599 = vsel %vm534, %v511, 0.0
      %v600 = vsel %vm535, %v512, 0.0
      %v601 = vsel %vm536, %v513, 0.0
      %v602 = vsel %vm537, %v594, 0.0
      %v603 = vld [vmem:[#allocation2 + $0x41] sm:$0xff]
      %v604 = vld [vmem:[#allocation2 + $0x42] sm:$0xff]
      %v605 = vsel %vm578, %v555, 0.0
      %v606 = vsel %vm579, %v556, 0.0
      %v607 = vsel %vm580, %v557, 0.0
      %v608 = vsel %vm581, %v558, 0.0
      %v609 = vsel %vm582, %v559, 0.0
      %v610 = vsel %vm583, %v560, 0.0
      %v611 = vsel %vm584, %v561, 0.0
      %v612 = vsel %vm585, %v604, 0.0
      %v613 = vld [vmem:[#allocation2 + $0x48] sm:$0xff]
      %v614 = vsel %vm530, %v508, 0.0
      %v615 = vsel %vm531, %v509, 0.0
      %v616 = vsel %vm532, %v510, 0.0
      %v617 = vsel %vm533, %v511, 0.0
      %v618 = vsel %vm534, %v512, 0.0
      %v619 = vsel %vm535, %v513, 0.0
      %v620 = vsel %vm536, %v594, 0.0
      %v621 = vsel %vm537, %v613, 0.0
      %v622 = vld [vmem:[#allocation2 + $0x49] sm:$0xff]
      %v623 = vld [vmem:[#allocation2 + $0x4a] sm:$0xff]
      %v624 = vsel %vm578, %v556, 0.0
      %v625 = vsel %vm579, %v557, 0.0
      %v626 = vsel %vm580, %v558, 0.0
      %v627 = vsel %vm581, %v559, 0.0
      %v628 = vsel %vm582, %v560, 0.0
      %v629 = vsel %vm583, %v561, 0.0
      %v630 = vsel %vm584, %v604, 0.0
      %v631 = vsel %vm585, %v623, 0.0
      %640 = vrot.lane.b32.xlu0 %v546, 4
      %v641 = vpop.permute.xlu0 %640
      %642 = vrot.lane.b32.xlu0 %v547, 4
      %v643 = vpop.permute.xlu0 %642
      %644 = vrot.lane.b32.xlu0 %v548, 4
      %v645 = vpop.permute.xlu0 %644
      %646 = vrot.lane.b32.xlu0 %v549, 4
      %v647 = vpop.permute.xlu0 %646
      %648 = vrot.lane.b32.xlu0 %v550, 4
      %v649 = vpop.permute.xlu0 %648
      %650 = vrot.lane.b32.xlu0 %v551, 4
      %v651 = vpop.permute.xlu0 %650
      %652 = vrot.lane.b32.xlu0 %v552, 4
      %v653 = vpop.permute.xlu0 %652
      %654 = vrot.lane.b32.xlu0 %v553, 4
      %v655 = vpop.permute.xlu0 %654
      %672 = vrot.lane.b32.xlu0 %v586, 8
      %v673 = vpop.permute.xlu0 %672
      %674 = vrot.lane.b32.xlu0 %v587, 8
      %v675 = vpop.permute.xlu0 %674
      %676 = vrot.lane.b32.xlu0 %v588, 8
      %v677 = vpop.permute.xlu0 %676
      %678 = vrot.lane.b32.xlu0 %v589, 8
      %v679 = vpop.permute.xlu0 %678
      %680 = vrot.lane.b32.xlu0 %v590, 8
      %v681 = vpop.permute.xlu0 %680
      %682 = vrot.lane.b32.xlu0 %v591, 8
      %v683 = vpop.permute.xlu0 %682
      %684 = vrot.lane.b32.xlu0 %v592, 8
      %v685 = vpop.permute.xlu0 %684
      %686 = vrot.lane.b32.xlu0 %v593, 8
      %v687 = vpop.permute.xlu0 %686
      %704 = vrot.lane.b32.xlu0 %v595, 12
      %v705 = vpop.permute.xlu0 %704
      %706 = vrot.lane.b32.xlu0 %v596, 12
      %v707 = vpop.permute.xlu0 %706
      %708 = vrot.lane.b32.xlu0 %v597, 12
      %v709 = vpop.permute.xlu0 %708
      %710 = vrot.lane.b32.xlu0 %v598, 12
      %v711 = vpop.permute.xlu0 %710
      %712 = vrot.lane.b32.xlu0 %v599, 12
      %v713 = vpop.permute.xlu0 %712
      %714 = vrot.lane.b32.xlu0 %v600, 12
      %v715 = vpop.permute.xlu0 %714
      %716 = vrot.lane.b32.xlu0 %v601, 12
      %v717 = vpop.permute.xlu0 %716
      %718 = vrot.lane.b32.xlu0 %v602, 12
      %v719 = vpop.permute.xlu0 %718
      %729 = vrot.lane.b32.xlu0 %v547, 16
      %v730 = vpop.permute.xlu0 %729
      %731 = vrot.lane.b32.xlu0 %v548, 16
      %v732 = vpop.permute.xlu0 %731
      %733 = vrot.lane.b32.xlu0 %v549, 16
      %v734 = vpop.permute.xlu0 %733
      %735 = vrot.lane.b32.xlu0 %v550, 16
      %v736 = vpop.permute.xlu0 %735
      %737 = vrot.lane.b32.xlu0 %v551, 16
      %v738 = vpop.permute.xlu0 %737
      %739 = vrot.lane.b32.xlu0 %v552, 16
      %v740 = vpop.permute.xlu0 %739
      %741 = vrot.lane.b32.xlu0 %v553, 16
      %v742 = vpop.permute.xlu0 %741
      %743 = vrot.lane.b32.xlu0 %v603, 16
      %v744 = vpop.permute.xlu0 %743
      %761 = vrot.lane.b32.xlu0 %v605, 20
      %v762 = vpop.permute.xlu0 %761
      %763 = vrot.lane.b32.xlu0 %v606, 20
      %v764 = vpop.permute.xlu0 %763
      %765 = vrot.lane.b32.xlu0 %v607, 20
      %v766 = vpop.permute.xlu0 %765
      %767 = vrot.lane.b32.xlu0 %v608, 20
      %v768 = vpop.permute.xlu0 %767
      %769 = vrot.lane.b32.xlu0 %v609, 20
      %v770 = vpop.permute.xlu0 %769
      %771 = vrot.lane.b32.xlu0 %v610, 20
      %v772 = vpop.permute.xlu0 %771
      %773 = vrot.lane.b32.xlu0 %v611, 20
      %v774 = vpop.permute.xlu0 %773
      %775 = vrot.lane.b32.xlu0 %v612, 20
      %v776 = vpop.permute.xlu0 %775
      %793 = vrot.lane.b32.xlu0 %v614, 24
      %v794 = vpop.permute.xlu0 %793
      %795 = vrot.lane.b32.xlu0 %v615, 24
      %v796 = vpop.permute.xlu0 %795
      %797 = vrot.lane.b32.xlu0 %v616, 24
      %v798 = vpop.permute.xlu0 %797
      %799 = vrot.lane.b32.xlu0 %v617, 24
      %v800 = vpop.permute.xlu0 %799
      %801 = vrot.lane.b32.xlu0 %v618, 24
      %v802 = vpop.permute.xlu0 %801
      %803 = vrot.lane.b32.xlu0 %v619, 24
      %v804 = vpop.permute.xlu0 %803
      %805 = vrot.lane.b32.xlu0 %v620, 24
      %v806 = vpop.permute.xlu0 %805
      %807 = vrot.lane.b32.xlu0 %v621, 24
      %v808 = vpop.permute.xlu0 %807
      %818 = vrot.lane.b32.xlu0 %v548, 28
      %v819 = vpop.permute.xlu0 %818
      %820 = vrot.lane.b32.xlu0 %v549, 28
      %v821 = vpop.permute.xlu0 %820
      %822 = vrot.lane.b32.xlu0 %v550, 28
      %v823 = vpop.permute.xlu0 %822
      %824 = vrot.lane.b32.xlu0 %v551, 28
      %v825 = vpop.permute.xlu0 %824
      %826 = vrot.lane.b32.xlu0 %v552, 28
      %v827 = vpop.permute.xlu0 %826
      %828 = vrot.lane.b32.xlu0 %v553, 28
      %v829 = vpop.permute.xlu0 %828
      %830 = vrot.lane.b32.xlu0 %v603, 28
      %v831 = vpop.permute.xlu0 %830
      %832 = vrot.lane.b32.xlu0 %v622, 28
      %v833 = vpop.permute.xlu0 %832
      %850 = vrot.lane.b32.xlu0 %v624, 32
      %v851 = vpop.permute.xlu0 %850
      %852 = vrot.lane.b32.xlu0 %v625, 32
      %v853 = vpop.permute.xlu0 %852
      %854 = vrot.lane.b32.xlu0 %v626, 32
      %v855 = vpop.permute.xlu0 %854
      %856 = vrot.lane.b32.xlu0 %v627, 32
      %v857 = vpop.permute.xlu0 %856
      %858 = vrot.lane.b32.xlu0 %v628, 32
      %v859 = vpop.permute.xlu0 %858
      %860 = vrot.lane.b32.xlu0 %v629, 32
      %v861 = vpop.permute.xlu0 %860
      %862 = vrot.lane.b32.xlu0 %v630, 32
      %v863 = vpop.permute.xlu0 %862
      %864 = vrot.lane.b32.xlu0 %v631, 32
      %v865 = vpop.permute.xlu0 %864
      %v874 = vsel %vm387, %v538, %v641
      %v875 = vsel %vm387, %v539, %v643
      %v876 = vsel %vm387, %v540, %v645
      %v877 = vsel %vm387, %v541, %v647
      %v878 = vsel %vm387, %v542, %v649
      %v879 = vsel %vm387, %v543, %v651
      %v880 = vsel %vm387, %v544, %v653
      %v881 = vsel %vm387, %v545, %v655
      %v882 = vsel %vm241, %v874, %v673
      %v883 = vsel %vm241, %v875, %v675
      %v884 = vsel %vm241, %v876, %v677
      %v885 = vsel %vm241, %v877, %v679
      %v886 = vsel %vm241, %v878, %v681
      %v887 = vsel %vm241, %v879, %v683
      %v888 = vsel %vm241, %v880, %v685
      %v889 = vsel %vm241, %v881, %v687
      %vm890 = vcmask 97280
      %v891 = vsel %vm890, %v882, %v705
      %v892 = vsel %vm890, %v883, %v707
      %v893 = vsel %vm890, %v884, %v709
      %v894 = vsel %vm890, %v885, %v711
      %v895 = vsel %vm890, %v886, %v713
      %v896 = vsel %vm890, %v887, %v715
      %v897 = vsel %vm890, %v888, %v717
      %v898 = vsel %vm890, %v889, %v719
      %vm899 = vcmask 130048
      %v900 = vsel %vm899, %v891, %v730
      %v901 = vsel %vm899, %v892, %v732
      %v902 = vsel %vm899, %v893, %v734
      %v903 = vsel %vm899, %v894, %v736
      %v904 = vsel %vm899, %v895, %v738
      %v905 = vsel %vm899, %v896, %v740
      %v906 = vsel %vm899, %v897, %v742
      %v907 = vsel %vm899, %v898, %v744
      %vm908 = vcmask 162816
      %v909 = vsel %vm908, %v900, %v762
      %v910 = vsel %vm908, %v901, %v764
      %v911 = vsel %vm908, %v902, %v766
      %v912 = vsel %vm908, %v903, %v768
      %v913 = vsel %vm908, %v904, %v770
      %v914 = vsel %vm908, %v905, %v772
      %v915 = vsel %vm908, %v906, %v774
      %v916 = vsel %vm908, %v907, %v776
      %vm917 = vcmask 195584
      %v918 = vsel %vm917, %v909, %v794
      %v919 = vsel %vm917, %v910, %v796
      %v920 = vsel %vm917, %v911, %v798
      %v921 = vsel %vm917, %v912, %v800
      %v922 = vsel %vm917, %v913, %v802
      %v923 = vsel %vm917, %v914, %v804
      %v924 = vsel %vm917, %v915, %v806
      %v925 = vsel %vm917, %v916, %v808
      %vm926 = vcmask 228352
      %v927 = vsel %vm926, %v918, %v819
      %v928 = vsel %vm926, %v919, %v821
      %v929 = vsel %vm926, %v920, %v823
      %v930 = vsel %vm926, %v921, %v825
      %v931 = vsel %vm926, %v922, %v827
      %v932 = vsel %vm926, %v923, %v829
      %v933 = vsel %vm926, %v924, %v831
      %v934 = vsel %vm926, %v925, %v833
      %vm935 = vcmask 261120
      %v936 = vsel %vm935, %v927, %v851
      %v937 = vsel %vm935, %v928, %v853
      %v938 = vsel %vm935, %v929, %v855
      %v939 = vsel %vm935, %v930, %v857
      %v940 = vsel %vm935, %v931, %v859
      %v941 = vsel %vm935, %v932, %v861
      %v942 = vsel %vm935, %v933, %v863
      %v943 = vsel %vm935, %v934, %v865
      %v944 = vld [vmem:[%s3] sm:$0xff]
      %v945 = vld [vmem:[%s3 + $0x8] sm:$0xff]
      %v946 = vld [vmem:[%s3 + $0x10] sm:$0xff]
      %v947 = vld [vmem:[%s3 + $0x18] sm:$0xff]
      %v948 = vld [vmem:[%s3 + $0x20] sm:$0xf]
      %v949 = vld [vmem:[%s4] sm:$0x1]
      %v951 = vlaneseq
      %v952 = vshrl.u32 %v951, 7
      %v953 = vsub.s32 0, %v952
      %v954 = vrot.slane %v949, %v953
      %vm956 = vcmask 293888
      %v958 = vsel %vm956, %v936, 0
      %v961 = vsel %vm956, %v937, 0
      %v964 = vsel %vm956, %v938, 0
      %v967 = vsel %vm956, %v939, 0
      %v970 = vsel %vm956, %v940, 0
      %v973 = vsel %vm956, %v941, 0
      %v976 = vsel %vm956, %v942, 0
      %v979 = vsel %vm956, %v943, 0
      %vm981 = vcmask 1043456
      %v983 = vsel %vm981, %v948, 0
      %985 = vmatprep.subr.mxu0 0.0
      %986 = vmatpush1.msra.mxu0 %v944
      %987 = vmatprep.subr.mxu0 0.0
      %988 = vmatpush1.msra.mxu0 %v945
      %989 = vmatprep.subr.mxu0 0.0
      %990 = vmatpush1.msra.mxu0 %v946
      %991 = vmatprep.subr.mxu0 0.0
      %992 = vmatpush1.msra.mxu0 %v947
      %993 = vmatprep.subr.mxu0 0.0
      %994 = vmatpush1.msra.mxu0 %v983
      %995 = vmatprep.subr.mxu0 0.0
      %996 = vmatpush1.msra.mxu0 0.0
      %997 = vmatprep.subr.mxu0 0.0
      %998 = vmatpush1.msra.mxu0 0.0
      %999 = vmatprep.subr.mxu0 0.0
      %1000 = vmatpush1.msra.mxu0 0.0
      %1001 = vmatprep.subr.mxu0 0.0
      %1002 = vmatpush1.msra.mxu0 0.0
      %1003 = vmatprep.subr.mxu0 0.0
      %1004 = vmatpush1.msra.mxu0 0.0
      %1005 = vmatprep.subr.mxu0 0.0
      %1006 = vmatpush1.msra.mxu0 0.0
      %1007 = vmatprep.subr.mxu0 0.0
      %1008 = vmatpush1.msra.mxu0 0.0
      %1009 = vmatprep.subr.mxu0 0.0
      %1010 = vmatpush1.msra.mxu0 0.0
      %1011 = vmatprep.subr.mxu0 0.0
      %1012 = vmatpush1.msra.mxu0 0.0
      %1013 = vmatprep.subr.mxu0 0.0
      %1014 = vmatpush1.msra.mxu0 0.0
      %1015 = vmatprep.subr.mxu0 0.0
      %1016 = vmatpush1.msra.mxu0 0.0
      %1017 = vmatprep.subr.mxu0 0.0
      %1018 = vmatpush1.msra.mxu0 0.0
      %1019 = vmatprep.subr.mxu0 0.0
      %1020 = vmatpush1.msra.mxu0 0.0
      %1021 = vmatprep.subr.mxu0 0.0
      %1022 = vmatpush1.msra.mxu0 0.0
      %1023 = vmatprep.subr.mxu0 0.0
      %1024 = vmatpush1.msra.mxu0 0.0
      %1025 = vmatprep.subr.mxu0 0.0
      %1026 = vmatpush1.msra.mxu0 0.0
      %1027 = vmatprep.subr.mxu0 0.0
      %1028 = vmatpush1.msra.mxu0 0.0
      %1029 = vmatprep.subr.mxu0 0.0
      %1030 = vmatpush1.msra.mxu0 0.0
      %1031 = vmatprep.subr.mxu0 0.0
      %1032 = vmatpush1.msra.mxu0 0.0
      %1033 = vmatprep.subr.mxu0 0.0
      %1034 = vmatpush1.msra.mxu0 0.0
      %1035 = vmatprep.subr.mxu0 0.0
      %1036 = vmatpush1.msra.mxu0 0.0
      %1037 = vmatprep.subr.mxu0 0.0
      %1038 = vmatpush1.msra.mxu0 0.0
      %1039 = vmatprep.subr.mxu0 0.0
      %1040 = vmatpush1.msra.mxu0 0.0
      %1041 = vmatprep.subr.mxu0 0.0
      %1042 = vmatpush1.msra.mxu0 0.0
      %1043 = vmatprep.subr.mxu0 0.0
      %1044 = vmatpush1.msra.mxu0 0.0
      %1045 = vmatprep.subr.mxu0 0.0
      %1046 = vmatpush1.msra.mxu0 0.0
      %1047 = vmatprep.subr.mxu0 0.0
      %1048 = vmatpush1.msra.mxu0 0.0
      %1049 = vmatprep.mubr.f32.mxu0 0.0
      %1050 = vmatmul.mubr.f32.gmra.mrb[0].mxu0 %v958
      %v1051 = vpop.f32.mrb[0].mxu0
      %v1052 = vadd.f32 %v954, %v1051
      %v1053 = vpop.f32.mrb[0].mxu0
      %1054 = vmatprep.mubr.f32.mxu0 0.0
      %1055 = vmatmul.mubr.f32.gmra.mrb[0].mxu0 %v961
      %v1056 = vpop.f32.mrb[0].mxu0
      %v1057 = vadd.f32 %v954, %v1056
      %v1058 = vpop.f32.mrb[0].mxu0
      %1059 = vmatprep.mubr.f32.mxu0 0.0
      %1060 = vmatmul.mubr.f32.gmra.mrb[0].mxu0 %v964
      %v1061 = vpop.f32.mrb[0].mxu0
      %v1062 = vadd.f32 %v954, %v1061
      %v1063 = vpop.f32.mrb[0].mxu0
      %1064 = vmatprep.mubr.f32.mxu0 0.0
      %1065 = vmatmul.mubr.f32.gmra.mrb[0].mxu0 %v967
      %v1066 = vpop.f32.mrb[0].mxu0
      %v1067 = vadd.f32 %v954, %v1066
      %v1068 = vpop.f32.mrb[0].mxu0
      %1069 = vmatprep.mubr.f32.mxu0 0.0
      %1070 = vmatmul.mubr.f32.gmra.mrb[0].mxu0 %v970
      %v1071 = vpop.f32.mrb[0].mxu0
      %v1072 = vadd.f32 %v954, %v1071
      %v1073 = vpop.f32.mrb[0].mxu0
      %1074 = vmatprep.mubr.f32.mxu0 0.0
      %1075 = vmatmul.mubr.f32.gmra.mrb[0].mxu0 %v973
      %v1076 = vpop.f32.mrb[0].mxu0
      %v1077 = vadd.f32 %v954, %v1076
      %v1078 = vpop.f32.mrb[0].mxu0
      %1079 = vmatprep.mubr.f32.mxu0 0.0
      %1080 = vmatmul.mubr.f32.gmra.mrb[0].mxu0 %v976
      %v1081 = vpop.f32.mrb[0].mxu0
      %v1082 = vadd.f32 %v954, %v1081
      %v1083 = vpop.f32.mrb[0].mxu0
      %1084 = vmatprep.mubr.f32.mxu0 0.0
      %1085 = vmatmul.mubr.f32.gmra.mrb[0].mxu0 %v979
      %v1086 = vpop.f32.mrb[0].mxu0
      %v1087 = vadd.f32 %v954, %v1086
      %v1088 = vpop.f32.mrb[0].mxu0
      %1089 = vdwg.mxu0
      %v1090 = vmul.f32 %v1052, 0.1
      %v1091 = vmul.f32 %v1057, 0.1
      %v1092 = vmul.f32 %v1062, 0.1
      %v1093 = vmul.f32 %v1067, 0.1
      %v1094 = vmul.f32 %v1072, 0.1
      %v1095 = vmul.f32 %v1077, 0.1
      %v1096 = vmul.f32 %v1082, 0.1
      %v1097 = vmul.f32 %v1087, 0.1
      %v1098 = vmax.f32 %v1052, %v1090
      %v1099 = vmax.f32 %v1057, %v1091
      %v1100 = vmax.f32 %v1062, %v1092
      %v1101 = vmax.f32 %v1067, %v1093
      %v1102 = vmax.f32 %v1072, %v1094
      %v1103 = vmax.f32 %v1077, %v1095
      %v1104 = vmax.f32 %v1082, %v1096
      %v1105 = vmax.f32 %v1087, %v1097
      %v1106 = vadd.f32 %v225, %v1098
      %v1107 = vadd.f32 %v226, %v1099
      %v1108 = vadd.f32 %v227, %v1100
      %v1109 = vadd.f32 %v228, %v1101
      %v1110 = vadd.f32 %v229, %v1102
      %v1111 = vadd.f32 %v230, %v1103
      %v1112 = vadd.f32 %v231, %v1104
      %v1113 = vadd.f32 %v232, %v1105
      %1114 = vst.msk [vmem:[%s224] sm:$0xff] %vm241, %v1106
      %1115 = vst.msk [vmem:[%s224 + $0x8] sm:$0xff] %vm241, %v1107
      %1116 = vst.msk [vmem:[%s224 + $0x10] sm:$0xff] %vm241, %v1108
      %1117 = vst.msk [vmem:[%s224 + $0x18] sm:$0xff] %vm241, %v1109
      %1118 = vst.msk [vmem:[%s224 + $0x20] sm:$0xff] %vm241, %v1110
      %1119 = vst.msk [vmem:[%s224 + $0x28] sm:$0xff] %vm241, %v1111
      %1120 = vst.msk [vmem:[%s224 + $0x30] sm:$0xff] %vm241, %v1112
      %1121 = vst.msk [vmem:[%s224 + $0x38] sm:$0xff] %vm241, %v1113
      %p1122 = scmp.lt.s32.totalorder %s16, 1
      %s1123 = scalar_select %p1122, %s16, 1
      %s1124 = smul.addr %s1123, 8
      %s1125 = smul.addr %s1124, 8
      %s1126 = scalar_lea.vmem %s5, %s1125
      // Predicated region
      $region41: #{stage_forward_pallas.4} parent=39 // pred_check
        %p1127 = pneg %p144
      $region42: #{stage_forward_pallas.4} parent=39 // pred_check_branch
        %1129 = sbr.rel (%p1127) target = $region44
      $region43: #{stage_forward_pallas.4} parent=39 // pred_region
        _
      $region44: #{stage_forward_pallas.4} parent=39 // pred_fallthru
        _
    $region40: #{stage_forward_pallas.4} parent=5 // pred_fallthru
      _
    %p1130 = scmp.le.s32.totalorder 2, %s11
    // Predicated region
    $region45: #{stage_forward_pallas.4} parent=5 // pred_check
      %p1131 = pneg %p1130
    $region46: #{stage_forward_pallas.4} parent=5 // pred_check_branch
      %1133 = sbr.rel (%p1131) target = $region48
    $region47: #{stage_forward_pallas.4} parent=5 // pred_region
      %s1134 = ssub.s32 %s11, 2
      // Predicated region
      $region49: #{stage_forward_pallas.4} parent=47 // pred_check
        %p1135 = pneg %p150
      $region50: #{stage_forward_pallas.4} parent=47 // pred_check_branch
        %1137 = sbr.rel (%p1135) target = $region52
      $region51: #{stage_forward_pallas.4} parent=47 // pred_region
        %p1138 = scmp.lt.s32.totalorder %s17, 1
        %s1139 = scalar_select %p1138, %s17, 1
        %s1140 = smul.addr %s1139, 8
        %s1141 = smul.addr %s1140, 8
        %s1142 = scalar_lea.vmem %s5, %s1141
      $region52: #{stage_forward_pallas.4} parent=47 // pred_fallthru
        _
    $region48: #{stage_forward_pallas.4} parent=5 // pred_fallthru
      _
  $region6: #{stage_forward_pallas.4} parent=0 // loop_footer
    %s15 = sadd.s32 1, %s11
  $region7: #{stage_forward_pallas.4} parent=0 // loop_footer_branch
    %10 = sbr.rel target = $region3
  $region8: #{stage_forward_pallas.4} parent=0 // loop_exit
    _

// kernel: stage_forward_pallas.5
$region0: #{stage_forward_pallas.5}
  #allocation0 [shape = 'u32[]', space=smem, size = 0x4, offset = 0x4, fixed_abs, tag = 'smem constant byte address 0x4 - core index']
  #allocation1 [shape = 'u32[144,128]{1,0:T(1,128)}', space=vmem, size = 0x12000, scoped, tag = 'internal scratch']
  #allocation2 [shape = 'f32[82,4]{1,0:T(8,128)}', space=vmem, size = 0xb000, scoped, tag = 'scratch operand']
  %s0 = inlined_call_operand.vmem [shape: f32[2,64,8], index: 0, kind: input, shape index: {}]
  %s1 = inlined_call_operand.vmem [shape: f32[8,4], index: 1, kind: input, shape index: {}]
  %s2 = inlined_call_operand.vmem [shape: f32[1,4], index: 2, kind: input, shape index: {}]
  %s3 = inlined_call_operand.vmem [shape: f32[36,8], index: 3, kind: input, shape index: {}]
  %s4 = inlined_call_operand.vmem [shape: f32[1,8], index: 4, kind: input, shape index: {}]
  %s5 = inlined_call_operand.hbm [shape: f32[2,64,8], index: 5, kind: output, shape index: {}]
  %s6 = sld [smem:[#allocation0]]
  $region53: #{stage_forward_pallas.5} parent=0
    _
  %s8 = ssub.s32 1, %s6
  %s9 = scalar_select 0, %s8, %s6
  $region1: #{stage_forward_pallas.5} parent=0
    #allocation3 [shape = 'u8[65536]{0}', space=vmem, size = 0x10000, scoped, tag = 'output window, operand 0']
    #allocation4 [shape = 's32[2]{0}', space=sflag, size = 0x8, scoped, tag = 'scoped memory for stage_forward_pallas.5']
    %10 = vsyncpa [#allocation4], 0
    %s11 = scalar_lea.sflag [#allocation4], 1
    %12 = vsyncpa %s11, 0
    loop: start=0, step=1, limit=4
    $region2: #{stage_forward_pallas.5} parent=1 // loop_pre_header
      _
    $region3: #{stage_forward_pallas.5} parent=1 // loop_header
      %s14 = sphi 0, %s18
      %p15 = scmp.ge.s32.totalorder %s14, 4
      %s24 = sphi 0, %s26
      %s27 = sphi 0, %s24
      %s28 = sphi 0, %s27
      %s44 = sphi 0, %s28
      %s48 = sphi 0, %s48
      %s50 = sphi 0, %s48
      %s51 = sphi 0, %s50
      %s65 = sphi 0, %s51
      %s69 = sphi 0, %s69
      %s71 = sphi 0, %s69
      %s72 = sphi 0, %s71
      %s86 = sphi 0, %s72
      %s90 = sphi 0, %s90
      %s92 = sphi 0, %s90
      %s93 = sphi 0, %s92
      %s107 = sphi 0, %s93
      %s111 = sphi 0, %s111
      %s113 = sphi 0, %s111
      %s114 = sphi 0, %s113
      %s128 = sphi 0, %s114
      %s134 = sphi 0, %s136
      %s137 = sphi 0, %s134
      %s138 = sphi 0, %s137
      %s154 = sphi 0, %s138
    $region4: #{stage_forward_pallas.5} parent=1 // loop_header_branch
      %17 = sbr.rel (%p15) target = $region8
    $region5: #{stage_forward_pallas.5} parent=1 // loop_body
      %s19 = ssub.s32 %s14, 1
      %s20 = ssub.s32 %s14, 2
      %s21 = sadd.s32 %s14, 1
      %s22 = ssub.s32 %s14, %s21
      %p23 = scmp.eq.s32.totalorder %s22, 0
      %s25 = sadd.s32 %s24, 1
      %s26 = scalar_select %p23, %s24, %s25
      %p29 = pneg %p23
      %p30 = scmp.eq.s32.totalorder %s14, 1
      %p31 = por %p29, %p30
      %p32 = scmp.ne.s32.totalorder %s24, %s27
      %p33 = scmp.eq.s32.totalorder %s14, 0
      %p34 = por %p32, %p33
      %p35 = scmp.ne.s32.totalorder %s24, %s27
      %p36 = scmp.eq.s32.totalorder %s19, 1
      %p37 = por %p35, %p36
      %p38 = scmp.ne.s32.totalorder %s27, %s28
      %p39 = scmp.eq.s32.totalorder %s19, 0
      %p40 = por %p38, %p39
      %p41 = scmp.ne.s32.totalorder %s27, %s28
      %p42 = scmp.eq.s32.totalorder %s20, 1
      %p43 = por %p41, %p42
      %p45 = scmp.ne.s32.totalorder %s28, %s44
      %p46 = scmp.eq.s32.totalorder %s20, 0
      %p47 = por %p45, %p46
      %s49 = sadd.s32 %s48, 1
      %p52 = scmp.eq.s32.totalorder %s14, 1
      %p53 = scmp.ne.s32.totalorder %s48, %s50
      %p54 = scmp.eq.s32.totalorder %s14, 0
      %p55 = por %p53, %p54
      %p56 = scmp.ne.s32.totalorder %s48, %s50
      %p57 = scmp.eq.s32.totalorder %s19, 1
      %p58 = por %p56, %p57
      %p59 = scmp.ne.s32.totalorder %s50, %s51
      %p60 = scmp.eq.s32.totalorder %s19, 0
      %p61 = por %p59, %p60
      %p62 = scmp.ne.s32.totalorder %s50, %s51
      %p63 = scmp.eq.s32.totalorder %s20, 1
      %p64 = por %p62, %p63
      %p66 = scmp.ne.s32.totalorder %s51, %s65
      %p67 = scmp.eq.s32.totalorder %s20, 0
      %p68 = por %p66, %p67
      %s70 = sadd.s32 %s69, 1
      %p73 = scmp.eq.s32.totalorder %s14, 1
      %p74 = scmp.ne.s32.totalorder %s69, %s71
      %p75 = scmp.eq.s32.totalorder %s14, 0
      %p76 = por %p74, %p75
      %p77 = scmp.ne.s32.totalorder %s69, %s71
      %p78 = scmp.eq.s32.totalorder %s19, 1
      %p79 = por %p77, %p78
      %p80 = scmp.ne.s32.totalorder %s71, %s72
      %p81 = scmp.eq.s32.totalorder %s19, 0
      %p82 = por %p80, %p81
      %p83 = scmp.ne.s32.totalorder %s71, %s72
      %p84 = scmp.eq.s32.totalorder %s20, 1
      %p85 = por %p83, %p84
      %p87 = scmp.ne.s32.totalorder %s72, %s86
      %p88 = scmp.eq.s32.totalorder %s20, 0
      %p89 = por %p87, %p88
      %s91 = sadd.s32 %s90, 1
      %p94 = scmp.eq.s32.totalorder %s14, 1
      %p95 = scmp.ne.s32.totalorder %s90, %s92
      %p96 = scmp.eq.s32.totalorder %s14, 0
      %p97 = por %p95, %p96
      %p98 = scmp.ne.s32.totalorder %s90, %s92
      %p99 = scmp.eq.s32.totalorder %s19, 1
      %p100 = por %p98, %p99
      %p101 = scmp.ne.s32.totalorder %s92, %s93
      %p102 = scmp.eq.s32.totalorder %s19, 0
      %p103 = por %p101, %p102
      %p104 = scmp.ne.s32.totalorder %s92, %s93
      %p105 = scmp.eq.s32.totalorder %s20, 1
      %p106 = por %p104, %p105
      %p108 = scmp.ne.s32.totalorder %s93, %s107
      %p109 = scmp.eq.s32.totalorder %s20, 0
      %p110 = por %p108, %p109
      %s112 = sadd.s32 %s111, 1
      %p115 = scmp.eq.s32.totalorder %s14, 1
      %p116 = scmp.ne.s32.totalorder %s111, %s113
      %p117 = scmp.eq.s32.totalorder %s14, 0
      %p118 = por %p116, %p117
      %p119 = scmp.ne.s32.totalorder %s111, %s113
      %p120 = scmp.eq.s32.totalorder %s19, 1
      %p121 = por %p119, %p120
      %p122 = scmp.ne.s32.totalorder %s113, %s114
      %p123 = scmp.eq.s32.totalorder %s19, 0
      %p124 = por %p122, %p123
      %p125 = scmp.ne.s32.totalorder %s113, %s114
      %p126 = scmp.eq.s32.totalorder %s20, 1
      %p127 = por %p125, %p126
      %p129 = scmp.ne.s32.totalorder %s114, %s128
      %p130 = scmp.eq.s32.totalorder %s20, 0
      %p131 = por %p129, %p130
      %s132 = ssub.s32 %s14, %s21
      %p133 = scmp.eq.s32.totalorder %s132, 0
      %s135 = sadd.s32 %s134, 1
      %s136 = scalar_select %p133, %s134, %s135
      %p139 = pneg %p133
      %p140 = scmp.eq.s32.totalorder %s14, 1
      %p141 = por %p139, %p140
      %p142 = scmp.ne.s32.totalorder %s134, %s137
      %p143 = scmp.eq.s32.totalorder %s14, 0
      %p144 = por %p142, %p143
      %p145 = scmp.ne.s32.totalorder %s134, %s137
      %p146 = scmp.eq.s32.totalorder %s19, 1
      %p147 = por %p145, %p146
      %p148 = scmp.ne.s32.totalorder %s137, %s138
      %p149 = scmp.eq.s32.totalorder %s19, 0
      %p150 = por %p148, %p149
      %p151 = scmp.ne.s32.totalorder %s137, %s138
      %p152 = scmp.eq.s32.totalorder %s20, 1
      %p153 = por %p151, %p152
      %p155 = scmp.ne.s32.totalorder %s138, %s154
      %p156 = scmp.eq.s32.totalorder %s20, 0
      %p157 = por %p155, %p156
      %p158 = scmp.le.s32.totalorder 1, %s14
      %p159 = scmp.lt.s32.totalorder %s14, 3
      %p160 = pnand %p158, %p159
      %p161 = pneg %p160
      // Predicated region
      $region9: #{stage_forward_pallas.5} parent=5 // pred_check
        _
      $region10: #{stage_forward_pallas.5} parent=5 // pred_check_branch
        %163 = sbr.rel (%p160) target = $region12
      $region11: #{stage_forward_pallas.5} parent=5 // pred_region
        %s164 = ssub.s32 %s14, 1
        // Predicated region
        $region13: #{stage_forward_pallas.5} parent=11 // pred_check
          %p165 = pneg %p61
        $region14: #{stage_forward_pallas.5} parent=11 // pred_check_branch
          %167 = sbr.rel (%p165) target = $region16
        $region15: #{stage_forward_pallas.5} parent=11 // pred_region
          _
        $region16: #{stage_forward_pallas.5} parent=11 // pred_fallthru
          _
        // Predicated region
        $region17: #{stage_forward_pallas.5} parent=11 // pred_check
          %p168 = pneg %p82
        $region18: #{stage_forward_pallas.5} parent=11 // pred_check_branch
          %170 = sbr.rel (%p168) target = $region20
        $region19: #{stage_forward_pallas.5} parent=11 // pred_region
          _
        $region20: #{stage_forward_pallas.5} parent=11 // pred_fallthru
          _
        // Predicated region
        $region21: #{stage_forward_pallas.5} parent=11 // pred_check
          %p171 = pneg %p103
        $region22: #{stage_forward_pallas.5} parent=11 // pred_check_branch
          %173 = sbr.rel (%p171) target = $region24
        $region23: #{stage_forward_pallas.5} parent=11 // pred_region
          _
        $region24: #{stage_forward_pallas.5} parent=11 // pred_fallthru
          _
        // Predicated region
        $region25: #{stage_forward_pallas.5} parent=11 // pred_check
          %p174 = pneg %p124
        $region26: #{stage_forward_pallas.5} parent=11 // pred_check_branch
          %176 = sbr.rel (%p174) target = $region28
        $region27: #{stage_forward_pallas.5} parent=11 // pred_region
          _
        $region28: #{stage_forward_pallas.5} parent=11 // pred_fallthru
          _
      $region12: #{stage_forward_pallas.5} parent=5 // pred_fallthru
        _
      %p177 = scmp.lt.s32.totalorder %s14, 2
      // Predicated region
      $region29: #{stage_forward_pallas.5} parent=5 // pred_check
        %p178 = pneg %p177
      $region30: #{stage_forward_pallas.5} parent=5 // pred_check_branch
        %180 = sbr.rel (%p178) target = $region32
      $region31: #{stage_forward_pallas.5} parent=5 // pred_region
        // Predicated region
        $region33: #{stage_forward_pallas.5} parent=31 // pred_check
          %p181 = pneg %p34
        $region34: #{stage_forward_pallas.5} parent=31 // pred_check_branch
          %183 = sbr.rel (%p181) target = $region36
        $region35: #{stage_forward_pallas.5} parent=31 // pred_region
          %p184 = scmp.lt.s32.totalorder %s14, 1
          %s185 = scalar_select %p184, %s14, 1
          %s186 = smul.addr %s185, 8
          %s187 = smul.addr %s186, 8
          %s188 = scalar_lea.vmem %s0, %s187
        $region36: #{stage_forward_pallas.5} parent=31 // pred_fallthru
          _
      $region32: #{stage_forward_pallas.5} parent=5 // pred_fallthru
        _
      %p189 = scmp.le.s32.totalorder 1, %s14
      %p190 = scmp.lt.s32.totalorder %s14, 3
      %p191 = pnand %p189, %p190
      %p192 = pneg %p191
      // Predicated region
      $region37: #{stage_forward_pallas.5} parent=5 // pred_check
        _
      $region38: #{stage_forward_pallas.5} parent=5 // pred_check_branch
        %194 = sbr.rel (%p191) target = $region40
      $region39: #{stage_forward_pallas.5} parent=5 // pred_region
        %s195 = ssub.s32 %s14, 1
        %p196 = scmp.lt.s32.totalorder %s19, 1
        %s197 = scalar_select %p196, %s19, 1
        %s198 = smul.addr %s197, 8
        %s199 = smul.addr %s198, 8
        %s200 = scalar_lea.vmem %s0, %s199
        %p201 = pneg %p40
        %p202 = pneg %p37
        %p203 = pneg %p61
        %p204 = pneg %p58
        %p205 = pneg %p82
        %p206 = pneg %p79
        %p207 = pneg %p103
        %p208 = pneg %p100
        %p209 = pneg %p124
        %p210 = pneg %p121
        %p211 = pneg %p150
        %p212 = pneg %p147
        %s213 = sand.u32 %s137, 1
        %s214 = scalar_lea.sflag [#allocation4], %s213
        %s215 = sand.u32 %s137, 1
        %s216 = smul.addr %s215, 64
        %s217 = scalar_lea.vmem [#allocation3], %s216
        %p218 = scmp.lt.s32.totalorder %s19, 1
        %s219 = scalar_select %p218, %s19, 1
        %s220 = smul.addr %s219, 8
        %s221 = smul.addr %s220, 8
        %s222 = scalar_lea.vmem %s0, %s221
        %v223 = vld [vmem:[%s222] sm:$0xff]
        %v224 = vld [vmem:[%s222 + $0x8] sm:$0xff]
        %v225 = vld [vmem:[%s222 + $0x10] sm:$0xff]
        %v226 = vld [vmem:[%s222 + $0x18] sm:$0xff]
        %v227 = vld [vmem:[%s222 + $0x20] sm:$0xff]
        %v228 = vld [vmem:[%s222 + $0x28] sm:$0xff]
        %v229 = vld [vmem:[%s222 + $0x30] sm:$0xff]
        %v230 = vld [vmem:[%s222 + $0x38] sm:$0xff]
        %v231 = vld [vmem:[%s1] sm:$0xff]
        %v232 = vld [vmem:[%s2] sm:$0x1]
        %v234 = vlaneseq
        %v235 = vshrl.u32 %v234, 7
        %v236 = vsub.s32 0, %v235
        %v237 = vrot.slane %v232, %v236
        %vm239 = vcmask 64512
        %v241 = vsel %vm239, %v223, 0
        %v244 = vsel %vm239, %v224, 0
        %v247 = vsel %vm239, %v225, 0
        %v250 = vsel %vm239, %v226, 0
        %v253 = vsel %vm239, %v227, 0
        %v256 = vsel %vm239, %v228, 0
        %v259 = vsel %vm239, %v229, 0
        %v262 = vsel %vm239, %v230, 0
        %264 = vmatprep.subr.mxu0 0.0
        %265 = vmatpush1.msra.mxu0 %v231
        %266 = vmatprep.subr.mxu0 0.0
        %267 = vmatpush1.msra.mxu0 0.0
        %268 = vmatprep.subr.mxu0 0.0
        %269 = vmatpush1.msra.mxu0 0.0
        %270 = vmatprep.subr.mxu0 0.0
        %271 = vmatpush1.msra.mxu0 0.0
        %272 = vmatprep.subr.mxu0 0.0
        %273 = vmatpush1.msra.mxu0 0.0
        %274 = vmatprep.subr.mxu0 0.0
        %275 = vmatpush1.msra.mxu0 0.0
        %276 = vmatprep.subr.mxu0 0.0
        %277 = vmatpush1.msra.mxu0 0.0
        %278 = vmatprep.subr.mxu0 0.0
        %279 = vmatpush1.msra.mxu0 0.0
        %280 = vmatprep.subr.mxu0 0.0
        %281 = vmatpush1.msra.mxu0 0.0
        %282 = vmatprep.subr.mxu0 0.0
        %283 = vmatpush1.msra.mxu0 0.0
        %284 = vmatprep.subr.mxu0 0.0
        %285 = vmatpush1.msra.mxu0 0.0
        %286 = vmatprep.subr.mxu0 0.0
        %287 = vmatpush1.msra.mxu0 0.0
        %288 = vmatprep.subr.mxu0 0.0
        %289 = vmatpush1.msra.mxu0 0.0
        %290 = vmatprep.subr.mxu0 0.0
        %291 = vmatpush1.msra.mxu0 0.0
        %292 = vmatprep.subr.mxu0 0.0
        %293 = vmatpush1.msra.mxu0 0.0
        %294 = vmatprep.subr.mxu0 0.0
        %295 = vmatpush1.msra.mxu0 0.0
        %296 = vmatprep.subr.mxu0 0.0
        %297 = vmatpush1.msra.mxu0 0.0
        %298 = vmatprep.subr.mxu0 0.0
        %299 = vmatpush1.msra.mxu0 0.0
        %300 = vmatprep.subr.mxu0 0.0
        %301 = vmatpush1.msra.mxu0 0.0
        %302 = vmatprep.subr.mxu0 0.0
        %303 = vmatpush1.msra.mxu0 0.0
        %304 = vmatprep.subr.mxu0 0.0
        %305 = vmatpush1.msra.mxu0 0.0
        %306 = vmatprep.subr.mxu0 0.0
        %307 = vmatpush1.msra.mxu0 0.0
        %308 = vmatprep.subr.mxu0 0.0
        %309 = vmatpush1.msra.mxu0 0.0
        %310 = vmatprep.subr.mxu0 0.0
        %311 = vmatpush1.msra.mxu0 0.0
        %312 = vmatprep.subr.mxu0 0.0
        %313 = vmatpush1.msra.mxu0 0.0
        %314 = vmatprep.subr.mxu0 0.0
        %315 = vmatpush1.msra.mxu0 0.0
        %316 = vmatprep.subr.mxu0 0.0
        %317 = vmatpush1.msra.mxu0 0.0
        %318 = vmatprep.subr.mxu0 0.0
        %319 = vmatpush1.msra.mxu0 0.0
        %320 = vmatprep.subr.mxu0 0.0
        %321 = vmatpush1.msra.mxu0 0.0
        %322 = vmatprep.subr.mxu0 0.0
        %323 = vmatpush1.msra.mxu0 0.0
        %324 = vmatprep.subr.mxu0 0.0
        %325 = vmatpush1.msra.mxu0 0.0
        %326 = vmatprep.subr.mxu0 0.0
        %327 = vmatpush1.msra.mxu0 0.0
        %328 = vmatprep.mubr.f32.mxu0 0.0
        %329 = vmatmul.mubr.f32.gmra.mrb[0].mxu0 %v241
        %v330 = vpop.f32.mrb[0].mxu0
        %v331 = vadd.f32 %v237, %v330
        %v332 = vpop.f32.mrb[0].mxu0
        %333 = vmatprep.mubr.f32.mxu0 0.0
        %334 = vmatmul.mubr.f32.gmra.mrb[0].mxu0 %v244
        %v335 = vpop.f32.mrb[0].mxu0
        %v336 = vadd.f32 %v237, %v335
        %v337 = vpop.f32.mrb[0].mxu0
        %338 = vmatprep.mubr.f32.mxu0 0.0
        %339 = vmatmul.mubr.f32.gmra.mrb[0].mxu0 %v247
        %v340 = vpop.f32.mrb[0].mxu0
        %v341 = vadd.f32 %v237, %v340
        %v342 = vpop.f32.mrb[0].mxu0
        %343 = vmatprep.mubr.f32.mxu0 0.0
        %344 = vmatmul.mubr.f32.gmra.mrb[0].mxu0 %v250
        %v345 = vpop.f32.mrb[0].mxu0
        %v346 = vadd.f32 %v237, %v345
        %v347 = vpop.f32.mrb[0].mxu0
        %348 = vmatprep.mubr.f32.mxu0 0.0
        %349 = vmatmul.mubr.f32.gmra.mrb[0].mxu0 %v253
        %v350 = vpop.f32.mrb[0].mxu0
        %v351 = vadd.f32 %v237, %v350
        %v352 = vpop.f32.mrb[0].mxu0
        %353 = vmatprep.mubr.f32.mxu0 0.0
        %354 = vmatmul.mubr.f32.gmra.mrb[0].mxu0 %v256
        %v355 = vpop.f32.mrb[0].mxu0
        %v356 = vadd.f32 %v237, %v355
        %v357 = vpop.f32.mrb[0].mxu0
        %358 = vmatprep.mubr.f32.mxu0 0.0
        %359 = vmatmul.mubr.f32.gmra.mrb[0].mxu0 %v259
        %v360 = vpop.f32.mrb[0].mxu0
        %v361 = vadd.f32 %v237, %v360
        %v362 = vpop.f32.mrb[0].mxu0
        %363 = vmatprep.mubr.f32.mxu0 0.0
        %364 = vmatmul.mubr.f32.gmra.mrb[0].mxu0 %v262
        %v365 = vpop.f32.mrb[0].mxu0
        %v366 = vadd.f32 %v237, %v365
        %v367 = vpop.f32.mrb[0].mxu0
        %368 = vdwg.mxu0
        %v369 = vmul.f32 %v331, 0.1
        %v370 = vmul.f32 %v336, 0.1
        %v371 = vmul.f32 %v341, 0.1
        %v372 = vmul.f32 %v346, 0.1
        %v373 = vmul.f32 %v351, 0.1
        %v374 = vmul.f32 %v356, 0.1
        %v375 = vmul.f32 %v361, 0.1
        %v376 = vmul.f32 %v366, 0.1
        %v377 = vmax.f32 %v331, %v369
        %v378 = vmax.f32 %v336, %v370
        %v379 = vmax.f32 %v341, %v371
        %v380 = vmax.f32 %v346, %v372
        %v381 = vmax.f32 %v351, %v373
        %v382 = vmax.f32 %v356, %v374
        %v383 = vmax.f32 %v361, %v375
        %v384 = vmax.f32 %v366, %v376
        %vm385 = vcmask 31744
        %386 = vst.msk [vmem:[#allocation2] sm:$0xff] %vm385, 0.0
        %vm387 = vcmask 24576
        %388 = vst.msk [vmem:[#allocation2 + $0x8] sm:$0x1] %vm387, 0.0
        %389 = vst.msk [vmem:[#allocation2 + $0x49] sm:$0xff] %vm385, 0.0
        %390 = vst.msk [vmem:[#allocation2 + $0x51] sm:$0x1] %vm387, 0.0
        %391 = vst.msk [vmem:[#allocation2 + $0x9] sm:$0xff] %vm385, %v377
        %392 = vst.msk [vmem:[#allocation2 + $0x11] sm:$0xff] %vm385, %v378
        %393 = vst.msk [vmem:[#allocation2 + $0x19] sm:$0xff] %vm385, %v379
        %394 = vst.msk [vmem:[#allocation2 + $0x21] sm:$0xff] %vm385, %v380
        %395 = vst.msk [vmem:[#allocation2 + $0x29] sm:$0xff] %vm385, %v381
        %396 = vst.msk [vmem:[#allocation2 + $0x31] sm:$0xff] %vm385, %v382
        %397 = vst.msk [vmem:[#allocation2 + $0x39] sm:$0xff] %vm385, %v383
        %398 = vst.msk [vmem:[#allocation2 + $0x41] sm:$0xff] %vm385, %v384
        %v399 = vlaneseq
        %v400 = vshrl.u32 %v399, 7
        %v401 = vadd.s32 %v400, 8
        %v402 = vadd.s32 %v400, 16
        %v403 = vadd.s32 %v400, 24
        %v404 = vadd.s32 %v400, 32
        %v405 = vadd.s32 %v400, 40
        %v406 = vadd.s32 %v400, 48
        %v407 = vadd.s32 %v400, 56
        %vm408 = vcmp.lt.s32.totalorder %v400, 0
        %v409 = vsub.s32 0, %v400
        %v410 = vsel %vm408, %v409, %v400
        %v411 = vshrl.u32 %v410, 3
        %v412 = vand.u32 %v410, 7
        %v413 = vsub.s32 0, %v412
        %v414 = vsel %vm408, %v413, %v412
        %vm415 = vcmp.lt.s32.totalorder %v401, 0
        %v416 = vsub.s32 0, %v401
        %v417 = vsel %vm415, %v416, %v401
        %v418 = vshrl.u32 %v417, 3
        %v419 = vand.u32 %v417, 7
        %v420 = vsub.s32 0, %v419
        %v421 = vsel %vm415, %v420, %v419
        %vm422 = vcmp.lt.s32.totalorder %v402, 0
        %v423 = vsub.s32 0, %v402
        %v424 = vsel %vm422, %v423, %v402
        %v425 = vshrl.u32 %v424, 3
        %v426 = vand.u32 %v424, 7
        %v427 = vsub.s32 0, %v426
        %v428 = vsel %vm422, %v427, %v426
        %vm429 = vcmp.lt.s32.totalorder %v403, 0
        %v430 = vsub.s32 0, %v403
        %v431 = vsel %vm429, %v430, %v403
        %v432 = vshrl.u32 %v431, 3
        %v433 = vand.u32 %v431, 7
        %v434 = vsub.s32 0, %v433
        %v435 = vsel %vm429, %v434, %v433
        %vm436 = vcmp.lt.s32.totalorder %v404, 0
        %v437 = vsub.s32 0, %v404
        %v438 = vsel %vm436, %v437, %v404
        %v439 = vshrl.u32 %v438, 3
        %v440 = vand.u32 %v438, 7
        %v441 = vsub.s32 0, %v440
        %v442 = vsel %vm436, %v441, %v440
        %vm443 = vcmp.lt.s32.totalorder %v405, 0
        %v444 = vsub.s32 0, %v405
        %v445 = vsel %vm443, %v444, %v405
        %v446 = vshrl.u32 %v445, 3
        %v447 = vand.u32 %v445, 7
        %v448 = vsub.s32 0, %v447
        %v449 = vsel %vm443, %v448, %v447
        %vm450 = vcmp.lt.s32.totalorder %v406, 0
        %v451 = vsub.s32 0, %v406
        %v452 = vsel %vm450, %v451, %v406
        %v453 = vshrl.u32 %v452, 3
        %v454 = vand.u32 %v452, 7
        %v455 = vsub.s32 0, %v454
        %v456 = vsel %vm450, %v455, %v454
        %vm457 = vcmp.lt.s32.totalorder %v407, 0
        %v458 = vsub.s32 0, %v407
        %v459 = vsel %vm457, %v458, %v407
        %v460 = vshrl.u32 %v459, 3
        %v461 = vand.u32 %v459, 7
        %v462 = vsub.s32 0, %v461
        %v463 = vsel %vm457, %v462, %v461
        %vm464 = vcmp.ne.s32.totalorder %v414, 0
        %vm465 = vcmp.ne.s32.totalorder %v421, 0
        %vm466 = vcmp.ne.s32.totalorder %v428, 0
        %vm467 = vcmp.ne.s32.totalorder %v435, 0
        %vm468 = vcmp.ne.s32.totalorder %v442, 0
        %vm469 = vcmp.ne.s32.totalorder %v449, 0
        %vm470 = vcmp.ne.s32.totalorder %v456, 0
        %vm471 = vcmp.ne.s32.totalorder %v463, 0
        %vm472 = vcmp.lt.s32.totalorder %v414, 0
        %vm473 = vcmp.lt.s32.totalorder %v421, 0
        %vm474 = vcmp.lt.s32.totalorder %v428, 0
        %vm475 = vcmp.lt.s32.totalorder %v435, 0
        %vm476 = vcmp.lt.s32.totalorder %v442, 0
        %vm477 = vcmp.lt.s32.totalorder %v449, 0
        %vm478 = vcmp.lt.s32.totalorder %v456, 0
        %vm479 = vcmp.lt.s32.totalorder %v463, 0
        %vm480 = vmand %vm472, %vm464
        %vm481 = vmand %vm473, %vm465
        %vm482 = vmand %vm474, %vm466
        %vm483 = vmand %vm475, %vm467
        %vm484 = vmand %vm476, %vm468
        %vm485 = vmand %vm477, %vm469
        %vm486 = vmand %vm478, %vm470
        %vm487 = vmand %vm479, %vm471
        %v488 = vadd.s32 %v414, 8
        %v489 = vadd.s32 %v421, 8
        %v490 = vadd.s32 %v428, 8
        %v491 = vadd.s32 %v435, 8
        %v492 = vadd.s32 %v442, 8
        %v493 = vadd.s32 %v449, 8
        %v494 = vadd.s32 %v456, 8
        %v495 = vadd.s32 %v463, 8
        %v496 = vsel %vm480, %v488, %v414
        %v497 = vsel %vm481, %v489, %v421
        %v498 = vsel %vm482, %v490, %v428
        %v499 = vsel %vm483, %v491, %v435
        %v500 = vsel %vm484, %v492, %v442
        %v501 = vsel %vm485, %v493, %v449
        %v502 = vsel %vm486, %v494, %v456
        %v503 = vsel %vm487, %v495, %v463
        %v504 = vld [vmem:[#allocation2] sm:$0xff]
        %v505 = vld [vmem:[#allocation2 + $0x8] sm:$0xff]
        %v506 = vld [vmem:[#allocation2 + $0x10] sm:$0xff]
        %v507 = vld [vmem:[#allocation2 + $0x18] sm:$0xff]
        %v508 = vld [vmem:[#allocation2 + $0x20] sm:$0xff]
        %v509 = vld [vmem:[#allocation2 + $0x28] sm:$0xff]
        %v510 = vld [vmem:[#allocation2 + $0x30] sm:$0xff]
        %v511 = vld [vmem:[#allocation2 + $0x38] sm:$0xff]
        %vm512 = vcmp.ge.s32.totalorder %v496, 1
        %vm513 = vcmp.ge.s32.totalorder %v497, 1
        %vm514 = vcmp.ge.s32.totalorder %v498, 1
        %vm515 = vcmp.ge.s32.totalorder %v499, 1
        %vm516 = vcmp.ge.s32.totalorder %v500, 1
        %vm517 = vcmp.ge.s32.totalorder %v501, 1
        %vm518 = vcmp.ge.s32.totalorder %v502, 1
        %vm519 = vcmp.ge.s32.totalorder %v503, 1
        %v520 = vsel %vm512, 1, 0
        %v521 = vsel %vm513, 1, 0
        %v522 = vsel %vm514, 1, 0
        %v523 = vsel %vm515, 1, 0
        %v524 = vsel %vm516, 1, 0
        %v525 = vsel %vm517, 1, 0
        %v526 = vsel %vm518, 1, 0
        %v527 = vsel %vm519, 1, 0
        %vm528 = vcmp.eq.s32.totalorder %v520, 1
        %vm529 = vcmp.eq.s32.totalorder %v521, 1
        %vm530 = vcmp.eq.s32.totalorder %v522, 1
        %vm531 = vcmp.eq.s32.totalorder %v523, 1
        %vm532 = vcmp.eq.s32.totalorder %v524, 1
        %vm533 = vcmp.eq.s32.totalorder %v525, 1
        %vm534 = vcmp.eq.s32.totalorder %v526, 1
        %vm535 = vcmp.eq.s32.totalorder %v527, 1
        %v536 = vsel %vm528, %v504, 0.0
        %v537 = vsel %vm529, %v505, 0.0
        %v538 = vsel %vm530, %v506, 0.0
        %v539 = vsel %vm531, %v507, 0.0
        %v540 = vsel %vm532, %v508, 0.0
        %v541 = vsel %vm533, %v509, 0.0
        %v542 = vsel %vm534, %v510, 0.0
        %v543 = vsel %vm535, %v511, 0.0
        %v544 = vld [vmem:[#allocation2 + $0x1] sm:$0xff]
        %v545 = vld [vmem:[#allocation2 + $0x9] sm:$0xff]
        %v546 = vld [vmem:[#allocation2 + $0x11] sm:$0xff]
        %v547 = vld [vmem:[#allocation2 + $0x19] sm:$0xff]
        %v548 = vld [vmem:[#allocation2 + $0x21] sm:$0xff]
        %v549 = vld [vmem:[#allocation2 + $0x29] sm:$0xff]
        %v550 = vld [vmem:[#allocation2 + $0x31] sm:$0xff]
        %v551 = vld [vmem:[#allocation2 + $0x39] sm:$0xff]
        %v552 = vld [vmem:[#allocation2 + $0x2] sm:$0xff]
        %v553 = vld [vmem:[#allocation2 + $0xa] sm:$0xff]
        %v554 = vld [vmem:[#allocation2 + $0x12] sm:$0xff]
        %v555 = vld [vmem:[#allocation2 + $0x1a] sm:$0xff]
        %v556 = vld [vmem:[#allocation2 + $0x22] sm:$0xff]
        %v557 = vld [vmem:[#allocation2 + $0x2a] sm:$0xff]
        %v558 = vld [vmem:[#allocation2 + $0x32] sm:$0xff]
        %v559 = vld [vmem:[#allocation2 + $0x3a] sm:$0xff]
        %vm560 = vcmp.lt.s32.totalorder %v496, 7
        %vm561 = vcmp.lt.s32.totalorder %v497, 7
        %vm562 = vcmp.lt.s32.totalorder %v498, 7
        %vm563 = vcmp.lt.s32.totalorder %v499, 7
        %vm564 = vcmp.lt.s32.totalorder %v500, 7
        %vm565 = vcmp.lt.s32.totalorder %v501, 7
        %vm566 = vcmp.lt.s32.totalorder %v502, 7
        %vm567 = vcmp.lt.s32.totalorder %v503, 7
        %v568 = vsel %vm560, 1, 0
        %v569 = vsel %vm561, 1, 0
        %v570 = vsel %vm562, 1, 0
        %v571 = vsel %vm563, 1, 0
        %v572 = vsel %vm564, 1, 0
        %v573 = vsel %vm565, 1, 0
        %v574 = vsel %vm566, 1, 0
        %v575 = vsel %vm567, 1, 0
        %vm576 = vcmp.eq.s32.totalorder %v568, 1
        %vm577 = vcmp.eq.s32.totalorder %v569, 1
        %vm578 = vcmp.eq.s32.totalorder %v570, 1
        %vm579 = vcmp.eq.s32.totalorder %v571, 1
        %vm580 = vcmp.eq.s32.totalorder %v572, 1
        %vm581 = vcmp.eq.s32.totalorder %v573, 1
        %vm582 = vcmp.eq.s32.totalorder %v574, 1
        %vm583 = vcmp.eq.s32.totalorder %v575, 1
        %v584 = vsel %vm576, %v552, 0.0
        %v585 = vsel %vm577, %v553, 0.0
        %v586 = vsel %vm578, %v554, 0.0
        %v587 = vsel %vm579, %v555, 0.0
        %v588 = vsel %vm580, %v556, 0.0
        %v589 = vsel %vm581, %v557, 0.0
        %v590 = vsel %vm582, %v558, 0.0
        %v591 = vsel %vm583, %v559, 0.0
        %v592 = vld [vmem:[#allocation2 + $0x40] sm:$0xff]
        %v593 = vsel %vm528, %v505, 0.0
        %v594 = vsel %vm529, %v506, 0.0
        %v595 = vsel %vm530, %v507, 0.0
        %v596 = vsel %vm531, %v508, 0.0
        %v597 = vsel %vm532, %v509, 0.0
        %v598 = vsel %vm533, %v510, 0.0
        %v599 = vsel %vm534, %v511, 0.0
        %v600 = vsel %vm535, %v592, 0.0
        %v601 = vld [vmem:[#allocation2 + $0x41] sm:$0xff]
        %v602 = vld [vmem:[#allocation2 + $0x42] sm:$0xff]
        %v603 = vsel %vm576, %v553, 0.0
        %v604 = vsel %vm577, %v554, 0.0
        %v605 = vsel %vm578, %v555, 0.0
        %v606 = vsel %vm579, %v556, 0.0
        %v607 = vsel %vm580, %v557, 0.0
        %v608 = vsel %vm581, %v558, 0.0
        %v609 = vsel %vm582, %v559, 0.0
        %v610 = vsel %vm583, %v602, 0.0
        %v611 = vld [vmem:[#allocation2 + $0x48] sm:$0xff]
        %v612 = vsel %vm528, %v506, 0.0
        %v613 = vsel %vm529, %v507, 0.0
        %v614 = vsel %vm530, %v508, 0.0
        %v615 = vsel %vm531, %v509, 0.0
        %v616 = vsel %vm532, %v510, 0.0
        %v617 = vsel %vm533, %v511, 0.0
        %v618 = vsel %vm534, %v592, 0.0
        %v619 = vsel %vm535, %v611, 0.0
        %v620 = vld [vmem:[#allocation2 + $0x49] sm:$0xff]
        %v621 = vld [vmem:[#allocation2 + $0x4a] sm:$0xff]
        %v622 = vsel %vm576, %v554, 0.0
        %v623 = vsel %vm577, %v555, 0.0
        %v624 = vsel %vm578, %v556, 0.0
        %v625 = vsel %vm579, %v557, 0.0
        %v626 = vsel %vm580, %v558, 0.0
        %v627 = vsel %vm581, %v559, 0.0
        %v628 = vsel %vm582, %v602, 0.0
        %v629 = vsel %vm583, %v621, 0.0
        %638 = vrot.lane.b32.xlu0 %v544, 4
        %v639 = vpop.permute.xlu0 %638
        %640 = vrot.lane.b32.xlu0 %v545, 4
        %v641 = vpop.permute.xlu0 %640
        %642 = vrot.lane.b32.xlu0 %v546, 4
        %v643 = vpop.permute.xlu0 %642
        %644 = vrot.lane.b32.xlu0 %v547, 4
        %v645 = vpop.permute.xlu0 %644
        %646 = vrot.lane.b32.xlu0 %v548, 4
        %v647 = vpop.permute.xlu0 %646
        %648 = vrot.lane.b32.xlu0 %v549, 4
        %v649 = vpop.permute.xlu0 %648
        %650 = vrot.lane.b32.xlu0 %v550, 4
        %v651 = vpop.permute.xlu0 %650
        %652 = vrot.lane.b32.xlu0 %v551, 4
        %v653 = vpop.permute.xlu0 %652
        %670 = vrot.lane.b32.xlu0 %v584, 8
        %v671 = vpop.permute.xlu0 %670
        %672 = vrot.lane.b32.xlu0 %v585, 8
        %v673 = vpop.permute.xlu0 %672
        %674 = vrot.lane.b32.xlu0 %v586, 8
        %v675 = vpop.permute.xlu0 %674
        %676 = vrot.lane.b32.xlu0 %v587, 8
        %v677 = vpop.permute.xlu0 %676
        %678 = vrot.lane.b32.xlu0 %v588, 8
        %v679 = vpop.permute.xlu0 %678
        %680 = vrot.lane.b32.xlu0 %v589, 8
        %v681 = vpop.permute.xlu0 %680
        %682 = vrot.lane.b32.xlu0 %v590, 8
        %v683 = vpop.permute.xlu0 %682
        %684 = vrot.lane.b32.xlu0 %v591, 8
        %v685 = vpop.permute.xlu0 %684
        %702 = vrot.lane.b32.xlu0 %v593, 12
        %v703 = vpop.permute.xlu0 %702
        %704 = vrot.lane.b32.xlu0 %v594, 12
        %v705 = vpop.permute.xlu0 %704
        %706 = vrot.lane.b32.xlu0 %v595, 12
        %v707 = vpop.permute.xlu0 %706
        %708 = vrot.lane.b32.xlu0 %v596, 12
        %v709 = vpop.permute.xlu0 %708
        %710 = vrot.lane.b32.xlu0 %v597, 12
        %v711 = vpop.permute.xlu0 %710
        %712 = vrot.lane.b32.xlu0 %v598, 12
        %v713 = vpop.permute.xlu0 %712
        %714 = vrot.lane.b32.xlu0 %v599, 12
        %v715 = vpop.permute.xlu0 %714
        %716 = vrot.lane.b32.xlu0 %v600, 12
        %v717 = vpop.permute.xlu0 %716
        %727 = vrot.lane.b32.xlu0 %v545, 16
        %v728 = vpop.permute.xlu0 %727
        %729 = vrot.lane.b32.xlu0 %v546, 16
        %v730 = vpop.permute.xlu0 %729
        %731 = vrot.lane.b32.xlu0 %v547, 16
        %v732 = vpop.permute.xlu0 %731
        %733 = vrot.lane.b32.xlu0 %v548, 16
        %v734 = vpop.permute.xlu0 %733
        %735 = vrot.lane.b32.xlu0 %v549, 16
        %v736 = vpop.permute.xlu0 %735
        %737 = vrot.lane.b32.xlu0 %v550, 16
        %v738 = vpop.permute.xlu0 %737
        %739 = vrot.lane.b32.xlu0 %v551, 16
        %v740 = vpop.permute.xlu0 %739
        %741 = vrot.lane.b32.xlu0 %v601, 16
        %v742 = vpop.permute.xlu0 %741
        %759 = vrot.lane.b32.xlu0 %v603, 20
        %v760 = vpop.permute.xlu0 %759
        %761 = vrot.lane.b32.xlu0 %v604, 20
        %v762 = vpop.permute.xlu0 %761
        %763 = vrot.lane.b32.xlu0 %v605, 20
        %v764 = vpop.permute.xlu0 %763
        %765 = vrot.lane.b32.xlu0 %v606, 20
        %v766 = vpop.permute.xlu0 %765
        %767 = vrot.lane.b32.xlu0 %v607, 20
        %v768 = vpop.permute.xlu0 %767
        %769 = vrot.lane.b32.xlu0 %v608, 20
        %v770 = vpop.permute.xlu0 %769
        %771 = vrot.lane.b32.xlu0 %v609, 20
        %v772 = vpop.permute.xlu0 %771
        %773 = vrot.lane.b32.xlu0 %v610, 20
        %v774 = vpop.permute.xlu0 %773
        %791 = vrot.lane.b32.xlu0 %v612, 24
        %v792 = vpop.permute.xlu0 %791
        %793 = vrot.lane.b32.xlu0 %v613, 24
        %v794 = vpop.permute.xlu0 %793
        %795 = vrot.lane.b32.xlu0 %v614, 24
        %v796 = vpop.permute.xlu0 %795
        %797 = vrot.lane.b32.xlu0 %v615, 24
        %v798 = vpop.permute.xlu0 %797
        %799 = vrot.lane.b32.xlu0 %v616, 24
        %v800 = vpop.permute.xlu0 %799
        %801 = vrot.lane.b32.xlu0 %v617, 24
        %v802 = vpop.permute.xlu0 %801
        %803 = vrot.lane.b32.xlu0 %v618, 24
        %v804 = vpop.permute.xlu0 %803
        %805 = vrot.lane.b32.xlu0 %v619, 24
        %v806 = vpop.permute.xlu0 %805
        %816 = vrot.lane.b32.xlu0 %v546, 28
        %v817 = vpop.permute.xlu0 %816
        %818 = vrot.lane.b32.xlu0 %v547, 28
        %v819 = vpop.permute.xlu0 %818
        %820 = vrot.lane.b32.xlu0 %v548, 28
        %v821 = vpop.permute.xlu0 %820
        %822 = vrot.lane.b32.xlu0 %v549, 28
        %v823 = vpop.permute.xlu0 %822
        %824 = vrot.lane.b32.xlu0 %v550, 28
        %v825 = vpop.permute.xlu0 %824
        %826 = vrot.lane.b32.xlu0 %v551, 28
        %v827 = vpop.permute.xlu0 %826
        %828 = vrot.lane.b32.xlu0 %v601, 28
        %v829 = vpop.permute.xlu0 %828
        %830 = vrot.lane.b32.xlu0 %v620, 28
        %v831 = vpop.permute.xlu0 %830
        %848 = vrot.lane.b32.xlu0 %v622, 32
        %v849 = vpop.permute.xlu0 %848
        %850 = vrot.lane.b32.xlu0 %v623, 32
        %v851 = vpop.permute.xlu0 %850
        %852 = vrot.lane.b32.xlu0 %v624, 32
        %v853 = vpop.permute.xlu0 %852
        %854 = vrot.lane.b32.xlu0 %v625, 32
        %v855 = vpop.permute.xlu0 %854
        %856 = vrot.lane.b32.xlu0 %v626, 32
        %v857 = vpop.permute.xlu0 %856
        %858 = vrot.lane.b32.xlu0 %v627, 32
        %v859 = vpop.permute.xlu0 %858
        %860 = vrot.lane.b32.xlu0 %v628, 32
        %v861 = vpop.permute.xlu0 %860
        %862 = vrot.lane.b32.xlu0 %v629, 32
        %v863 = vpop.permute.xlu0 %862
        %v872 = vsel %vm385, %v536, %v639
        %v873 = vsel %vm385, %v537, %v641
        %v874 = vsel %vm385, %v538, %v643
        %v875 = vsel %vm385, %v539, %v645
        %v876 = vsel %vm385, %v540, %v647
        %v877 = vsel %vm385, %v541, %v649
        %v878 = vsel %vm385, %v542, %v651
        %v879 = vsel %vm385, %v543, %v653
        %v880 = vsel %vm239, %v872, %v671
        %v881 = vsel %vm239, %v873, %v673
        %v882 = vsel %vm239, %v874, %v675
        %v883 = vsel %vm239, %v875, %v677
        %v884 = vsel %vm239, %v876, %v679
        %v885 = vsel %vm239, %v877, %v681
        %v886 = vsel %vm239, %v878, %v683
        %v887 = vsel %vm239, %v879, %v685
        %vm888 = vcmask 97280
        %v889 = vsel %vm888, %v880, %v703
        %v890 = vsel %vm888, %v881, %v705
        %v891 = vsel %vm888, %v882, %v707
        %v892 = vsel %vm888, %v883, %v709
        %v893 = vsel %vm888, %v884, %v711
        %v894 = vsel %vm888, %v885, %v713
        %v895 = vsel %vm888, %v886, %v715
        %v896 = vsel %vm888, %v887, %v717
        %vm897 = vcmask 130048
        %v898 = vsel %vm897, %v889, %v728
        %v899 = vsel %vm897, %v890, %v730
        %v900 = vsel %vm897, %v891, %v732
        %v901 = vsel %vm897, %v892, %v734
        %v902 = vsel %vm897, %v893, %v736
        %v903 = vsel %vm897, %v894, %v738
        %v904 = vsel %vm897, %v895, %v740
        %v905 = vsel %vm897, %v896, %v742
        %vm906 = vcmask 162816
        %v907 = vsel %vm906, %v898, %v760
        %v908 = vsel %vm906, %v899, %v762
        %v909 = vsel %vm906, %v900, %v764
        %v910 = vsel %vm906, %v901, %v766
        %v911 = vsel %vm906, %v902, %v768
        %v912 = vsel %vm906, %v903, %v770
        %v913 = vsel %vm906, %v904, %v772
        %v914 = vsel %vm906, %v905, %v774
        %vm915 = vcmask 195584
        %v916 = vsel %vm915, %v907, %v792
        %v917 = vsel %vm915, %v908, %v794
        %v918 = vsel %vm915, %v909, %v796
        %v919 = vsel %vm915, %v910, %v798
        %v920 = vsel %vm915, %v911, %v800
        %v921 = vsel %vm915, %v912, %v802
        %v922 = vsel %vm915, %v913, %v804
        %v923 = vsel %vm915, %v914, %v806
        %vm924 = vcmask 228352
        %v925 = vsel %vm924, %v916, %v817
        %v926 = vsel %vm924, %v917, %v819
        %v927 = vsel %vm924, %v918, %v821
        %v928 = vsel %vm924, %v919, %v823
        %v929 = vsel %vm924, %v920, %v825
        %v930 = vsel %vm924, %v921, %v827
        %v931 = vsel %vm924, %v922, %v829
        %v932 = vsel %vm924, %v923, %v831
        %vm933 = vcmask 261120
        %v934 = vsel %vm933, %v925, %v849
        %v935 = vsel %vm933, %v926, %v851
        %v936 = vsel %vm933, %v927, %v853
        %v937 = vsel %vm933, %v928, %v855
        %v938 = vsel %vm933, %v929, %v857
        %v939 = vsel %vm933, %v930, %v859
        %v940 = vsel %vm933, %v931, %v861
        %v941 = vsel %vm933, %v932, %v863
        %v942 = vld [vmem:[%s3] sm:$0xff]
        %v943 = vld [vmem:[%s3 + $0x8] sm:$0xff]
        %v944 = vld [vmem:[%s3 + $0x10] sm:$0xff]
        %v945 = vld [vmem:[%s3 + $0x18] sm:$0xff]
        %v946 = vld [vmem:[%s3 + $0x20] sm:$0xf]
        %v947 = vld [vmem:[%s4] sm:$0x1]
        %v949 = vlaneseq
        %v950 = vshrl.u32 %v949, 7
        %v951 = vsub.s32 0, %v950
        %v952 = vrot.slane %v947, %v951
        %vm954 = vcmask 293888
        %v956 = vsel %vm954, %v934, 0
        %v959 = vsel %vm954, %v935, 0
        %v962 = vsel %vm954, %v936, 0
        %v965 = vsel %vm954, %v937, 0
        %v968 = vsel %vm954, %v938, 0
        %v971 = vsel %vm954, %v939, 0
        %v974 = vsel %vm954, %v940, 0
        %v977 = vsel %vm954, %v941, 0
        %vm979 = vcmask 1043456
        %v981 = vsel %vm979, %v946, 0
        %983 = vmatprep.subr.mxu0 0.0
        %984 = vmatpush1.msra.mxu0 %v942
        %985 = vmatprep.subr.mxu0 0.0
        %986 = vmatpush1.msra.mxu0 %v943
        %987 = vmatprep.subr.mxu0 0.0
        %988 = vmatpush1.msra.mxu0 %v944
        %989 = vmatprep.subr.mxu0 0.0
        %990 = vmatpush1.msra.mxu0 %v945
        %991 = vmatprep.subr.mxu0 0.0
        %992 = vmatpush1.msra.mxu0 %v981
        %993 = vmatprep.subr.mxu0 0.0
        %994 = vmatpush1.msra.mxu0 0.0
        %995 = vmatprep.subr.mxu0 0.0
        %996 = vmatpush1.msra.mxu0 0.0
        %997 = vmatprep.subr.mxu0 0.0
        %998 = vmatpush1.msra.mxu0 0.0
        %999 = vmatprep.subr.mxu0 0.0
        %1000 = vmatpush1.msra.mxu0 0.0
        %1001 = vmatprep.subr.mxu0 0.0
        %1002 = vmatpush1.msra.mxu0 0.0
        %1003 = vmatprep.subr.mxu0 0.0
        %1004 = vmatpush1.msra.mxu0 0.0
        %1005 = vmatprep.subr.mxu0 0.0
        %1006 = vmatpush1.msra.mxu0 0.0
        %1007 = vmatprep.subr.mxu0 0.0
        %1008 = vmatpush1.msra.mxu0 0.0
        %1009 = vmatprep.subr.mxu0 0.0
        %1010 = vmatpush1.msra.mxu0 0.0
        %1011 = vmatprep.subr.mxu0 0.0
        %1012 = vmatpush1.msra.mxu0 0.0
        %1013 = vmatprep.subr.mxu0 0.0
        %1014 = vmatpush1.msra.mxu0 0.0
        %1015 = vmatprep.subr.mxu0 0.0
        %1016 = vmatpush1.msra.mxu0 0.0
        %1017 = vmatprep.subr.mxu0 0.0
        %1018 = vmatpush1.msra.mxu0 0.0
        %1019 = vmatprep.subr.mxu0 0.0
        %1020 = vmatpush1.msra.mxu0 0.0
        %1021 = vmatprep.subr.mxu0 0.0
        %1022 = vmatpush1.msra.mxu0 0.0
        %1023 = vmatprep.subr.mxu0 0.0
        %1024 = vmatpush1.msra.mxu0 0.0
        %1025 = vmatprep.subr.mxu0 0.0
        %1026 = vmatpush1.msra.mxu0 0.0
        %1027 = vmatprep.subr.mxu0 0.0
        %1028 = vmatpush1.msra.mxu0 0.0
        %1029 = vmatprep.subr.mxu0 0.0
        %1030 = vmatpush1.msra.mxu0 0.0
        %1031 = vmatprep.subr.mxu0 0.0
        %1032 = vmatpush1.msra.mxu0 0.0
        %1033 = vmatprep.subr.mxu0 0.0
        %1034 = vmatpush1.msra.mxu0 0.0
        %1035 = vmatprep.subr.mxu0 0.0
        %1036 = vmatpush1.msra.mxu0 0.0
        %1037 = vmatprep.subr.mxu0 0.0
        %1038 = vmatpush1.msra.mxu0 0.0
        %1039 = vmatprep.subr.mxu0 0.0
        %1040 = vmatpush1.msra.mxu0 0.0
        %1041 = vmatprep.subr.mxu0 0.0
        %1042 = vmatpush1.msra.mxu0 0.0
        %1043 = vmatprep.subr.mxu0 0.0
        %1044 = vmatpush1.msra.mxu0 0.0
        %1045 = vmatprep.subr.mxu0 0.0
        %1046 = vmatpush1.msra.mxu0 0.0
        %1047 = vmatprep.mubr.f32.mxu0 0.0
        %1048 = vmatmul.mubr.f32.gmra.mrb[0].mxu0 %v956
        %v1049 = vpop.f32.mrb[0].mxu0
        %v1050 = vadd.f32 %v952, %v1049
        %v1051 = vpop.f32.mrb[0].mxu0
        %1052 = vmatprep.mubr.f32.mxu0 0.0
        %1053 = vmatmul.mubr.f32.gmra.mrb[0].mxu0 %v959
        %v1054 = vpop.f32.mrb[0].mxu0
        %v1055 = vadd.f32 %v952, %v1054
        %v1056 = vpop.f32.mrb[0].mxu0
        %1057 = vmatprep.mubr.f32.mxu0 0.0
        %1058 = vmatmul.mubr.f32.gmra.mrb[0].mxu0 %v962
        %v1059 = vpop.f32.mrb[0].mxu0
        %v1060 = vadd.f32 %v952, %v1059
        %v1061 = vpop.f32.mrb[0].mxu0
        %1062 = vmatprep.mubr.f32.mxu0 0.0
        %1063 = vmatmul.mubr.f32.gmra.mrb[0].mxu0 %v965
        %v1064 = vpop.f32.mrb[0].mxu0
        %v1065 = vadd.f32 %v952, %v1064
        %v1066 = vpop.f32.mrb[0].mxu0
        %1067 = vmatprep.mubr.f32.mxu0 0.0
        %1068 = vmatmul.mubr.f32.gmra.mrb[0].mxu0 %v968
        %v1069 = vpop.f32.mrb[0].mxu0
        %v1070 = vadd.f32 %v952, %v1069
        %v1071 = vpop.f32.mrb[0].mxu0
        %1072 = vmatprep.mubr.f32.mxu0 0.0
        %1073 = vmatmul.mubr.f32.gmra.mrb[0].mxu0 %v971
        %v1074 = vpop.f32.mrb[0].mxu0
        %v1075 = vadd.f32 %v952, %v1074
        %v1076 = vpop.f32.mrb[0].mxu0
        %1077 = vmatprep.mubr.f32.mxu0 0.0
        %1078 = vmatmul.mubr.f32.gmra.mrb[0].mxu0 %v974
        %v1079 = vpop.f32.mrb[0].mxu0
        %v1080 = vadd.f32 %v952, %v1079
        %v1081 = vpop.f32.mrb[0].mxu0
        %1082 = vmatprep.mubr.f32.mxu0 0.0
        %1083 = vmatmul.mubr.f32.gmra.mrb[0].mxu0 %v977
        %v1084 = vpop.f32.mrb[0].mxu0
        %v1085 = vadd.f32 %v952, %v1084
        %v1086 = vpop.f32.mrb[0].mxu0
        %1087 = vdwg.mxu0
        %v1088 = vmul.f32 %v1050, 0.1
        %v1089 = vmul.f32 %v1055, 0.1
        %v1090 = vmul.f32 %v1060, 0.1
        %v1091 = vmul.f32 %v1065, 0.1
        %v1092 = vmul.f32 %v1070, 0.1
        %v1093 = vmul.f32 %v1075, 0.1
        %v1094 = vmul.f32 %v1080, 0.1
        %v1095 = vmul.f32 %v1085, 0.1
        %v1096 = vmax.f32 %v1050, %v1088
        %v1097 = vmax.f32 %v1055, %v1089
        %v1098 = vmax.f32 %v1060, %v1090
        %v1099 = vmax.f32 %v1065, %v1091
        %v1100 = vmax.f32 %v1070, %v1092
        %v1101 = vmax.f32 %v1075, %v1093
        %v1102 = vmax.f32 %v1080, %v1094
        %v1103 = vmax.f32 %v1085, %v1095
        %v1104 = vadd.f32 %v223, %v1096
        %v1105 = vadd.f32 %v224, %v1097
        %v1106 = vadd.f32 %v225, %v1098
        %v1107 = vadd.f32 %v226, %v1099
        %v1108 = vadd.f32 %v227, %v1100
        %v1109 = vadd.f32 %v228, %v1101
        %v1110 = vadd.f32 %v229, %v1102
        %v1111 = vadd.f32 %v230, %v1103
        %1112 = vst.msk [vmem:[%s217] sm:$0xff] %vm239, %v1104
        %1113 = vst.msk [vmem:[%s217 + $0x8] sm:$0xff] %vm239, %v1105
        %1114 = vst.msk [vmem:[%s217 + $0x10] sm:$0xff] %vm239, %v1106
        %1115 = vst.msk [vmem:[%s217 + $0x18] sm:$0xff] %vm239, %v1107
        %1116 = vst.msk [vmem:[%s217 + $0x20] sm:$0xff] %vm239, %v1108
        %1117 = vst.msk [vmem:[%s217 + $0x28] sm:$0xff] %vm239, %v1109
        %1118 = vst.msk [vmem:[%s217 + $0x30] sm:$0xff] %vm239, %v1110
        %1119 = vst.msk [vmem:[%s217 + $0x38] sm:$0xff] %vm239, %v1111
        %s1120 = sand.u32 %s137, 1
        %s1121 = scalar_lea.sflag [#allocation4], %s1120
        %s1122 = sand.u32 %s137, 1
        %s1123 = smul.addr %s1122, 64
        %s1124 = scalar_lea.vmem [#allocation3], %s1123
        // Predicated region
        $region41: #{stage_forward_pallas.5} parent=39 // pred_check
          %p1125 = pneg %p147
        $region42: #{stage_forward_pallas.5} parent=39 // pred_check_branch
          %1127 = sbr.rel (%p1125) target = $region44
        $region43: #{stage_forward_pallas.5} parent=39 // pred_region
          %s1129 = ssub.s32 1024, 1024
          %1130 = vsyncadd %s1121, %s1129
          %s1131 = smul.addr %s19, 8
          %s1132 = smul.addr %s1131, 128
          %s1133 = scalar_lea.hbm %s5, %s1132
          %s1134 = sshll.u32 %s1124, 4
          %s1135 = int_to_ptr.vmem [resolvable:$true] %s1134
          %1140 = dma.vmem_to_hbm [thread:$0]  %s1135, 1024, %s1133, %s1121, 128, 128, 8
        $region44: #{stage_forward_pallas.5} parent=39 // pred_fallthru
          _
      $region40: #{stage_forward_pallas.5} parent=5 // pred_fallthru
        _
      %p1141 = scmp.le.s32.totalorder 2, %s14
      // Predicated region
      $region45: #{stage_forward_pallas.5} parent=5 // pred_check
        %p1142 = pneg %p1141
      $region46: #{stage_forward_pallas.5} parent=5 // pred_check_branch
        %1144 = sbr.rel (%p1142) target = $region48
      $region47: #{stage_forward_pallas.5} parent=5 // pred_region
        %s1145 = ssub.s32 %s14, 2
        // Predicated region
        $region49: #{stage_forward_pallas.5} parent=47 // pred_check
          %p1146 = pneg %p153
        $region50: #{stage_forward_pallas.5} parent=47 // pred_check_branch
          %1148 = sbr.rel (%p1146) target = $region52
        $region51: #{stage_forward_pallas.5} parent=47 // pred_region
          %s1149 = sand.u32 %s138, 1
          %s1150 = scalar_lea.sflag [#allocation4], %s1149
          %s1151 = sand.u32 %s138, 1
          %s1152 = smul.addr %s1151, 64
          %s1153 = scalar_lea.vmem [#allocation3], %s1152
          %1154 = dma.done %s1150, 1024
        $region52: #{stage_forward_pallas.5} parent=47 // pred_fallthru
          _
      $region48: #{stage_forward_pallas.5} parent=5 // pred_fallthru
        _
    $region6: #{stage_forward_pallas.5} parent=1 // loop_footer
      %s18 = sadd.s32 1, %s14
    $region7: #{stage_forward_pallas.5} parent=1 // loop_footer_branch
      %13 = sbr.rel target = $region3
    $region8: #{stage_forward_pallas.5} parent=1 // loop_exit
      _
    %1155 = vsyncpa [#allocation4], 1
    %s1156 = scalar_lea.sflag [#allocation4], 1
    %1157 = vsyncpa %s1156, 1

</llo_original>
